<compile_context>
chip_gen: v5e
topology: v5e:2x2
jax: 0.10.0
libtpu: 0.0.40
codegen_flags: <defaults>
</compile_context>

<pallas_src>
import functools

import jax
import jax.numpy as jnp
from jax import lax
from jax.experimental import pallas as pl
from jax.experimental.pallas import tpu as pltpu


def _vmem_limit(block_bytes):
    # double-buffered blocks + slack; clamp to [16 MiB, 32 MiB] (safe on v5e/v6e/v7x).
    return int(min(32 * 1024 * 1024, max(16 * 1024 * 1024, 2 * block_bytes + (1 << 20))))


# ----------------------------------------------------------------------------
# Kernel A: fused down2 + sk1 + up2's 1x1 conv.  One grid step per batch element.
# Layouts: x is (B, H*W, Cx); y is pre-deinterleaved into its four 2x2-pooling
# phases (B, 4, H*W, Cy) so the kernel never needs strided access.
# ----------------------------------------------------------------------------
def _down2_sk1_kernel(H, W,
                      yph_ref, x_ref,
                      w1d_ref, b1d_ref, w3_ref, b3_ref,
                      w1s_ref, sc1_ref, sh1_ref, w2a_ref, w2b_ref,
                      wup_ref, bup_ref,
                      o_ref, pad_ref):
    HW = H * W
    Cx = x_ref.shape[-1]

    # --- conv1x1 (Cy->Cx) on each pooling phase, then max  ==  conv1x1 -> maxpool2x2
    yph = yph_ref[0].reshape(4 * HW, -1)                # (4*HW, Cy) f32
    z4 = jnp.dot(yph.astype(jnp.bfloat16), w1d_ref[...],
                 preferred_element_type=jnp.float32)    # (4*HW, Cx)
    p = jnp.max(z4.reshape(4, HW, Cx), axis=0)          # maxpool over the 4 phases
    p = p + b1d_ref[...]                                # shared bias commutes with max

    # --- 3x3 "same" conv (folded BN) + ReLU as 9 shifted dots.
    # rows of `p` are pixels in h*W+w order; a zero border of W+1 rows on each side of
    # the VMEM scratch provides the out-of-image zeros in the h direction, and the
    # w-direction image edge is handled with iota masks.
    pad_ref[...] = jnp.zeros((HW + 2 * W + 2, Cx), jnp.float32)
    pad_ref[W + 1:W + 1 + HW, :] = p

    wcol = lax.broadcasted_iota(jnp.int32, (HW, 1), 0) % W
    left_ok = wcol >= 1                                 # valid rows when dx == -1
    right_ok = wcol <= W - 2                            # valid rows when dx == +1

    w3 = w3_ref[...]                                    # (9, Cx, Cx) bf16
    acc = jnp.zeros((HW, Cx), jnp.float32)
    tap = 0
    for dy in (-1, 0, 1):
        for dx in (-1, 0, 1):
            off = dy * W + dx
            sh = pad_ref[W + 1 + off:W + 1 + off + HW, :]
            if dx == -1:
                sh = jnp.where(left_ok, sh, 0.0)
            elif dx == 1:
                sh = jnp.where(right_ok, sh, 0.0)
            acc = acc + jnp.dot(sh.astype(jnp.bfloat16), w3[tap],
                                preferred_element_type=jnp.float32)
            tap += 1
    y_en = jnp.maximum(acc + b3_ref[...], 0.0)          # (HW, Cx)

    # --- sk1: U = x + y_en ; GAP ; fc1 (+folded BN) + ReLU ; fc2 ; 2-way softmax ; blend
    xa = x_ref[0]                                       # (HW, Cx) f32
    u = xa + y_en
    s = jnp.sum(u, axis=0, keepdims=True) * (1.0 / float(HW))          # (1, Cx)
    z = jnp.maximum(
        jnp.dot(s, w1s_ref[...], preferred_element_type=jnp.float32)
        * sc1_ref[...] + sh1_ref[...], 0.0)                            # (1, d1)
    a = jnp.dot(z, w2a_ref[...], preferred_element_type=jnp.float32)   # (1, Cx)
    b = jnp.dot(z, w2b_ref[...], preferred_element_type=jnp.float32)
    m = jnp.maximum(a, b)
    ea = jnp.exp(a - m)
    eb = jnp.exp(b - m)
    inv = pl.reciprocal(ea + eb, approx=True)           # EUP slot, ~free
    fuse1 = xa * (ea * inv) + y_en * (eb * inv)         # (HW, Cx)

    # --- up2's 1x1 conv folded in (conv1x1 commutes with bilinear upsample; bias rows
    # of the interp matrices sum to 1, so the bias is added exactly once here).
    o_ref[0] = (jnp.dot(fuse1.astype(jnp.bfloat16), wup_ref[...],
                        preferred_element_type=jnp.float32) + bup_ref[...])


def down2_sk1(params, x_flat, y_ph, H, W):
    B, HW, Cx = x_flat.shape
    Cy = y_ph.shape[-1]
    d1 = params["sk1"]["w1"].shape[1]

    block_bytes = 4 * (4 * HW * Cy + HW * Cx + HW * Cy) + 4 * (HW + 2 * W + 2) * Cx
    flops = 2 * B * HW * Cx * (4 * Cy + 9 * Cx + Cy)
    bytes_accessed = 4 * B * (4 * HW * Cy + HW * Cx + HW * Cy)

    return pl.pallas_call(
        functools.partial(_down2_sk1_kernel, H, W),
        out_shape=jax.ShapeDtypeStruct((B, HW, Cy), jnp.float32),
        grid=(B,),
        in_specs=[
            pl.BlockSpec((1, 4, HW, Cy), lambda b: (b, 0, 0, 0)),   # y pooling phases
            pl.BlockSpec((1, HW, Cx), lambda b: (b, 0, 0)),         # x
            pl.BlockSpec((Cy, Cx), lambda b: (0, 0)),               # down 1x1 weight (bf16)
            pl.BlockSpec((1, Cx), lambda b: (0, 0)),                # down 1x1 bias
            pl.BlockSpec((9, Cx, Cx), lambda b: (0, 0, 0)),         # down 3x3 weight (BN folded, bf16)
            pl.BlockSpec((1, Cx), lambda b: (0, 0)),                # down 3x3 bias (BN folded)
            pl.BlockSpec((Cx, d1), lambda b: (0, 0)),               # sk1 fc1
            pl.BlockSpec((1, d1), lambda b: (0, 0)),                # sk1 BN scale
            pl.BlockSpec((1, d1), lambda b: (0, 0)),                # sk1 BN shift
            pl.BlockSpec((d1, Cx), lambda b: (0, 0)),               # sk1 fc2 branch 0
            pl.BlockSpec((d1, Cx), lambda b: (0, 0)),               # sk1 fc2 branch 1
            pl.BlockSpec((Cx, Cy), lambda b: (0, 0)),               # up2 1x1 weight (bf16)
            pl.BlockSpec((1, Cy), lambda b: (0, 0)),                # up2 1x1 bias
        ],
        out_specs=pl.BlockSpec((1, HW, Cy), lambda b: (b, 0, 0)),
        scratch_shapes=[pltpu.VMEM((HW + 2 * W + 2, Cx), jnp.float32)],
        compiler_params=pltpu.CompilerParams(
            dimension_semantics=("parallel",),
            vmem_limit_bytes=_vmem_limit(block_bytes)),
        cost_estimate=pl.CostEstimate(
            flops=flops, transcendentals=2 * B * Cx, bytes_accessed=bytes_accessed),
    )(
        y_ph, x_flat,
        params["down_w1"].astype(jnp.bfloat16), params["down_b1"],
        params["down_w3"].astype(jnp.bfloat16), params["down_b3"],
        params["sk1"]["w1"], params["sk1"]["scale1"], params["sk1"]["shift1"],
        params["sk1"]["w2a"], params["sk1"]["w2b"],
        params["up_w"].astype(jnp.bfloat16), params["up_b"].reshape(1, Cy),
    )


# ----------------------------------------------------------------------------
# Kernel B: fused up2 bilinear x2 (align_corners=True, 1x1 conv already applied) + sk2.
# Layouts: g as (B, H, W*Cy), y / output as (B, 2H, 2W*Cy)  (lane-dense).
# ----------------------------------------------------------------------------
def _up2_sk2_kernel(g_ref, y_ref,
                    ah_ref, kcol_ref,
                    sw1_ref, sc2_ref, sh2_ref, w2a_ref, w2b_ref, t_ref,
                    o_ref):
    # --- bilinear x2: rows = Ah @ g ; cols = rows @ (Aw (x) I_Cy)
    g = g_ref[0]                                         # (H, W*Cy) f32
    rows = jnp.dot(ah_ref[...], g.astype(jnp.bfloat16),
                   preferred_element_type=jnp.float32)   # (2H, W*Cy)
    upc = jnp.dot(rows.astype(jnp.bfloat16), kcol_ref[...],
                  preferred_element_type=jnp.float32)    # (2H, 2W*Cy)

    # --- sk2: U = upc + y ; GAP ; fc1 (+folded BN) + ReLU ; fc2 ; 2-way softmax ; blend
    yv = y_ref[0]                                        # (2H, 2W*Cy)
    u = upc + yv
    ur = jnp.sum(u, axis=0, keepdims=True)               # (1, 2W*Cy)
    # sw1 folds the 1/(2H*2W) GAP normalisation, the per-channel gather and fc1.
    z = jnp.maximum(
        jnp.dot(ur, sw1_ref[...], preferred_element_type=jnp.float32)
        * sc2_ref[...] + sh2_ref[...], 0.0)                            # (1, d2)
    a = jnp.dot(z, w2a_ref[...], preferred_element_type=jnp.float32)   # (1, Cy)
    b = jnp.dot(z, w2b_ref[...], preferred_element_type=jnp.float32)
    m = jnp.maximum(a, b)
    ea = jnp.exp(a - m)
    eb = jnp.exp(b - m)
    inv = pl.reciprocal(ea + eb, approx=True)
    wa = jnp.dot(ea * inv, t_ref[...], preferred_element_type=jnp.float32)  # (1, 2W*Cy)
    wb = jnp.dot(eb * inv, t_ref[...], preferred_element_type=jnp.float32)
    o_ref[0] = upc * wa + yv * wb


def up2_sk2(params, g_row, y_row, ah, kcol, sw1, t_bcast):
    B, H, WCy = g_row.shape
    _, H2, W2Cy = y_row.shape
    d2 = sw1.shape[1]
    Cy = t_bcast.shape[0]

    block_bytes = 4 * (H * WCy + 2 * H2 * W2Cy) + 2 * (H2 * H + WCy * W2Cy)
    flops = 2 * B * (H2 * H * WCy + H2 * WCy * W2Cy)
    bytes_accessed = 4 * B * (H * WCy + 2 * H2 * W2Cy)

    return pl.pallas_call(
        _up2_sk2_kernel,
        out_shape=jax.ShapeDtypeStruct((B, H2, W2Cy), jnp.float32),
        grid=(B,),
        in_specs=[
            pl.BlockSpec((1, H, WCy), lambda b: (b, 0, 0)),        # g = conv1x1(fuse1)
            pl.BlockSpec((1, H2, W2Cy), lambda b: (b, 0, 0)),      # y rows
            pl.BlockSpec((H2, H), lambda b: (0, 0)),               # row interp matrix (bf16)
            pl.BlockSpec((WCy, W2Cy), lambda b: (0, 0)),           # col interp (x) I_Cy (bf16)
            pl.BlockSpec((W2Cy, d2), lambda b: (0, 0)),            # GAP-folded sk2 fc1
            pl.BlockSpec((1, d2), lambda b: (0, 0)),               # sk2 BN scale
            pl.BlockSpec((1, d2), lambda b: (0, 0)),               # sk2 BN shift
            pl.BlockSpec((d2, Cy), lambda b: (0, 0)),              # sk2 fc2 branch 0
            pl.BlockSpec((d2, Cy), lambda b: (0, 0)),              # sk2 fc2 branch 1
            pl.BlockSpec((Cy, W2Cy), lambda b: (0, 0)),            # channel -> lane broadcast
        ],
        out_specs=pl.BlockSpec((1, H2, W2Cy), lambda b: (b, 0, 0)),
        compiler_params=pltpu.CompilerParams(
            dimension_semantics=("parallel",),
            vmem_limit_bytes=_vmem_limit(block_bytes)),
        cost_estimate=pl.CostEstimate(
            flops=flops, transcendentals=2 * B * Cy, bytes_accessed=bytes_accessed),
    )(
        g_row, y_row,
        ah.astype(jnp.bfloat16), kcol.astype(jnp.bfloat16),
        sw1, params["sk2"]["scale1"], params["sk2"]["shift1"],
        params["sk2"]["w2a"], params["sk2"]["w2b"], t_bcast,
    )


# ----------------------------------------------------------------------------
# Bilinear x2 (align_corners=True) interpolation matrix (host-side, tiny).
# ----------------------------------------------------------------------------
def _upsample_matrix(in_size, out_size):
    idx = jnp.arange(out_size, dtype=jnp.float32)
    if out_size > 1:
        src = idx * float(in_size - 1) / float(out_size - 1)
    else:
        src = jnp.zeros_like(idx)
    i0 = jnp.clip(jnp.floor(src), 0, in_size - 1).astype(jnp.int32)
    i1 = jnp.clip(i0 + 1, 0, in_size - 1)
    w1 = src - i0.astype(jnp.float32)
    w0 = 1.0 - w1
    rows = jnp.arange(out_size)
    A = jnp.zeros((out_size, in_size), jnp.float32)
    A = A.at[rows, i0].add(w0)
    A = A.at[rows, i1].add(w1)
    return A


# ----------------------------------------------------------------------------
# Parameter initialization (deterministic, synthetic).  Eval-mode BN is folded.
# ----------------------------------------------------------------------------
def init_params(key, cx, cy, eps=1e-5):
    keys = list(jax.random.split(key, 32))
    it = iter(keys)

    def nrm(shape, scale=0.2):
        return scale * jax.random.normal(next(it), shape, dtype=jnp.float32)

    def bn_params(c):
        gamma = 1.0 + 0.1 * jax.random.normal(next(it), (c,), jnp.float32)
        beta = 0.1 * jax.random.normal(next(it), (c,), jnp.float32)
        mean = 0.1 * jax.random.normal(next(it), (c,), jnp.float32)
        var = 1.0 + 0.1 * jnp.abs(jax.random.normal(next(it), (c,), jnp.float32))
        return gamma, beta, mean, var

    def sk_params(c):
        d = max(c // 16, 32)
        w1 = nrm((c, d))                      # fc1 1x1 conv, no bias
        gamma, beta, mean, var = bn_params(d)
        scale1 = gamma / jnp.sqrt(var + eps)
        shift1 = beta - mean * scale1
        w2 = nrm((d, 2 * c))                  # fc2 1x1 conv, no bias
        return {
            "w1": w1,
            "scale1": scale1.reshape(1, d),
            "shift1": shift1.reshape(1, d),
            "w2a": w2[:, :c],                 # M = 0
            "w2b": w2[:, c:],                 # M = 1
        }

    # down2: Conv1x1(cy->cx) -> MaxPool2 -> Conv3x3(cx->cx) -> BN -> ReLU (BN folded)
    down_w1 = nrm((cy, cx))
    down_b1 = nrm((cx,)).reshape(1, cx)
    w3 = nrm((9 * cx, cx))
    b3 = nrm((cx,))
    gamma, beta, mean, var = bn_params(cx)
    sc = gamma / jnp.sqrt(var + eps)
    down_w3 = (w3 * sc[None, :]).reshape(9, cx, cx)     # tap k = (dy+1)*3 + (dx+1)
    down_b3 = ((b3 - mean) * sc + beta).reshape(1, cx)

    # up2: bilinear x2 then Conv1x1(cx->cy)  (applied pre-upsample; exactly equivalent)
    up_w = nrm((cx, cy))
    up_b = nrm((cy,))

    return {
        "down_w1": down_w1, "down_b1": down_b1,
        "down_w3": down_w3, "down_b3": down_b3,
        "sk1": sk_params(cx),
        "up_w": up_w, "up_b": up_b,
        "sk2": sk_params(cy),
    }


# ----------------------------------------------------------------------------
# CIM forward: x is (B, in_channels, H, W), y is (B, out_channels, 2H, 2W), NCHW.
# ----------------------------------------------------------------------------
def cim_forward(params, x_nchw, y_nchw):
    x = jnp.transpose(x_nchw, (0, 2, 3, 1)).astype(jnp.float32)   # (B, H, W, Cx)
    y = jnp.transpose(y_nchw, (0, 2, 3, 1)).astype(jnp.float32)   # (B, 2H, 2W, Cy)
    B, H, W, Cx = x.shape
    _, H2, W2, Cy = y.shape
    assert H2 == 2 * H and W2 == 2 * W

    # ---- wrapper-side layout plumbing (single cheap passes, no compute) ----
    x_flat = x.reshape(B, H * W, Cx)
    y_ph = (y.reshape(B, H, 2, W, 2, Cy)          # deinterleave the 2x2 pooling phases
             .transpose(0, 2, 4, 1, 3, 5)
             .reshape(B, 4, H * W, Cy))
    y_row = y.reshape(B, H2, W2 * Cy)

    # ---- spatial-size-dependent derived operators for the up2+sk2 kernel ----
    ah = _upsample_matrix(H, H2)                                    # (2H, H)
    aw = _upsample_matrix(W, W2)                                    # (2W, W)
    eye_cy = jnp.eye(Cy, dtype=jnp.float32)
    kcol = jnp.einsum("qw,cd->wcqd", aw, eye_cy).reshape(W * Cy, W2 * Cy)
    gather = jnp.tile(eye_cy, (W2, 1))                              # (2W*Cy, Cy)
    sw1 = (gather @ params["sk2"]["w1"]) / float(H2 * W2)           # (2W*Cy, d2)
    t_bcast = gather.T                                              # (Cy, 2W*Cy)

    # ---- two fused Pallas kernels ----
    g = down2_sk1(params, x_flat, y_ph, H, W)                       # (B, H*W, Cy)
    out_row = up2_sk2(params, g.reshape(B, H, W * Cy), y_row,
                      ah, kcol, sw1, t_bcast)                       # (B, 2H, 2W*Cy)

    out = out_row.reshape(B, H2, W2, Cy)
    return jnp.transpose(out, (0, 3, 1, 2))                         # back to NCHW


if __name__ == "__main__":
    key = jax.random.PRNGKey(0)
    kx, ky, kp = jax.random.split(key, 3)

    B, Cx, Cy, H, W = 2, 8, 4, 8, 8       # x: (B, in_ch, H, W);  y: (B, out_ch, 2H, 2W)
    x = jax.random.normal(kx, (B, Cx, H, W), dtype=jnp.float32)
    y = jax.random.normal(ky, (B, Cy, 2 * H, 2 * W), dtype=jnp.float32)

    params = init_params(kp, Cx, Cy)
    fwd = jax.jit(cim_forward)
    out = jax.block_until_ready(fwd(params, x, y))
    assert out.shape == (B, Cy, 2 * H, 2 * W), out.shape
    assert bool(jnp.all(jnp.isfinite(out)))
    print("KERNEL_OK")
</pallas_src>

<mosaic_0001>
module attributes {stable_mosaic.version = 11 : i64} {
  func.func @_down2_sk1_kernel(%arg0: i32, %arg1: memref<1x4x64x4xf32, #tpu.memory_space<vmem>>, %arg2: memref<1x64x8xf32, #tpu.memory_space<vmem>>, %arg3: memref<4x8xbf16, #tpu.memory_space<vmem>>, %arg4: memref<1x8xf32, #tpu.memory_space<vmem>>, %arg5: memref<9x8x8xbf16, #tpu.memory_space<vmem>>, %arg6: memref<1x8xf32, #tpu.memory_space<vmem>>, %arg7: memref<8x32xf32, #tpu.memory_space<vmem>>, %arg8: memref<1x32xf32, #tpu.memory_space<vmem>>, %arg9: memref<1x32xf32, #tpu.memory_space<vmem>>, %arg10: memref<32x8xf32, #tpu.memory_space<vmem>>, %arg11: memref<32x8xf32, #tpu.memory_space<vmem>>, %arg12: memref<8x4xbf16, #tpu.memory_space<vmem>>, %arg13: memref<1x4xf32, #tpu.memory_space<vmem>>, %arg14: memref<1x64x4xf32, #tpu.memory_space<vmem>>, %arg15: memref<82x8xf32, #tpu.memory_space<vmem>>) attributes {dimension_semantics = [#tpu.dimension_semantics<parallel>], iteration_bounds = array<i64: 2>, scalar_prefetch = 0 : i64, scratch_operands = 1 : i64, tpu.core_type = #tpu.core_type<tc>, window_params = [{transform_indices = @transform_0, window_bounds = array<i64: 1, 4, 64, 4>}, {transform_indices = @transform_1, window_bounds = array<i64: 1, 64, 8>}, {pipeline_mode = #tpu.pipeline_mode<synchronous>, transform_indices = @transform_2, window_bounds = array<i64: 4, 8>}, {pipeline_mode = #tpu.pipeline_mode<synchronous>, transform_indices = @transform_3, window_bounds = array<i64: 1, 8>}, {pipeline_mode = #tpu.pipeline_mode<synchronous>, transform_indices = @transform_4, window_bounds = array<i64: 9, 8, 8>}, {pipeline_mode = #tpu.pipeline_mode<synchronous>, transform_indices = @transform_5, window_bounds = array<i64: 1, 8>}, {pipeline_mode = #tpu.pipeline_mode<synchronous>, transform_indices = @transform_6, window_bounds = array<i64: 8, 32>}, {pipeline_mode = #tpu.pipeline_mode<synchronous>, transform_indices = @transform_7, window_bounds = array<i64: 1, 32>}, {pipeline_mode = #tpu.pipeline_mode<synchronous>, transform_indices = @transform_8, window_bounds = array<i64: 1, 32>}, {pipeline_mode = #tpu.pipeline_mode<synchronous>, transform_indices = @transform_9, window_bounds = array<i64: 32, 8>}, {pipeline_mode = #tpu.pipeline_mode<synchronous>, transform_indices = @transform_10, window_bounds = array<i64: 32, 8>}, {pipeline_mode = #tpu.pipeline_mode<synchronous>, transform_indices = @transform_11, window_bounds = array<i64: 8, 4>}, {pipeline_mode = #tpu.pipeline_mode<synchronous>, transform_indices = @transform_12, window_bounds = array<i64: 1, 4>}, {transform_indices = @transform_13, window_bounds = array<i64: 1, 64, 4>}]} {
    %c0 = arith.constant 0 : index
    %c0_0 = arith.constant 0 : index
    %c0_1 = arith.constant 0 : index
    %c0_2 = arith.constant 0 : index
    %0 = vector.load %arg1[%c0, %c0_0, %c0_1, %c0_2] : memref<1x4x64x4xf32, #tpu.memory_space<vmem>>, vector<1x4x64x4xf32>
    %1 = vector.shape_cast %0 : vector<1x4x64x4xf32> to vector<4x64x4xf32>
    %2 = vector.shape_cast %1 : vector<4x64x4xf32> to vector<256x4xf32>
    %3 = arith.truncf %2 : vector<256x4xf32> to vector<256x4xbf16>
    %c0_3 = arith.constant 0 : index
    %c0_4 = arith.constant 0 : index
    %4 = vector.load %arg3[%c0_3, %c0_4] : memref<4x8xbf16, #tpu.memory_space<vmem>>, vector<4x8xbf16>
    %cst = arith.constant dense<0.000000e+00> : vector<256x8xf32>
    %5 = tpu.matmul %3, %4, %cst {dimension_numbers = #tpu.dot_dimension_numbers<[1], [0], [0], [1], [0, 0, 1, 1], [], []>} : vector<256x4xbf16>, vector<4x8xbf16>, vector<256x8xf32> -> vector<256x8xf32>
    %6 = vector.shape_cast %5 : vector<256x8xf32> to vector<4x64x8xf32>
    %cst_5 = arith.constant dense<0xFF800000> : vector<64x8xf32>
    %7 = vector.multi_reduction <maximumf>, %6, %cst_5 [0] : vector<4x64x8xf32> to vector<64x8xf32>
    %c0_6 = arith.constant 0 : index
    %c0_7 = arith.constant 0 : index
    %8 = vector.load %arg4[%c0_6, %c0_7] : memref<1x8xf32, #tpu.memory_space<vmem>>, vector<1x8xf32>
    %9 = vector.broadcast %8 : vector<1x8xf32> to vector<64x8xf32>
    %10 = arith.addf %7, %9 : vector<64x8xf32>
    %cst_8 = arith.constant 0.000000e+00 : f32
    %11 = vector.broadcast %cst_8 : f32 to vector<82x8xf32>
    %c0_9 = arith.constant 0 : index
    %c0_10 = arith.constant 0 : index
    %12 = vector.load %arg15[%c0_9, %c0_10] : memref<82x8xf32, #tpu.memory_space<vmem>>, vector<82x8xf32>
    tpu.vector_store %arg15[%c0_9, %c0_10], %11 {strides = array<i32>} : memref<82x8xf32, #tpu.memory_space<vmem>>, vector<82x8xf32>,
    %c9 = arith.constant 9 : index
    %c0_11 = arith.constant 0 : index
    %13 = vector.load %arg15[%c9, %c0_11] : memref<82x8xf32, #tpu.memory_space<vmem>>, vector<64x8xf32>
    tpu.vector_store %arg15[%c9, %c0_11], %10 {strides = array<i32>} : memref<82x8xf32, #tpu.memory_space<vmem>>, vector<64x8xf32>,
    %14 = tpu.iota {dimensions = array<i32: 0>} : vector<64x1xi32>
    %c8_i32 = arith.constant 8 : i32
    %c0_i32 = arith.constant 0 : i32
    %15 = arith.cmpi eq, %c8_i32, %c0_i32 : i32
    %c1_i32 = arith.constant 1 : i32
    %16 = arith.select %15, %c1_i32, %c8_i32 : i32
    %17 = vector.broadcast %16 : i32 to vector<64x1xi32>
    %18 = arith.remsi %14, %17 : vector<64x1xi32>
    %c0_i32_12 = arith.constant 0 : i32
    %19 = vector.broadcast %c0_i32_12 : i32 to vector<64x1xi32>
    %20 = arith.cmpi ne, %18, %19 : vector<64x1xi32>
    %c0_i32_13 = arith.constant 0 : i32
    %21 = vector.broadcast %c0_i32_13 : i32 to vector<64x1xi32>
    %22 = arith.cmpi slt, %18, %21 : vector<64x1xi32>
    %c0_i32_14 = arith.constant 0 : i32
    %23 = arith.cmpi slt, %16, %c0_i32_14 : i32
    %24 = vector.broadcast %23 : i1 to vector<64x1xi1>
    %25 = vector.broadcast %24 : vector<64x1xi1> to vector<64x1xi1>
    %26 = arith.xori %22, %25 : vector<64x1xi1>
    %27 = arith.andi %26, %20 : vector<64x1xi1>
    %28 = vector.broadcast %16 : i32 to vector<64x1xi32>
    %29 = arith.addi %18, %28 : vector<64x1xi32>
    %30 = arith.select %27, %29, %18 : vector<64x1xi1>, vector<64x1xi32>
    %c1_i32_15 = arith.constant 1 : i32
    %31 = vector.broadcast %c1_i32_15 : i32 to vector<64x1xi32>
    %32 = arith.cmpi sge, %30, %31 : vector<64x1xi32>
    %c6_i32 = arith.constant 6 : i32
    %33 = vector.broadcast %c6_i32 : i32 to vector<64x1xi32>
    %34 = arith.cmpi sle, %30, %33 : vector<64x1xi32>
    %c0_16 = arith.constant 0 : index
    %c0_17 = arith.constant 0 : index
    %c0_18 = arith.constant 0 : index
    %35 = vector.load %arg5[%c0_16, %c0_17, %c0_18] : memref<9x8x8xbf16, #tpu.memory_space<vmem>>, vector<9x8x8xbf16>
    %cst_19 = arith.constant 0.000000e+00 : f32
    %36 = vector.broadcast %cst_19 : f32 to vector<64x8xf32>
    %c0_20 = arith.constant 0 : index
    %c0_21 = arith.constant 0 : index
    %37 = vector.load %arg15[%c0_20, %c0_21] : memref<82x8xf32, #tpu.memory_space<vmem>>, vector<64x8xf32>
    %cst_22 = arith.constant 0.000000e+00 : f32
    %38 = vector.shape_cast %32 : vector<64x1xi1> to vector<64x1xi1>
    %39 = vector.broadcast %38 : vector<64x1xi1> to vector<64x8xi1>
    %40 = vector.broadcast %cst_22 : f32 to vector<64x8xf32>
    %41 = arith.select %39, %37, %40 : vector<64x8xi1>, vector<64x8xf32>
    %42 = arith.truncf %41 : vector<64x8xf32> to vector<64x8xbf16>
    %43 = vector.extract_strided_slice %35 {offsets = [0, 0, 0], sizes = [1, 8, 8], strides = [1, 1, 1]} : vector<9x8x8xbf16> to vector<1x8x8xbf16>
    %44 = vector.shape_cast %43 : vector<1x8x8xbf16> to vector<8x8xbf16>
    %cst_23 = arith.constant dense<0.000000e+00> : vector<64x8xf32>
    %45 = tpu.matmul %42, %44, %cst_23 {dimension_numbers = #tpu.dot_dimension_numbers<[1], [0], [0], [1], [0, 0, 1, 1], [], []>} : vector<64x8xbf16>, vector<8x8xbf16>, vector<64x8xf32> -> vector<64x8xf32>
    %46 = arith.addf %36, %45 : vector<64x8xf32>
    %c1 = arith.constant 1 : index
    %c0_24 = arith.constant 0 : index
    %47 = vector.load %arg15[%c1, %c0_24] : memref<82x8xf32, #tpu.memory_space<vmem>>, vector<64x8xf32>
    %48 = arith.truncf %47 : vector<64x8xf32> to vector<64x8xbf16>
    %49 = vector.extract_strided_slice %35 {offsets = [1, 0, 0], sizes = [1, 8, 8], strides = [1, 1, 1]} : vector<9x8x8xbf16> to vector<1x8x8xbf16>
    %50 = vector.shape_cast %49 : vector<1x8x8xbf16> to vector<8x8xbf16>
    %cst_25 = arith.constant dense<0.000000e+00> : vector<64x8xf32>
    %51 = tpu.matmul %48, %50, %cst_25 {dimension_numbers = #tpu.dot_dimension_numbers<[1], [0], [0], [1], [0, 0, 1, 1], [], []>} : vector<64x8xbf16>, vector<8x8xbf16>, vector<64x8xf32> -> vector<64x8xf32>
    %52 = arith.addf %46, %51 : vector<64x8xf32>
    %c2 = arith.constant 2 : index
    %c0_26 = arith.constant 0 : index
    %53 = vector.load %arg15[%c2, %c0_26] : memref<82x8xf32, #tpu.memory_space<vmem>>, vector<64x8xf32>
    %cst_27 = arith.constant 0.000000e+00 : f32
    %54 = vector.shape_cast %34 : vector<64x1xi1> to vector<64x1xi1>
    %55 = vector.broadcast %54 : vector<64x1xi1> to vector<64x8xi1>
    %56 = vector.broadcast %cst_27 : f32 to vector<64x8xf32>
    %57 = arith.select %55, %53, %56 : vector<64x8xi1>, vector<64x8xf32>
    %58 = arith.truncf %57 : vector<64x8xf32> to vector<64x8xbf16>
    %59 = vector.extract_strided_slice %35 {offsets = [2, 0, 0], sizes = [1, 8, 8], strides = [1, 1, 1]} : vector<9x8x8xbf16> to vector<1x8x8xbf16>
    %60 = vector.shape_cast %59 : vector<1x8x8xbf16> to vector<8x8xbf16>
    %cst_28 = arith.constant dense<0.000000e+00> : vector<64x8xf32>
    %61 = tpu.matmul %58, %60, %cst_28 {dimension_numbers = #tpu.dot_dimension_numbers<[1], [0], [0], [1], [0, 0, 1, 1], [], []>} : vector<64x8xbf16>, vector<8x8xbf16>, vector<64x8xf32> -> vector<64x8xf32>
    %62 = arith.addf %52, %61 : vector<64x8xf32>
    %c8 = arith.constant 8 : index
    %c0_29 = arith.constant 0 : index
    %63 = vector.load %arg15[%c8, %c0_29] : memref<82x8xf32, #tpu.memory_space<vmem>>, vector<64x8xf32>
    %cst_30 = arith.constant 0.000000e+00 : f32
    %64 = vector.shape_cast %32 : vector<64x1xi1> to vector<64x1xi1>
    %65 = vector.broadcast %64 : vector<64x1xi1> to vector<64x8xi1>
    %66 = vector.broadcast %cst_30 : f32 to vector<64x8xf32>
    %67 = arith.select %65, %63, %66 : vector<64x8xi1>, vector<64x8xf32>
    %68 = arith.truncf %67 : vector<64x8xf32> to vector<64x8xbf16>
    %69 = vector.extract_strided_slice %35 {offsets = [3, 0, 0], sizes = [1, 8, 8], strides = [1, 1, 1]} : vector<9x8x8xbf16> to vector<1x8x8xbf16>
    %70 = vector.shape_cast %69 : vector<1x8x8xbf16> to vector<8x8xbf16>
    %cst_31 = arith.constant dense<0.000000e+00> : vector<64x8xf32>
    %71 = tpu.matmul %68, %70, %cst_31 {dimension_numbers = #tpu.dot_dimension_numbers<[1], [0], [0], [1], [0, 0, 1, 1], [], []>} : vector<64x8xbf16>, vector<8x8xbf16>, vector<64x8xf32> -> vector<64x8xf32>
    %72 = arith.addf %62, %71 : vector<64x8xf32>
    %c9_32 = arith.constant 9 : index
    %c0_33 = arith.constant 0 : index
    %73 = vector.load %arg15[%c9_32, %c0_33] : memref<82x8xf32, #tpu.memory_space<vmem>>, vector<64x8xf32>
    %74 = arith.truncf %73 : vector<64x8xf32> to vector<64x8xbf16>
    %75 = vector.extract_strided_slice %35 {offsets = [4, 0, 0], sizes = [1, 8, 8], strides = [1, 1, 1]} : vector<9x8x8xbf16> to vector<1x8x8xbf16>
    %76 = vector.shape_cast %75 : vector<1x8x8xbf16> to vector<8x8xbf16>
    %cst_34 = arith.constant dense<0.000000e+00> : vector<64x8xf32>
    %77 = tpu.matmul %74, %76, %cst_34 {dimension_numbers = #tpu.dot_dimension_numbers<[1], [0], [0], [1], [0, 0, 1, 1], [], []>} : vector<64x8xbf16>, vector<8x8xbf16>, vector<64x8xf32> -> vector<64x8xf32>
    %78 = arith.addf %72, %77 : vector<64x8xf32>
    %c10 = arith.constant 10 : index
    %c0_35 = arith.constant 0 : index
    %79 = vector.load %arg15[%c10, %c0_35] : memref<82x8xf32, #tpu.memory_space<vmem>>, vector<64x8xf32>
    %cst_36 = arith.constant 0.000000e+00 : f32
    %80 = vector.shape_cast %34 : vector<64x1xi1> to vector<64x1xi1>
    %81 = vector.broadcast %80 : vector<64x1xi1> to vector<64x8xi1>
    %82 = vector.broadcast %cst_36 : f32 to vector<64x8xf32>
    %83 = arith.select %81, %79, %82 : vector<64x8xi1>, vector<64x8xf32>
    %84 = arith.truncf %83 : vector<64x8xf32> to vector<64x8xbf16>
    %85 = vector.extract_strided_slice %35 {offsets = [5, 0, 0], sizes = [1, 8, 8], strides = [1, 1, 1]} : vector<9x8x8xbf16> to vector<1x8x8xbf16>
    %86 = vector.shape_cast %85 : vector<1x8x8xbf16> to vector<8x8xbf16>
    %cst_37 = arith.constant dense<0.000000e+00> : vector<64x8xf32>
    %87 = tpu.matmul %84, %86, %cst_37 {dimension_numbers = #tpu.dot_dimension_numbers<[1], [0], [0], [1], [0, 0, 1, 1], [], []>} : vector<64x8xbf16>, vector<8x8xbf16>, vector<64x8xf32> -> vector<64x8xf32>
    %88 = arith.addf %78, %87 : vector<64x8xf32>
    %c16 = arith.constant 16 : index
    %c0_38 = arith.constant 0 : index
    %89 = vector.load %arg15[%c16, %c0_38] : memref<82x8xf32, #tpu.memory_space<vmem>>, vector<64x8xf32>
    %cst_39 = arith.constant 0.000000e+00 : f32
    %90 = vector.shape_cast %32 : vector<64x1xi1> to vector<64x1xi1>
    %91 = vector.broadcast %90 : vector<64x1xi1> to vector<64x8xi1>
    %92 = vector.broadcast %cst_39 : f32 to vector<64x8xf32>
    %93 = arith.select %91, %89, %92 : vector<64x8xi1>, vector<64x8xf32>
    %94 = arith.truncf %93 : vector<64x8xf32> to vector<64x8xbf16>
    %95 = vector.extract_strided_slice %35 {offsets = [6, 0, 0], sizes = [1, 8, 8], strides = [1, 1, 1]} : vector<9x8x8xbf16> to vector<1x8x8xbf16>
    %96 = vector.shape_cast %95 : vector<1x8x8xbf16> to vector<8x8xbf16>
    %cst_40 = arith.constant dense<0.000000e+00> : vector<64x8xf32>
    %97 = tpu.matmul %94, %96, %cst_40 {dimension_numbers = #tpu.dot_dimension_numbers<[1], [0], [0], [1], [0, 0, 1, 1], [], []>} : vector<64x8xbf16>, vector<8x8xbf16>, vector<64x8xf32> -> vector<64x8xf32>
    %98 = arith.addf %88, %97 : vector<64x8xf32>
    %c17 = arith.constant 17 : index
    %c0_41 = arith.constant 0 : index
    %99 = vector.load %arg15[%c17, %c0_41] : memref<82x8xf32, #tpu.memory_space<vmem>>, vector<64x8xf32>
    %100 = arith.truncf %99 : vector<64x8xf32> to vector<64x8xbf16>
    %101 = vector.extract_strided_slice %35 {offsets = [7, 0, 0], sizes = [1, 8, 8], strides = [1, 1, 1]} : vector<9x8x8xbf16> to vector<1x8x8xbf16>
    %102 = vector.shape_cast %101 : vector<1x8x8xbf16> to vector<8x8xbf16>
    %cst_42 = arith.constant dense<0.000000e+00> : vector<64x8xf32>
    %103 = tpu.matmul %100, %102, %cst_42 {dimension_numbers = #tpu.dot_dimension_numbers<[1], [0], [0], [1], [0, 0, 1, 1], [], []>} : vector<64x8xbf16>, vector<8x8xbf16>, vector<64x8xf32> -> vector<64x8xf32>
    %104 = arith.addf %98, %103 : vector<64x8xf32>
    %c18 = arith.constant 18 : index
    %c0_43 = arith.constant 0 : index
    %105 = vector.load %arg15[%c18, %c0_43] : memref<82x8xf32, #tpu.memory_space<vmem>>, vector<64x8xf32>
    %cst_44 = arith.constant 0.000000e+00 : f32
    %106 = vector.shape_cast %34 : vector<64x1xi1> to vector<64x1xi1>
    %107 = vector.broadcast %106 : vector<64x1xi1> to vector<64x8xi1>
    %108 = vector.broadcast %cst_44 : f32 to vector<64x8xf32>
    %109 = arith.select %107, %105, %108 : vector<64x8xi1>, vector<64x8xf32>
    %110 = arith.truncf %109 : vector<64x8xf32> to vector<64x8xbf16>
    %111 = vector.extract_strided_slice %35 {offsets = [8, 0, 0], sizes = [1, 8, 8], strides = [1, 1, 1]} : vector<9x8x8xbf16> to vector<1x8x8xbf16>
    %112 = vector.shape_cast %111 : vector<1x8x8xbf16> to vector<8x8xbf16>
    %cst_45 = arith.constant dense<0.000000e+00> : vector<64x8xf32>
    %113 = tpu.matmul %110, %112, %cst_45 {dimension_numbers = #tpu.dot_dimension_numbers<[1], [0], [0], [1], [0, 0, 1, 1], [], []>} : vector<64x8xbf16>, vector<8x8xbf16>, vector<64x8xf32> -> vector<64x8xf32>
    %114 = arith.addf %104, %113 : vector<64x8xf32>
    %c0_46 = arith.constant 0 : index
    %c0_47 = arith.constant 0 : index
    %115 = vector.load %arg6[%c0_46, %c0_47] : memref<1x8xf32, #tpu.memory_space<vmem>>, vector<1x8xf32>
    %116 = vector.broadcast %115 : vector<1x8xf32> to vector<64x8xf32>
    %117 = arith.addf %114, %116 : vector<64x8xf32>
    %cst_48 = arith.constant 0.000000e+00 : f32
    %118 = vector.broadcast %cst_48 : f32 to vector<64x8xf32>
    %119 = arith.maximumf %117, %118 : vector<64x8xf32>
    %c0_49 = arith.constant 0 : index
    %c0_50 = arith.constant 0 : index
    %c0_51 = arith.constant 0 : index
    %120 = vector.load %arg2[%c0_49, %c0_50, %c0_51] : memref<1x64x8xf32, #tpu.memory_space<vmem>>, vector<1x64x8xf32>
    %121 = vector.shape_cast %120 : vector<1x64x8xf32> to vector<64x8xf32>
    %122 = arith.addf %121, %119 : vector<64x8xf32>
    %cst_52 = arith.constant dense<0.000000e+00> : vector<8xf32>
    %123 = vector.multi_reduction <add>, %122, %cst_52 [0] : vector<64x8xf32> to vector<8xf32>
    %124 = vector.shape_cast %123 : vector<8xf32> to vector<1x8xf32>
    %cst_53 = arith.constant 1.562500e-02 : f32
    %125 = vector.broadcast %cst_53 : f32 to vector<1x8xf32>
    %126 = arith.mulf %124, %125 : vector<1x8xf32>
    %c0_54 = arith.constant 0 : index
    %c0_55 = arith.constant 0 : index
    %127 = vector.load %arg7[%c0_54, %c0_55] : memref<8x32xf32, #tpu.memory_space<vmem>>, vector<8x32xf32>
    %cst_56 = arith.constant dense<0.000000e+00> : vector<1x32xf32>
    %128 = tpu.matmul %126, %127, %cst_56 {dimension_numbers = #tpu.dot_dimension_numbers<[1], [0], [0], [1], [0, 0, 1, 1], [], []>} : vector<1x8xf32>, vector<8x32xf32>, vector<1x32xf32> -> vector<1x32xf32>
    %c0_57 = arith.constant 0 : index
    %c0_58 = arith.constant 0 : index
    %129 = vector.load %arg8[%c0_57, %c0_58] : memref<1x32xf32, #tpu.memory_space<vmem>>, vector<1x32xf32>
    %130 = arith.mulf %128, %129 : vector<1x32xf32>
    %c0_59 = arith.constant 0 : index
    %c0_60 = arith.constant 0 : index
    %131 = vector.load %arg9[%c0_59, %c0_60] : memref<1x32xf32, #tpu.memory_space<vmem>>, vector<1x32xf32>
    %132 = arith.addf %130, %131 : vector<1x32xf32>
    %cst_61 = arith.constant 0.000000e+00 : f32
    %133 = vector.broadcast %cst_61 : f32 to vector<1x32xf32>
    %134 = arith.maximumf %132, %133 : vector<1x32xf32>
    %c0_62 = arith.constant 0 : index
    %c0_63 = arith.constant 0 : index
    %135 = vector.load %arg10[%c0_62, %c0_63] : memref<32x8xf32, #tpu.memory_space<vmem>>, vector<32x8xf32>
    %cst_64 = arith.constant dense<0.000000e+00> : vector<1x8xf32>
    %136 = tpu.matmul %134, %135, %cst_64 {dimension_numbers = #tpu.dot_dimension_numbers<[1], [0], [0], [1], [0, 0, 1, 1], [], []>} : vector<1x32xf32>, vector<32x8xf32>, vector<1x8xf32> -> vector<1x8xf32>
    %c0_65 = arith.constant 0 : index
    %c0_66 = arith.constant 0 : index
    %137 = vector.load %arg11[%c0_65, %c0_66] : memref<32x8xf32, #tpu.memory_space<vmem>>, vector<32x8xf32>
    %cst_67 = arith.constant dense<0.000000e+00> : vector<1x8xf32>
    %138 = tpu.matmul %134, %137, %cst_67 {dimension_numbers = #tpu.dot_dimension_numbers<[1], [0], [0], [1], [0, 0, 1, 1], [], []>} : vector<1x32xf32>, vector<32x8xf32>, vector<1x8xf32> -> vector<1x8xf32>
    %139 = arith.maximumf %136, %138 : vector<1x8xf32>
    %140 = arith.subf %136, %139 : vector<1x8xf32>
    %141 = math.exp %140 : vector<1x8xf32>
    %142 = arith.subf %138, %139 : vector<1x8xf32>
    %143 = math.exp %142 : vector<1x8xf32>
    %144 = arith.addf %141, %143 : vector<1x8xf32>
    %145 = tpu.reciprocal %144 {approx = true} : vector<1x8xf32> -> vector<1x8xf32>
    %146 = arith.mulf %141, %145 : vector<1x8xf32>
    %147 = vector.broadcast %146 : vector<1x8xf32> to vector<64x8xf32>
    %148 = arith.mulf %121, %147 : vector<64x8xf32>
    %149 = arith.mulf %143, %145 : vector<1x8xf32>
    %150 = vector.broadcast %149 : vector<1x8xf32> to vector<64x8xf32>
    %151 = arith.mulf %119, %150 : vector<64x8xf32>
    %152 = arith.addf %148, %151 : vector<64x8xf32>
    %153 = arith.truncf %152 : vector<64x8xf32> to vector<64x8xbf16>
    %c0_68 = arith.constant 0 : index
    %c0_69 = arith.constant 0 : index
    %154 = vector.load %arg12[%c0_68, %c0_69] : memref<8x4xbf16, #tpu.memory_space<vmem>>, vector<8x4xbf16>
    %cst_70 = arith.constant dense<0.000000e+00> : vector<64x4xf32>
    %155 = tpu.matmul %153, %154, %cst_70 {dimension_numbers = #tpu.dot_dimension_numbers<[1], [0], [0], [1], [0, 0, 1, 1], [], []>} : vector<64x8xbf16>, vector<8x4xbf16>, vector<64x4xf32> -> vector<64x4xf32>
    %c0_71 = arith.constant 0 : index
    %c0_72 = arith.constant 0 : index
    %156 = vector.load %arg13[%c0_71, %c0_72] : memref<1x4xf32, #tpu.memory_space<vmem>>, vector<1x4xf32>
    %157 = vector.broadcast %156 : vector<1x4xf32> to vector<64x4xf32>
    %158 = arith.addf %155, %157 : vector<64x4xf32>
    %c0_73 = arith.constant 0 : index
    %c0_74 = arith.constant 0 : index
    %c0_75 = arith.constant 0 : index
    %159 = vector.load %arg14[%c0_73, %c0_74, %c0_75] : memref<1x64x4xf32, #tpu.memory_space<vmem>>, vector<1x64x4xf32>
    %160 = vector.shape_cast %159 : vector<1x64x4xf32> to vector<64x4xf32>
    %161 = vector.shape_cast %158 : vector<64x4xf32> to vector<1x64x4xf32>
    tpu.vector_store %arg14[%c0_73, %c0_74, %c0_75], %161 {strides = array<i32>} : memref<1x64x4xf32, #tpu.memory_space<vmem>>, vector<1x64x4xf32>,
    return
  }
  func.func @transform_0(%arg0: i32) -> (i32, i32, i32, i32) {
    %c0_i32 = arith.constant 0 : i32
    %c0_i32_0 = arith.constant 0 : i32
    %c0_i32_1 = arith.constant 0 : i32
    %c0_i32_2 = arith.constant 0 : i32
    return %arg0, %c0_i32, %c0_i32_0, %c0_i32_1 : i32, i32, i32, i32
  }
  func.func @transform_1(%arg0: i32) -> (i32, i32, i32) {
    %c0_i32 = arith.constant 0 : i32
    %c0_i32_0 = arith.constant 0 : i32
    %c0_i32_1 = arith.constant 0 : i32
    return %arg0, %c0_i32, %c0_i32_0 : i32, i32, i32
  }
  func.func @transform_2(%arg0: i32) -> (i32, i32) {
    %c0_i32 = arith.constant 0 : i32
    %c0_i32_0 = arith.constant 0 : i32
    %c0_i32_1 = arith.constant 0 : i32
    return %c0_i32, %c0_i32_0 : i32, i32
  }
  func.func @transform_3(%arg0: i32) -> (i32, i32) {
    %c0_i32 = arith.constant 0 : i32
    %c0_i32_0 = arith.constant 0 : i32
    %c0_i32_1 = arith.constant 0 : i32
    return %c0_i32, %c0_i32_0 : i32, i32
  }
  func.func @transform_4(%arg0: i32) -> (i32, i32, i32) {
    %c0_i32 = arith.constant 0 : i32
    %c0_i32_0 = arith.constant 0 : i32
    %c0_i32_1 = arith.constant 0 : i32
    %c0_i32_2 = arith.constant 0 : i32
    return %c0_i32, %c0_i32_0, %c0_i32_1 : i32, i32, i32
  }
  func.func @transform_5(%arg0: i32) -> (i32, i32) {
    %c0_i32 = arith.constant 0 : i32
    %c0_i32_0 = arith.constant 0 : i32
    %c0_i32_1 = arith.constant 0 : i32
    return %c0_i32, %c0_i32_0 : i32, i32
  }
  func.func @transform_6(%arg0: i32) -> (i32, i32) {
    %c0_i32 = arith.constant 0 : i32
    %c0_i32_0 = arith.constant 0 : i32
    %c0_i32_1 = arith.constant 0 : i32
    return %c0_i32, %c0_i32_0 : i32, i32
  }
  func.func @transform_7(%arg0: i32) -> (i32, i32) {
    %c0_i32 = arith.constant 0 : i32
    %c0_i32_0 = arith.constant 0 : i32
    %c0_i32_1 = arith.constant 0 : i32
    return %c0_i32, %c0_i32_0 : i32, i32
  }
  func.func @transform_8(%arg0: i32) -> (i32, i32) {
    %c0_i32 = arith.constant 0 : i32
    %c0_i32_0 = arith.constant 0 : i32
    %c0_i32_1 = arith.constant 0 : i32
    return %c0_i32, %c0_i32_0 : i32, i32
  }
  func.func @transform_9(%arg0: i32) -> (i32, i32) {
    %c0_i32 = arith.constant 0 : i32
    %c0_i32_0 = arith.constant 0 : i32
    %c0_i32_1 = arith.constant 0 : i32
    return %c0_i32, %c0_i32_0 : i32, i32
  }
  func.func @transform_10(%arg0: i32) -> (i32, i32) {
    %c0_i32 = arith.constant 0 : i32
    %c0_i32_0 = arith.constant 0 : i32
    %c0_i32_1 = arith.constant 0 : i32
    return %c0_i32, %c0_i32_0 : i32, i32
  }
  func.func @transform_11(%arg0: i32) -> (i32, i32) {
    %c0_i32 = arith.constant 0 : i32
    %c0_i32_0 = arith.constant 0 : i32
    %c0_i32_1 = arith.constant 0 : i32
    return %c0_i32, %c0_i32_0 : i32, i32
  }
  func.func @transform_12(%arg0: i32) -> (i32, i32) {
    %c0_i32 = arith.constant 0 : i32
    %c0_i32_0 = arith.constant 0 : i32
    %c0_i32_1 = arith.constant 0 : i32
    return %c0_i32, %c0_i32_0 : i32, i32
  }
  func.func @transform_13(%arg0: i32) -> (i32, i32, i32) {
    %c0_i32 = arith.constant 0 : i32
    %c0_i32_0 = arith.constant 0 : i32
    %c0_i32_1 = arith.constant 0 : i32
    return %arg0, %c0_i32, %c0_i32_0 : i32, i32, i32
  }
}

module attributes {stable_mosaic.version = 11 : i64} {
  func.func @_up2_sk2_kernel(%arg0: i32, %arg1: memref<1x8x32xf32, #tpu.memory_space<vmem>>, %arg2: memref<1x16x64xf32, #tpu.memory_space<vmem>>, %arg3: memref<16x8xbf16, #tpu.memory_space<vmem>>, %arg4: memref<32x64xbf16, #tpu.memory_space<vmem>>, %arg5: memref<64x32xf32, #tpu.memory_space<vmem>>, %arg6: memref<1x32xf32, #tpu.memory_space<vmem>>, %arg7: memref<1x32xf32, #tpu.memory_space<vmem>>, %arg8: memref<32x4xf32, #tpu.memory_space<vmem>>, %arg9: memref<32x4xf32, #tpu.memory_space<vmem>>, %arg10: memref<4x64xf32, #tpu.memory_space<vmem>>, %arg11: memref<1x16x64xf32, #tpu.memory_space<vmem>>) attributes {dimension_semantics = [#tpu.dimension_semantics<parallel>], iteration_bounds = array<i64: 2>, scalar_prefetch = 0 : i64, scratch_operands = 0 : i64, tpu.core_type = #tpu.core_type<tc>, window_params = [{transform_indices = @transform_0, window_bounds = array<i64: 1, 8, 32>}, {transform_indices = @transform_1, window_bounds = array<i64: 1, 16, 64>}, {pipeline_mode = #tpu.pipeline_mode<synchronous>, transform_indices = @transform_2, window_bounds = array<i64: 16, 8>}, {pipeline_mode = #tpu.pipeline_mode<synchronous>, transform_indices = @transform_3, window_bounds = array<i64: 32, 64>}, {pipeline_mode = #tpu.pipeline_mode<synchronous>, transform_indices = @transform_4, window_bounds = array<i64: 64, 32>}, {pipeline_mode = #tpu.pipeline_mode<synchronous>, transform_indices = @transform_5, window_bounds = array<i64: 1, 32>}, {pipeline_mode = #tpu.pipeline_mode<synchronous>, transform_indices = @transform_6, window_bounds = array<i64: 1, 32>}, {pipeline_mode = #tpu.pipeline_mode<synchronous>, transform_indices = @transform_7, window_bounds = array<i64: 32, 4>}, {pipeline_mode = #tpu.pipeline_mode<synchronous>, transform_indices = @transform_8, window_bounds = array<i64: 32, 4>}, {pipeline_mode = #tpu.pipeline_mode<synchronous>, transform_indices = @transform_9, window_bounds = array<i64: 4, 64>}, {transform_indices = @transform_10, window_bounds = array<i64: 1, 16, 64>}]} {
    %c0 = arith.constant 0 : index
    %c0_0 = arith.constant 0 : index
    %c0_1 = arith.constant 0 : index
    %0 = vector.load %arg1[%c0, %c0_0, %c0_1] : memref<1x8x32xf32, #tpu.memory_space<vmem>>, vector<1x8x32xf32>
    %1 = vector.shape_cast %0 : vector<1x8x32xf32> to vector<8x32xf32>
    %c0_2 = arith.constant 0 : index
    %c0_3 = arith.constant 0 : index
    %2 = vector.load %arg3[%c0_2, %c0_3] : memref<16x8xbf16, #tpu.memory_space<vmem>>, vector<16x8xbf16>
    %3 = arith.truncf %1 : vector<8x32xf32> to vector<8x32xbf16>
    %cst = arith.constant dense<0.000000e+00> : vector<16x32xf32>
    %4 = tpu.matmul %2, %3, %cst {dimension_numbers = #tpu.dot_dimension_numbers<[1], [0], [0], [1], [0, 0, 1, 1], [], []>} : vector<16x8xbf16>, vector<8x32xbf16>, vector<16x32xf32> -> vector<16x32xf32>
    %5 = arith.truncf %4 : vector<16x32xf32> to vector<16x32xbf16>
    %c0_4 = arith.constant 0 : index
    %c0_5 = arith.constant 0 : index
    %6 = vector.load %arg4[%c0_4, %c0_5] : memref<32x64xbf16, #tpu.memory_space<vmem>>, vector<32x64xbf16>
    %cst_6 = arith.constant dense<0.000000e+00> : vector<16x64xf32>
    %7 = tpu.matmul %5, %6, %cst_6 {dimension_numbers = #tpu.dot_dimension_numbers<[1], [0], [0], [1], [0, 0, 1, 1], [], []>} : vector<16x32xbf16>, vector<32x64xbf16>, vector<16x64xf32> -> vector<16x64xf32>
    %c0_7 = arith.constant 0 : index
    %c0_8 = arith.constant 0 : index
    %c0_9 = arith.constant 0 : index
    %8 = vector.load %arg2[%c0_7, %c0_8, %c0_9] : memref<1x16x64xf32, #tpu.memory_space<vmem>>, vector<1x16x64xf32>
    %9 = vector.shape_cast %8 : vector<1x16x64xf32> to vector<16x64xf32>
    %10 = arith.addf %7, %9 : vector<16x64xf32>
    %cst_10 = arith.constant dense<0.000000e+00> : vector<64xf32>
    %11 = vector.multi_reduction <add>, %10, %cst_10 [0] : vector<16x64xf32> to vector<64xf32>
    %12 = vector.shape_cast %11 : vector<64xf32> to vector<1x64xf32>
    %c0_11 = arith.constant 0 : index
    %c0_12 = arith.constant 0 : index
    %13 = vector.load %arg5[%c0_11, %c0_12] : memref<64x32xf32, #tpu.memory_space<vmem>>, vector<64x32xf32>
    %cst_13 = arith.constant dense<0.000000e+00> : vector<1x32xf32>
    %14 = tpu.matmul %12, %13, %cst_13 {dimension_numbers = #tpu.dot_dimension_numbers<[1], [0], [0], [1], [0, 0, 1, 1], [], []>} : vector<1x64xf32>, vector<64x32xf32>, vector<1x32xf32> -> vector<1x32xf32>
    %c0_14 = arith.constant 0 : index
    %c0_15 = arith.constant 0 : index
    %15 = vector.load %arg6[%c0_14, %c0_15] : memref<1x32xf32, #tpu.memory_space<vmem>>, vector<1x32xf32>
    %16 = arith.mulf %14, %15 : vector<1x32xf32>
    %c0_16 = arith.constant 0 : index
    %c0_17 = arith.constant 0 : index
    %17 = vector.load %arg7[%c0_16, %c0_17] : memref<1x32xf32, #tpu.memory_space<vmem>>, vector<1x32xf32>
    %18 = arith.addf %16, %17 : vector<1x32xf32>
    %cst_18 = arith.constant 0.000000e+00 : f32
    %19 = vector.broadcast %cst_18 : f32 to vector<1x32xf32>
    %20 = arith.maximumf %18, %19 : vector<1x32xf32>
    %c0_19 = arith.constant 0 : index
    %c0_20 = arith.constant 0 : index
    %21 = vector.load %arg8[%c0_19, %c0_20] : memref<32x4xf32, #tpu.memory_space<vmem>>, vector<32x4xf32>
    %cst_21 = arith.constant dense<0.000000e+00> : vector<1x4xf32>
    %22 = tpu.matmul %20, %21, %cst_21 {dimension_numbers = #tpu.dot_dimension_numbers<[1], [0], [0], [1], [0, 0, 1, 1], [], []>} : vector<1x32xf32>, vector<32x4xf32>, vector<1x4xf32> -> vector<1x4xf32>
    %c0_22 = arith.constant 0 : index
    %c0_23 = arith.constant 0 : index
    %23 = vector.load %arg9[%c0_22, %c0_23] : memref<32x4xf32, #tpu.memory_space<vmem>>, vector<32x4xf32>
    %cst_24 = arith.constant dense<0.000000e+00> : vector<1x4xf32>
    %24 = tpu.matmul %20, %23, %cst_24 {dimension_numbers = #tpu.dot_dimension_numbers<[1], [0], [0], [1], [0, 0, 1, 1], [], []>} : vector<1x32xf32>, vector<32x4xf32>, vector<1x4xf32> -> vector<1x4xf32>
    %25 = arith.maximumf %22, %24 : vector<1x4xf32>
    %26 = arith.subf %22, %25 : vector<1x4xf32>
    %27 = math.exp %26 : vector<1x4xf32>
    %28 = arith.subf %24, %25 : vector<1x4xf32>
    %29 = math.exp %28 : vector<1x4xf32>
    %30 = arith.addf %27, %29 : vector<1x4xf32>
    %31 = tpu.reciprocal %30 {approx = true} : vector<1x4xf32> -> vector<1x4xf32>
    %32 = arith.mulf %27, %31 : vector<1x4xf32>
    %c0_25 = arith.constant 0 : index
    %c0_26 = arith.constant 0 : index
    %33 = vector.load %arg10[%c0_25, %c0_26] : memref<4x64xf32, #tpu.memory_space<vmem>>, vector<4x64xf32>
    %cst_27 = arith.constant dense<0.000000e+00> : vector<1x64xf32>
    %34 = tpu.matmul %32, %33, %cst_27 {dimension_numbers = #tpu.dot_dimension_numbers<[1], [0], [0], [1], [0, 0, 1, 1], [], []>} : vector<1x4xf32>, vector<4x64xf32>, vector<1x64xf32> -> vector<1x64xf32>
    %35 = arith.mulf %29, %31 : vector<1x4xf32>
    %c0_28 = arith.constant 0 : index
    %c0_29 = arith.constant 0 : index
    %36 = vector.load %arg10[%c0_28, %c0_29] : memref<4x64xf32, #tpu.memory_space<vmem>>, vector<4x64xf32>
    %cst_30 = arith.constant dense<0.000000e+00> : vector<1x64xf32>
    %37 = tpu.matmul %35, %36, %cst_30 {dimension_numbers = #tpu.dot_dimension_numbers<[1], [0], [0], [1], [0, 0, 1, 1], [], []>} : vector<1x4xf32>, vector<4x64xf32>, vector<1x64xf32> -> vector<1x64xf32>
    %38 = vector.broadcast %34 : vector<1x64xf32> to vector<16x64xf32>
    %39 = arith.mulf %7, %38 : vector<16x64xf32>
    %40 = vector.broadcast %37 : vector<1x64xf32> to vector<16x64xf32>
    %41 = arith.mulf %9, %40 : vector<16x64xf32>
    %42 = arith.addf %39, %41 : vector<16x64xf32>
    %c0_31 = arith.constant 0 : index
    %c0_32 = arith.constant 0 : index
    %c0_33 = arith.constant 0 : index
    %43 = vector.load %arg11[%c0_31, %c0_32, %c0_33] : memref<1x16x64xf32, #tpu.memory_space<vmem>>, vector<1x16x64xf32>
    %44 = vector.shape_cast %43 : vector<1x16x64xf32> to vector<16x64xf32>
    %45 = vector.shape_cast %42 : vector<16x64xf32> to vector<1x16x64xf32>
    tpu.vector_store %arg11[%c0_31, %c0_32, %c0_33], %45 {strides = array<i32>} : memref<1x16x64xf32, #tpu.memory_space<vmem>>, vector<1x16x64xf32>,
    return
  }
  func.func @transform_0(%arg0: i32) -> (i32, i32, i32) {
    %c0_i32 = arith.constant 0 : i32
    %c0_i32_0 = arith.constant 0 : i32
    %c0_i32_1 = arith.constant 0 : i32
    return %arg0, %c0_i32, %c0_i32_0 : i32, i32, i32
  }
  func.func @transform_1(%arg0: i32) -> (i32, i32, i32) {
    %c0_i32 = arith.constant 0 : i32
    %c0_i32_0 = arith.constant 0 : i32
    %c0_i32_1 = arith.constant 0 : i32
    return %arg0, %c0_i32, %c0_i32_0 : i32, i32, i32
  }
  func.func @transform_2(%arg0: i32) -> (i32, i32) {
    %c0_i32 = arith.constant 0 : i32
    %c0_i32_0 = arith.constant 0 : i32
    %c0_i32_1 = arith.constant 0 : i32
    return %c0_i32, %c0_i32_0 : i32, i32
  }
  func.func @transform_3(%arg0: i32) -> (i32, i32) {
    %c0_i32 = arith.constant 0 : i32
    %c0_i32_0 = arith.constant 0 : i32
    %c0_i32_1 = arith.constant 0 : i32
    return %c0_i32, %c0_i32_0 : i32, i32
  }
  func.func @transform_4(%arg0: i32) -> (i32, i32) {
    %c0_i32 = arith.constant 0 : i32
    %c0_i32_0 = arith.constant 0 : i32
    %c0_i32_1 = arith.constant 0 : i32
    return %c0_i32, %c0_i32_0 : i32, i32
  }
  func.func @transform_5(%arg0: i32) -> (i32, i32) {
    %c0_i32 = arith.constant 0 : i32
    %c0_i32_0 = arith.constant 0 : i32
    %c0_i32_1 = arith.constant 0 : i32
    return %c0_i32, %c0_i32_0 : i32, i32
  }
  func.func @transform_6(%arg0: i32) -> (i32, i32) {
    %c0_i32 = arith.constant 0 : i32
    %c0_i32_0 = arith.constant 0 : i32
    %c0_i32_1 = arith.constant 0 : i32
    return %c0_i32, %c0_i32_0 : i32, i32
  }
  func.func @transform_7(%arg0: i32) -> (i32, i32) {
    %c0_i32 = arith.constant 0 : i32
    %c0_i32_0 = arith.constant 0 : i32
    %c0_i32_1 = arith.constant 0 : i32
    return %c0_i32, %c0_i32_0 : i32, i32
  }
  func.func @transform_8(%arg0: i32) -> (i32, i32) {
    %c0_i32 = arith.constant 0 : i32
    %c0_i32_0 = arith.constant 0 : i32
    %c0_i32_1 = arith.constant 0 : i32
    return %c0_i32, %c0_i32_0 : i32, i32
  }
  func.func @transform_9(%arg0: i32) -> (i32, i32) {
    %c0_i32 = arith.constant 0 : i32
    %c0_i32_0 = arith.constant 0 : i32
    %c0_i32_1 = arith.constant 0 : i32
    return %c0_i32, %c0_i32_0 : i32, i32
  }
  func.func @transform_10(%arg0: i32) -> (i32, i32, i32) {
    %c0_i32 = arith.constant 0 : i32
    %c0_i32_0 = arith.constant 0 : i32
    %c0_i32_1 = arith.constant 0 : i32
    return %arg0, %c0_i32, %c0_i32_0 : i32, i32, i32
  }
}

</mosaic_0001>

<llo_original>
// kernel: tile.9
$region0: #{tile.9}
  %s0 = inlined_call_operand.vmem [shape: f32[16,4,4], index: 0, kind: input, shape index: {}]
  %s1 = inlined_call_operand.vmem [shape: f32[64,4], index: 1, kind: output, shape index: {}]
  $region1: #{tile.9} parent=0
    #allocation0 [shape = 'u8[4096]{0}', space=vmem, size = 0x1000, scoped, tag = 'scoped mem for output reshape']
    %s2 = smov 3
    %v3 = vld [vmem:[%s0] ss:$16 sm:%s2]
    %s4 = smov 12
    %v5 = vld [vmem:[%s0] ss:$16 sm:%s4]
    %vm6 = vcmask 1043458
    %v7 = vsel %vm6, %v5, %v3
    %vm8 = vcmask 31744
    %9 = vst.msk [vmem:[#allocation0] sm:$0xf] %vm8, %v7
    %s10 = scalar_lea.vmem %s0, 15
    %s11 = smov 3
    %v12 = vld [vmem:[%s10] ss:$16 sm:%s11]
    %s13 = scalar_lea.vmem %s0, 15
    %s14 = smov 12
    %v15 = vld [vmem:[%s13] ss:$16 sm:%s14]
    %vm16 = vcmask 1043458
    %v17 = vsel %vm16, %v15, %v12
    %18 = vrot.lane.b32.xlu0 %v17, 60
    %v19 = vpop.permute.xlu0 %18
    %vm20 = vcmask 523744
    %21 = vst.msk [vmem:[#allocation0] sm:$0xf] %vm20, %v19
    %s22 = scalar_lea.vmem %s0, 14
    %s23 = smov 3
    %v24 = vld [vmem:[%s22] ss:$16 sm:%s23]
    %s25 = scalar_lea.vmem %s0, 14
    %s26 = smov 12
    %v27 = vld [vmem:[%s25] ss:$16 sm:%s26]
    %vm28 = vcmask 1043458
    %v29 = vsel %vm28, %v27, %v24
    %30 = vrot.lane.b32.xlu0 %v29, 56
    %v31 = vpop.permute.xlu0 %30
    %vm32 = vcmask 490944
    %33 = vst.msk [vmem:[#allocation0] sm:$0xf] %vm32, %v31
    %s34 = scalar_lea.vmem %s0, 13
    %s35 = smov 3
    %v36 = vld [vmem:[%s34] ss:$16 sm:%s35]
    %s37 = scalar_lea.vmem %s0, 13
    %s38 = smov 12
    %v39 = vld [vmem:[%s37] ss:$16 sm:%s38]
    %vm40 = vcmask 1043458
    %v41 = vsel %vm40, %v39, %v36
    %42 = vrot.lane.b32.xlu0 %v41, 52
    %v43 = vpop.permute.xlu0 %42
    %vm44 = vcmask 458144
    %45 = vst.msk [vmem:[#allocation0] sm:$0xf] %vm44, %v43
    %s46 = scalar_lea.vmem %s0, 12
    %s47 = smov 3
    %v48 = vld [vmem:[%s46] ss:$16 sm:%s47]
    %s49 = scalar_lea.vmem %s0, 12
    %s50 = smov 12
    %v51 = vld [vmem:[%s49] ss:$16 sm:%s50]
    %vm52 = vcmask 1043458
    %v53 = vsel %vm52, %v51, %v48
    %54 = vrot.lane.b32.xlu0 %v53, 48
    %v55 = vpop.permute.xlu0 %54
    %vm56 = vcmask 425344
    %57 = vst.msk [vmem:[#allocation0] sm:$0xf] %vm56, %v55
    %s58 = scalar_lea.vmem %s0, 11
    %s59 = smov 3
    %v60 = vld [vmem:[%s58] ss:$16 sm:%s59]
    %s61 = scalar_lea.vmem %s0, 11
    %s62 = smov 12
    %v63 = vld [vmem:[%s61] ss:$16 sm:%s62]
    %vm64 = vcmask 1043458
    %v65 = vsel %vm64, %v63, %v60
    %66 = vrot.lane.b32.xlu0 %v65, 44
    %v67 = vpop.permute.xlu0 %66
    %vm68 = vcmask 392544
    %69 = vst.msk [vmem:[#allocation0] sm:$0xf] %vm68, %v67
    %s70 = scalar_lea.vmem %s0, 10
    %s71 = smov 3
    %v72 = vld [vmem:[%s70] ss:$16 sm:%s71]
    %s73 = scalar_lea.vmem %s0, 10
    %s74 = smov 12
    %v75 = vld [vmem:[%s73] ss:$16 sm:%s74]
    %vm76 = vcmask 1043458
    %v77 = vsel %vm76, %v75, %v72
    %78 = vrot.lane.b32.xlu0 %v77, 40
    %v79 = vpop.permute.xlu0 %78
    %vm80 = vcmask 359744
    %81 = vst.msk [vmem:[#allocation0] sm:$0xf] %vm80, %v79
    %s82 = scalar_lea.vmem %s0, 9
    %s83 = smov 3
    %v84 = vld [vmem:[%s82] ss:$16 sm:%s83]
    %s85 = scalar_lea.vmem %s0, 9
    %s86 = smov 12
    %v87 = vld [vmem:[%s85] ss:$16 sm:%s86]
    %vm88 = vcmask 1043458
    %v89 = vsel %vm88, %v87, %v84
    %90 = vrot.lane.b32.xlu0 %v89, 36
    %v91 = vpop.permute.xlu0 %90
    %vm92 = vcmask 326944
    %93 = vst.msk [vmem:[#allocation0] sm:$0xf] %vm92, %v91
    %s94 = scalar_lea.vmem %s0, 8
    %s95 = smov 3
    %v96 = vld [vmem:[%s94] ss:$16 sm:%s95]
    %s97 = scalar_lea.vmem %s0, 8
    %s98 = smov 12
    %v99 = vld [vmem:[%s97] ss:$16 sm:%s98]
    %vm100 = vcmask 1043458
    %v101 = vsel %vm100, %v99, %v96
    %102 = vrot.lane.b32.xlu0 %v101, 32
    %v103 = vpop.permute.xlu0 %102
    %vm104 = vcmask 294144
    %105 = vst.msk [vmem:[#allocation0] sm:$0xf] %vm104, %v103
    %s106 = scalar_lea.vmem %s0, 7
    %s107 = smov 3
    %v108 = vld [vmem:[%s106] ss:$16 sm:%s107]
    %s109 = scalar_lea.vmem %s0, 7
    %s110 = smov 12
    %v111 = vld [vmem:[%s109] ss:$16 sm:%s110]
    %vm112 = vcmask 1043458
    %v113 = vsel %vm112, %v111, %v108
    %114 = vrot.lane.b32.xlu0 %v113, 28
    %v115 = vpop.permute.xlu0 %114
    %vm116 = vcmask 261344
    %117 = vst.msk [vmem:[#allocation0] sm:$0xf] %vm116, %v115
    %s118 = scalar_lea.vmem %s0, 6
    %s119 = smov 3
    %v120 = vld [vmem:[%s118] ss:$16 sm:%s119]
    %s121 = scalar_lea.vmem %s0, 6
    %s122 = smov 12
    %v123 = vld [vmem:[%s121] ss:$16 sm:%s122]
    %vm124 = vcmask 1043458
    %v125 = vsel %vm124, %v123, %v120
    %126 = vrot.lane.b32.xlu0 %v125, 24
    %v127 = vpop.permute.xlu0 %126
    %vm128 = vcmask 228544
    %129 = vst.msk [vmem:[#allocation0] sm:$0xf] %vm128, %v127
    %s130 = scalar_lea.vmem %s0, 5
    %s131 = smov 3
    %v132 = vld [vmem:[%s130] ss:$16 sm:%s131]
    %s133 = scalar_lea.vmem %s0, 5
    %s134 = smov 12
    %v135 = vld [vmem:[%s133] ss:$16 sm:%s134]
    %vm136 = vcmask 1043458
    %v137 = vsel %vm136, %v135, %v132
    %138 = vrot.lane.b32.xlu0 %v137, 20
    %v139 = vpop.permute.xlu0 %138
    %vm140 = vcmask 195744
    %141 = vst.msk [vmem:[#allocation0] sm:$0xf] %vm140, %v139
    %s142 = scalar_lea.vmem %s0, 4
    %s143 = smov 3
    %v144 = vld [vmem:[%s142] ss:$16 sm:%s143]
    %s145 = scalar_lea.vmem %s0, 4
    %s146 = smov 12
    %v147 = vld [vmem:[%s145] ss:$16 sm:%s146]
    %vm148 = vcmask 1043458
    %v149 = vsel %vm148, %v147, %v144
    %150 = vrot.lane.b32.xlu0 %v149, 16
    %v151 = vpop.permute.xlu0 %150
    %vm152 = vcmask 162944
    %153 = vst.msk [vmem:[#allocation0] sm:$0xf] %vm152, %v151
    %s154 = scalar_lea.vmem %s0, 3
    %s155 = smov 3
    %v156 = vld [vmem:[%s154] ss:$16 sm:%s155]
    %s157 = scalar_lea.vmem %s0, 3
    %s158 = smov 12
    %v159 = vld [vmem:[%s157] ss:$16 sm:%s158]
    %vm160 = vcmask 1043458
    %v161 = vsel %vm160, %v159, %v156
    %162 = vrot.lane.b32.xlu0 %v161, 12
    %v163 = vpop.permute.xlu0 %162
    %vm164 = vcmask 130144
    %165 = vst.msk [vmem:[#allocation0] sm:$0xf] %vm164, %v163
    %s166 = scalar_lea.vmem %s0, 2
    %s167 = smov 3
    %v168 = vld [vmem:[%s166] ss:$16 sm:%s167]
    %s169 = scalar_lea.vmem %s0, 2
    %s170 = smov 12
    %v171 = vld [vmem:[%s169] ss:$16 sm:%s170]
    %vm172 = vcmask 1043458
    %v173 = vsel %vm172, %v171, %v168
    %174 = vrot.lane.b32.xlu0 %v173, 8
    %v175 = vpop.permute.xlu0 %174
    %vm176 = vcmask 97344
    %177 = vst.msk [vmem:[#allocation0] sm:$0xf] %vm176, %v175
    %s178 = scalar_lea.vmem %s0, 1
    %s179 = smov 3
    %v180 = vld [vmem:[%s178] ss:$16 sm:%s179]
    %s181 = scalar_lea.vmem %s0, 1
    %s182 = smov 12
    %v183 = vld [vmem:[%s181] ss:$16 sm:%s182]
    %vm184 = vcmask 1043458
    %v185 = vsel %vm184, %v183, %v180
    %186 = vrot.lane.b32.xlu0 %v185, 4
    %v187 = vpop.permute.xlu0 %186
    %vm188 = vcmask 64544
    %189 = vst.msk [vmem:[#allocation0] sm:$0xf] %vm188, %v187
    %s191 = ssub.s32 16, 1
    %v192 = vld [vmem:[#allocation0] sm:%s191]
    %s194 = ssub.s32 16, 1
    %195 = vst [vmem:[%s1] sm:%s194] %v192

// kernel: cim_forward.3
$region0: #{cim_forward.3}
  #allocation0 [shape = 'u32[]', space=smem, size = 0x4, offset = 0x4, fixed_abs, tag = 'smem constant byte address 0x4 - core index']
  #allocation1 [shape = 'u32[72,128]{1,0:T(1,128)}', space=vmem, size = 0x9000, scoped, tag = 'internal scratch']
  %s0 = inlined_call_operand.vmem [shape: f32[2,8,32], index: 0, kind: input, shape index: {}]
  %s1 = inlined_call_operand.vmem [shape: f32[2,16,64], index: 1, kind: input, shape index: {}]
  %s2 = inlined_call_operand.vmem [shape: bf16[16,8], index: 2, kind: input, shape index: {}]
  %s3 = inlined_call_operand.vmem [shape: bf16[32,64], index: 3, kind: input, shape index: {}]
  %s4 = inlined_call_operand.vmem [shape: f32[64,32], index: 4, kind: input, shape index: {}]
  %s5 = inlined_call_operand.vmem [shape: f32[1,32], index: 5, kind: input, shape index: {}]
  %s6 = inlined_call_operand.vmem [shape: f32[1,32], index: 6, kind: input, shape index: {}]
  %s7 = inlined_call_operand.vmem [shape: f32[32,4], index: 7, kind: input, shape index: {}]
  %s8 = inlined_call_operand.vmem [shape: f32[32,4], index: 8, kind: input, shape index: {}]
  %s9 = inlined_call_operand.vmem [shape: f32[4,64], index: 9, kind: input, shape index: {}]
  %s10 = inlined_call_operand.vmem [shape: f32[2,16,64], index: 10, kind: output, shape index: {}]
  %s11 = sld [smem:[#allocation0]]
  $region73: #{cim_forward.3} parent=0
    _
  %s13 = ssub.s32 1, %s11
  %s14 = scalar_select 0, %s13, %s11
  loop: start=0, step=1, limit=4
  $region2: #{cim_forward.3} parent=0 // loop_pre_header
    _
  $region3: #{cim_forward.3} parent=0 // loop_header
    %s16 = sphi 0, %s20
    %p17 = scmp.ge.s32.totalorder %s16, 4
    %s26 = sphi 0, %s28
    %s29 = sphi 0, %s26
    %s30 = sphi 0, %s29
    %s46 = sphi 0, %s30
    %s52 = sphi 0, %s54
    %s55 = sphi 0, %s52
    %s56 = sphi 0, %s55
    %s72 = sphi 0, %s56
    %s76 = sphi 0, %s76
    %s78 = sphi 0, %s76
    %s79 = sphi 0, %s78
    %s93 = sphi 0, %s79
    %s97 = sphi 0, %s97
    %s99 = sphi 0, %s97
    %s100 = sphi 0, %s99
    %s114 = sphi 0, %s100
    %s118 = sphi 0, %s118
    %s120 = sphi 0, %s118
    %s121 = sphi 0, %s120
    %s135 = sphi 0, %s121
    %s139 = sphi 0, %s139
    %s141 = sphi 0, %s139
    %s142 = sphi 0, %s141
    %s156 = sphi 0, %s142
    %s160 = sphi 0, %s160
    %s162 = sphi 0, %s160
    %s163 = sphi 0, %s162
    %s177 = sphi 0, %s163
    %s181 = sphi 0, %s181
    %s183 = sphi 0, %s181
    %s184 = sphi 0, %s183
    %s198 = sphi 0, %s184
    %s202 = sphi 0, %s202
    %s204 = sphi 0, %s202
    %s205 = sphi 0, %s204
    %s219 = sphi 0, %s205
    %s223 = sphi 0, %s223
    %s225 = sphi 0, %s223
    %s226 = sphi 0, %s225
    %s240 = sphi 0, %s226
    %s246 = sphi 0, %s248
    %s249 = sphi 0, %s246
    %s250 = sphi 0, %s249
    %s266 = sphi 0, %s250
  $region4: #{cim_forward.3} parent=0 // loop_header_branch
    %19 = sbr.rel (%p17) target = $region8
  $region5: #{cim_forward.3} parent=0 // loop_body
    %s21 = ssub.s32 %s16, 1
    %s22 = ssub.s32 %s16, 2
    %s23 = sadd.s32 %s16, 1
    %s24 = ssub.s32 %s16, %s23
    %p25 = scmp.eq.s32.totalorder %s24, 0
    %s27 = sadd.s32 %s26, 1
    %s28 = scalar_select %p25, %s26, %s27
    %p31 = pneg %p25
    %p32 = scmp.eq.s32.totalorder %s16, 1
    %p33 = por %p31, %p32
    %p34 = scmp.ne.s32.totalorder %s26, %s29
    %p35 = scmp.eq.s32.totalorder %s16, 0
    %p36 = por %p34, %p35
    %p37 = scmp.ne.s32.totalorder %s26, %s29
    %p38 = scmp.eq.s32.totalorder %s21, 1
    %p39 = por %p37, %p38
    %p40 = scmp.ne.s32.totalorder %s29, %s30
    %p41 = scmp.eq.s32.totalorder %s21, 0
    %p42 = por %p40, %p41
    %p43 = scmp.ne.s32.totalorder %s29, %s30
    %p44 = scmp.eq.s32.totalorder %s22, 1
    %p45 = por %p43, %p44
    %p47 = scmp.ne.s32.totalorder %s30, %s46
    %p48 = scmp.eq.s32.totalorder %s22, 0
    %p49 = por %p47, %p48
    %s50 = ssub.s32 %s16, %s23
    %p51 = scmp.eq.s32.totalorder %s50, 0
    %s53 = sadd.s32 %s52, 1
    %s54 = scalar_select %p51, %s52, %s53
    %p57 = pneg %p51
    %p58 = scmp.eq.s32.totalorder %s16, 1
    %p59 = por %p57, %p58
    %p60 = scmp.ne.s32.totalorder %s52, %s55
    %p61 = scmp.eq.s32.totalorder %s16, 0
    %p62 = por %p60, %p61
    %p63 = scmp.ne.s32.totalorder %s52, %s55
    %p64 = scmp.eq.s32.totalorder %s21, 1
    %p65 = por %p63, %p64
    %p66 = scmp.ne.s32.totalorder %s55, %s56
    %p67 = scmp.eq.s32.totalorder %s21, 0
    %p68 = por %p66, %p67
    %p69 = scmp.ne.s32.totalorder %s55, %s56
    %p70 = scmp.eq.s32.totalorder %s22, 1
    %p71 = por %p69, %p70
    %p73 = scmp.ne.s32.totalorder %s56, %s72
    %p74 = scmp.eq.s32.totalorder %s22, 0
    %p75 = por %p73, %p74
    %s77 = sadd.s32 %s76, 1
    %p80 = scmp.eq.s32.totalorder %s16, 1
    %p81 = scmp.ne.s32.totalorder %s76, %s78
    %p82 = scmp.eq.s32.totalorder %s16, 0
    %p83 = por %p81, %p82
    %p84 = scmp.ne.s32.totalorder %s76, %s78
    %p85 = scmp.eq.s32.totalorder %s21, 1
    %p86 = por %p84, %p85
    %p87 = scmp.ne.s32.totalorder %s78, %s79
    %p88 = scmp.eq.s32.totalorder %s21, 0
    %p89 = por %p87, %p88
    %p90 = scmp.ne.s32.totalorder %s78, %s79
    %p91 = scmp.eq.s32.totalorder %s22, 1
    %p92 = por %p90, %p91
    %p94 = scmp.ne.s32.totalorder %s79, %s93
    %p95 = scmp.eq.s32.totalorder %s22, 0
    %p96 = por %p94, %p95
    %s98 = sadd.s32 %s97, 1
    %p101 = scmp.eq.s32.totalorder %s16, 1
    %p102 = scmp.ne.s32.totalorder %s97, %s99
    %p103 = scmp.eq.s32.totalorder %s16, 0
    %p104 = por %p102, %p103
    %p105 = scmp.ne.s32.totalorder %s97, %s99
    %p106 = scmp.eq.s32.totalorder %s21, 1
    %p107 = por %p105, %p106
    %p108 = scmp.ne.s32.totalorder %s99, %s100
    %p109 = scmp.eq.s32.totalorder %s21, 0
    %p110 = por %p108, %p109
    %p111 = scmp.ne.s32.totalorder %s99, %s100
    %p112 = scmp.eq.s32.totalorder %s22, 1
    %p113 = por %p111, %p112
    %p115 = scmp.ne.s32.totalorder %s100, %s114
    %p116 = scmp.eq.s32.totalorder %s22, 0
    %p117 = por %p115, %p116
    %s119 = sadd.s32 %s118, 1
    %p122 = scmp.eq.s32.totalorder %s16, 1
    %p123 = scmp.ne.s32.totalorder %s118, %s120
    %p124 = scmp.eq.s32.totalorder %s16, 0
    %p125 = por %p123, %p124
    %p126 = scmp.ne.s32.totalorder %s118, %s120
    %p127 = scmp.eq.s32.totalorder %s21, 1
    %p128 = por %p126, %p127
    %p129 = scmp.ne.s32.totalorder %s120, %s121
    %p130 = scmp.eq.s32.totalorder %s21, 0
    %p131 = por %p129, %p130
    %p132 = scmp.ne.s32.totalorder %s120, %s121
    %p133 = scmp.eq.s32.totalorder %s22, 1
    %p134 = por %p132, %p133
    %p136 = scmp.ne.s32.totalorder %s121, %s135
    %p137 = scmp.eq.s32.totalorder %s22, 0
    %p138 = por %p136, %p137
    %s140 = sadd.s32 %s139, 1
    %p143 = scmp.eq.s32.totalorder %s16, 1
    %p144 = scmp.ne.s32.totalorder %s139, %s141
    %p145 = scmp.eq.s32.totalorder %s16, 0
    %p146 = por %p144, %p145
    %p147 = scmp.ne.s32.totalorder %s139, %s141
    %p148 = scmp.eq.s32.totalorder %s21, 1
    %p149 = por %p147, %p148
    %p150 = scmp.ne.s32.totalorder %s141, %s142
    %p151 = scmp.eq.s32.totalorder %s21, 0
    %p152 = por %p150, %p151
    %p153 = scmp.ne.s32.totalorder %s141, %s142
    %p154 = scmp.eq.s32.totalorder %s22, 1
    %p155 = por %p153, %p154
    %p157 = scmp.ne.s32.totalorder %s142, %s156
    %p158 = scmp.eq.s32.totalorder %s22, 0
    %p159 = por %p157, %p158
    %s161 = sadd.s32 %s160, 1
    %p164 = scmp.eq.s32.totalorder %s16, 1
    %p165 = scmp.ne.s32.totalorder %s160, %s162
    %p166 = scmp.eq.s32.totalorder %s16, 0
    %p167 = por %p165, %p166
    %p168 = scmp.ne.s32.totalorder %s160, %s162
    %p169 = scmp.eq.s32.totalorder %s21, 1
    %p170 = por %p168, %p169
    %p171 = scmp.ne.s32.totalorder %s162, %s163
    %p172 = scmp.eq.s32.totalorder %s21, 0
    %p173 = por %p171, %p172
    %p174 = scmp.ne.s32.totalorder %s162, %s163
    %p175 = scmp.eq.s32.totalorder %s22, 1
    %p176 = por %p174, %p175
    %p178 = scmp.ne.s32.totalorder %s163, %s177
    %p179 = scmp.eq.s32.totalorder %s22, 0
    %p180 = por %p178, %p179
    %s182 = sadd.s32 %s181, 1
    %p185 = scmp.eq.s32.totalorder %s16, 1
    %p186 = scmp.ne.s32.totalorder %s181, %s183
    %p187 = scmp.eq.s32.totalorder %s16, 0
    %p188 = por %p186, %p187
    %p189 = scmp.ne.s32.totalorder %s181, %s183
    %p190 = scmp.eq.s32.totalorder %s21, 1
    %p191 = por %p189, %p190
    %p192 = scmp.ne.s32.totalorder %s183, %s184
    %p193 = scmp.eq.s32.totalorder %s21, 0
    %p194 = por %p192, %p193
    %p195 = scmp.ne.s32.totalorder %s183, %s184
    %p196 = scmp.eq.s32.totalorder %s22, 1
    %p197 = por %p195, %p196
    %p199 = scmp.ne.s32.totalorder %s184, %s198
    %p200 = scmp.eq.s32.totalorder %s22, 0
    %p201 = por %p199, %p200
    %s203 = sadd.s32 %s202, 1
    %p206 = scmp.eq.s32.totalorder %s16, 1
    %p207 = scmp.ne.s32.totalorder %s202, %s204
    %p208 = scmp.eq.s32.totalorder %s16, 0
    %p209 = por %p207, %p208
    %p210 = scmp.ne.s32.totalorder %s202, %s204
    %p211 = scmp.eq.s32.totalorder %s21, 1
    %p212 = por %p210, %p211
    %p213 = scmp.ne.s32.totalorder %s204, %s205
    %p214 = scmp.eq.s32.totalorder %s21, 0
    %p215 = por %p213, %p214
    %p216 = scmp.ne.s32.totalorder %s204, %s205
    %p217 = scmp.eq.s32.totalorder %s22, 1
    %p218 = por %p216, %p217
    %p220 = scmp.ne.s32.totalorder %s205, %s219
    %p221 = scmp.eq.s32.totalorder %s22, 0
    %p222 = por %p220, %p221
    %s224 = sadd.s32 %s223, 1
    %p227 = scmp.eq.s32.totalorder %s16, 1
    %p228 = scmp.ne.s32.totalorder %s223, %s225
    %p229 = scmp.eq.s32.totalorder %s16, 0
    %p230 = por %p228, %p229
    %p231 = scmp.ne.s32.totalorder %s223, %s225
    %p232 = scmp.eq.s32.totalorder %s21, 1
    %p233 = por %p231, %p232
    %p234 = scmp.ne.s32.totalorder %s225, %s226
    %p235 = scmp.eq.s32.totalorder %s21, 0
    %p236 = por %p234, %p235
    %p237 = scmp.ne.s32.totalorder %s225, %s226
    %p238 = scmp.eq.s32.totalorder %s22, 1
    %p239 = por %p237, %p238
    %p241 = scmp.ne.s32.totalorder %s226, %s240
    %p242 = scmp.eq.s32.totalorder %s22, 0
    %p243 = por %p241, %p242
    %s244 = ssub.s32 %s16, %s23
    %p245 = scmp.eq.s32.totalorder %s244, 0
    %s247 = sadd.s32 %s246, 1
    %s248 = scalar_select %p245, %s246, %s247
    %p251 = pneg %p245
    %p252 = scmp.eq.s32.totalorder %s16, 1
    %p253 = por %p251, %p252
    %p254 = scmp.ne.s32.totalorder %s246, %s249
    %p255 = scmp.eq.s32.totalorder %s16, 0
    %p256 = por %p254, %p255
    %p257 = scmp.ne.s32.totalorder %s246, %s249
    %p258 = scmp.eq.s32.totalorder %s21, 1
    %p259 = por %p257, %p258
    %p260 = scmp.ne.s32.totalorder %s249, %s250
    %p261 = scmp.eq.s32.totalorder %s21, 0
    %p262 = por %p260, %p261
    %p263 = scmp.ne.s32.totalorder %s249, %s250
    %p264 = scmp.eq.s32.totalorder %s22, 1
    %p265 = por %p263, %p264
    %p267 = scmp.ne.s32.totalorder %s250, %s266
    %p268 = scmp.eq.s32.totalorder %s22, 0
    %p269 = por %p267, %p268
    %p270 = scmp.le.s32.totalorder 1, %s16
    %p271 = scmp.lt.s32.totalorder %s16, 3
    %p272 = pnand %p270, %p271
    %p273 = pneg %p272
    // Predicated region
    $region9: #{cim_forward.3} parent=5 // pred_check
      _
    $region10: #{cim_forward.3} parent=5 // pred_check_branch
      %275 = sbr.rel (%p272) target = $region12
    $region11: #{cim_forward.3} parent=5 // pred_region
      %s276 = ssub.s32 %s16, 1
      // Predicated region
      $region13: #{cim_forward.3} parent=11 // pred_check
        %p277 = pneg %p89
      $region14: #{cim_forward.3} parent=11 // pred_check_branch
        %279 = sbr.rel (%p277) target = $region16
      $region15: #{cim_forward.3} parent=11 // pred_region
        _
      $region16: #{cim_forward.3} parent=11 // pred_fallthru
        _
      // Predicated region
      $region17: #{cim_forward.3} parent=11 // pred_check
        %p280 = pneg %p110
      $region18: #{cim_forward.3} parent=11 // pred_check_branch
        %282 = sbr.rel (%p280) target = $region20
      $region19: #{cim_forward.3} parent=11 // pred_region
        _
      $region20: #{cim_forward.3} parent=11 // pred_fallthru
        _
      // Predicated region
      $region21: #{cim_forward.3} parent=11 // pred_check
        %p283 = pneg %p131
      $region22: #{cim_forward.3} parent=11 // pred_check_branch
        %285 = sbr.rel (%p283) target = $region24
      $region23: #{cim_forward.3} parent=11 // pred_region
        _
      $region24: #{cim_forward.3} parent=11 // pred_fallthru
        _
      // Predicated region
      $region25: #{cim_forward.3} parent=11 // pred_check
        %p286 = pneg %p152
      $region26: #{cim_forward.3} parent=11 // pred_check_branch
        %288 = sbr.rel (%p286) target = $region28
      $region27: #{cim_forward.3} parent=11 // pred_region
        _
      $region28: #{cim_forward.3} parent=11 // pred_fallthru
        _
      // Predicated region
      $region29: #{cim_forward.3} parent=11 // pred_check
        %p289 = pneg %p173
      $region30: #{cim_forward.3} parent=11 // pred_check_branch
        %291 = sbr.rel (%p289) target = $region32
      $region31: #{cim_forward.3} parent=11 // pred_region
        _
      $region32: #{cim_forward.3} parent=11 // pred_fallthru
        _
      // Predicated region
      $region33: #{cim_forward.3} parent=11 // pred_check
        %p292 = pneg %p194
      $region34: #{cim_forward.3} parent=11 // pred_check_branch
        %294 = sbr.rel (%p292) target = $region36
      $region35: #{cim_forward.3} parent=11 // pred_region
        _
      $region36: #{cim_forward.3} parent=11 // pred_fallthru
        _
      // Predicated region
      $region37: #{cim_forward.3} parent=11 // pred_check
        %p295 = pneg %p215
      $region38: #{cim_forward.3} parent=11 // pred_check_branch
        %297 = sbr.rel (%p295) target = $region40
      $region39: #{cim_forward.3} parent=11 // pred_region
        _
      $region40: #{cim_forward.3} parent=11 // pred_fallthru
        _
      // Predicated region
      $region41: #{cim_forward.3} parent=11 // pred_check
        %p298 = pneg %p236
      $region42: #{cim_forward.3} parent=11 // pred_check_branch
        %300 = sbr.rel (%p298) target = $region44
      $region43: #{cim_forward.3} parent=11 // pred_region
        _
      $region44: #{cim_forward.3} parent=11 // pred_fallthru
        _
    $region12: #{cim_forward.3} parent=5 // pred_fallthru
      _
    %p301 = scmp.lt.s32.totalorder %s16, 2
    // Predicated region
    $region45: #{cim_forward.3} parent=5 // pred_check
      %p302 = pneg %p301
    $region46: #{cim_forward.3} parent=5 // pred_check_branch
      %304 = sbr.rel (%p302) target = $region48
    $region47: #{cim_forward.3} parent=5 // pred_region
      // Predicated region
      $region49: #{cim_forward.3} parent=47 // pred_check
        %p305 = pneg %p36
      $region50: #{cim_forward.3} parent=47 // pred_check_branch
        %307 = sbr.rel (%p305) target = $region52
      $region51: #{cim_forward.3} parent=47 // pred_region
        %p308 = scmp.lt.s32.totalorder %s16, 1
        %s309 = scalar_select %p308, %s16, 1
        %s310 = smul.addr %s309, 8
        %s311 = scalar_lea.vmem %s0, %s310
      $region52: #{cim_forward.3} parent=47 // pred_fallthru
        _
      // Predicated region
      $region53: #{cim_forward.3} parent=47 // pred_check
        %p312 = pneg %p62
      $region54: #{cim_forward.3} parent=47 // pred_check_branch
        %314 = sbr.rel (%p312) target = $region56
      $region55: #{cim_forward.3} parent=47 // pred_region
        %p315 = scmp.lt.s32.totalorder %s16, 1
        %s316 = scalar_select %p315, %s16, 1
        %s317 = smul.addr %s316, 2
        %s318 = smul.addr %s317, 8
        %s319 = scalar_lea.vmem %s1, %s318
      $region56: #{cim_forward.3} parent=47 // pred_fallthru
        _
    $region48: #{cim_forward.3} parent=5 // pred_fallthru
      _
    %p320 = scmp.le.s32.totalorder 1, %s16
    %p321 = scmp.lt.s32.totalorder %s16, 3
    %p322 = pnand %p320, %p321
    %p323 = pneg %p322
    // Predicated region
    $region57: #{cim_forward.3} parent=5 // pred_check
      _
    $region58: #{cim_forward.3} parent=5 // pred_check_branch
      %325 = sbr.rel (%p322) target = $region60
    $region59: #{cim_forward.3} parent=5 // pred_region
      %s326 = ssub.s32 %s16, 1
      %p327 = scmp.lt.s32.totalorder %s21, 1
      %s328 = scalar_select %p327, %s21, 1
      %s329 = smul.addr %s328, 8
      %s330 = scalar_lea.vmem %s0, %s329
      %p331 = pneg %p42
      %p332 = pneg %p39
      %p333 = scmp.lt.s32.totalorder %s21, 1
      %s334 = scalar_select %p333, %s21, 1
      %s335 = smul.addr %s334, 2
      %s336 = smul.addr %s335, 8
      %s337 = scalar_lea.vmem %s1, %s336
      %p338 = pneg %p68
      %p339 = pneg %p65
      %p340 = pneg %p89
      %p341 = pneg %p86
      %p342 = pneg %p110
      %p343 = pneg %p107
      %p344 = pneg %p131
      %p345 = pneg %p128
      %p346 = pneg %p152
      %p347 = pneg %p149
      %p348 = pneg %p173
      %p349 = pneg %p170
      %p350 = pneg %p194
      %p351 = pneg %p191
      %p352 = pneg %p215
      %p353 = pneg %p212
      %p354 = pneg %p236
      %p355 = pneg %p233
      %p356 = pneg %p262
      %p357 = pneg %p259
      %p358 = scmp.lt.s32.totalorder %s21, 1
      %s359 = scalar_select %p358, %s21, 1
      %s360 = smul.addr %s359, 2
      %s361 = smul.addr %s360, 8
      %s362 = scalar_lea.vmem %s10, %s361
      %p363 = scmp.lt.s32.totalorder %s21, 1
      %s364 = scalar_select %p363, %s21, 1
      %s365 = smul.addr %s364, 8
      %s366 = scalar_lea.vmem %s0, %s365
      %p367 = scmp.lt.s32.totalorder %s21, 1
      %s368 = scalar_select %p367, %s21, 1
      %s369 = smul.addr %s368, 2
      %s370 = smul.addr %s369, 8
      %s371 = scalar_lea.vmem %s1, %s370
      %p372 = scmp.lt.s32.totalorder %s21, 1
      %s373 = scalar_select %p372, %s21, 1
      %s374 = smul.addr %s373, 2
      %s375 = smul.addr %s374, 8
      %s376 = scalar_lea.vmem %s10, %s375
      %v378 = vld [vmem:[%s366] sm:$0xff]
      %v379 = vld [vmem:[%s2] sm:$0xf]
      %v380 = vld [vmem:[%s2 + $0x4] sm:$0xf]
      %v381 = vpack.c.bf16 %v378, %v378
      %v384 = vunpack.c.l.b16 %v379
      %v385 = vunpack.c.l.b16 %v380
      %v386 = vpack.c.b16 %v385, %v384
      %vm387 = vcmask 64512
      %v389 = vsel %vm387, %v386, 0
      %vm391 = vcmask 1043456
      %v393 = vsel %vm391, %v381, 0
      %395 = vmatpush.bf16.msra.mxu0 0
      %396 = vmatpush.bf16.msra.mxu0 0
      %397 = vmatpush.bf16.msra.mxu0 0
      %398 = vmatpush.bf16.msra.mxu0 0
      %399 = vmatpush.bf16.msra.mxu0 0
      %400 = vmatpush.bf16.msra.mxu0 0
      %401 = vmatpush.bf16.msra.mxu0 0
      %402 = vmatpush.bf16.msra.mxu0 %v393
      %403 = vmatmul.bf16.gmra.mxu0 %v389
      %v404 = vpop.f32.mrf.mxu0
      %v405 = vadd.f32 0.0, %v404
      %v406 = vpop.f32.mrf.mxu0
      %v407 = vadd.f32 0.0, %v406
      %408 = vdwg.mxu0
      %v409 = vpack.c.bf16 %v407, %v405
      %v410 = vld [vmem:[%s3] sm:$0xf]
      %v411 = vld [vmem:[%s3 + $0x4] sm:$0xf]
      %v412 = vld [vmem:[%s3 + $0x8] sm:$0xf]
      %v413 = vld [vmem:[%s3 + $0xc] sm:$0xf]
      %v418 = vunpack.c.l.b16 %v410
      %v419 = vunpack.c.l.b16 %v411
      %v420 = vunpack.c.l.b16 %v412
      %v421 = vunpack.c.l.b16 %v413
      %v422 = vpack.c.b16 %v419, %v418
      %v423 = vpack.c.b16 %v421, %v420
      %vm426 = vcmask 261120
      %v428 = vsel %vm426, %v409, 0
      %430 = vmatpush.bf16.msra.mxu0 0
      %431 = vmatpush.bf16.msra.mxu0 0
      %432 = vmatpush.bf16.msra.mxu0 0
      %433 = vmatpush.bf16.msra.mxu0 0
      %434 = vmatpush.bf16.msra.mxu0 0
      %435 = vmatpush.bf16.msra.mxu0 0
      %436 = vmatpush.bf16.msra.mxu0 %v423
      %437 = vmatpush.bf16.msra.mxu0 %v422
      %438 = vmatmul.bf16.gmra.mxu0 %v428
      %v439 = vpop.f32.mrf.mxu0
      %v440 = vadd.f32 0.0, %v439
      %v441 = vpop.f32.mrf.mxu0
      %v442 = vadd.f32 0.0, %v441
      %443 = vdwg.mxu0
      %v444 = vld [vmem:[%s371] sm:$0xff]
      %v445 = vld [vmem:[%s371 + $0x8] sm:$0xff]
      %v446 = vadd.f32 %v440, %v444
      %v447 = vadd.f32 %v442, %v445
      %vm448 = vcmask 523264
      %v449 = vsel %vm448, %v446, 0.0
      %v450 = vsel %vm448, %v447, 0.0
      %v451 = vadd.f32 %v449, %v450
      %v452 = vrot.slane %v451, 4
      %v453 = vadd.f32 %v451, %v452
      %v454 = vrot.slane %v453, 2
      %v455 = vadd.f32 %v453, %v454
      %v456 = vrot.slane %v455, 1
      %v457 = vadd.f32 %v455, %v456
      %v458 = vld [vmem:[%s4] sm:$0xff]
      %v459 = vld [vmem:[%s4 + $0x8] sm:$0xff]
      %v460 = vld [vmem:[%s4 + $0x10] sm:$0xff]
      %v461 = vld [vmem:[%s4 + $0x18] sm:$0xff]
      %v462 = vld [vmem:[%s4 + $0x20] sm:$0xff]
      %v463 = vld [vmem:[%s4 + $0x28] sm:$0xff]
      %v464 = vld [vmem:[%s4 + $0x30] sm:$0xff]
      %v465 = vld [vmem:[%s4 + $0x38] sm:$0xff]
      %v467 = vsel %vm448, %v457, 0
      %469 = vmatpush.msra.mxu0 0.0
      %470 = vmatpush.msra.mxu0 0.0
      %471 = vmatpush.msra.mxu0 0.0
      %472 = vmatpush.msra.mxu0 0.0
      %473 = vmatpush.msra.mxu0 0.0
      %474 = vmatpush.msra.mxu0 0.0
      %475 = vmatpush.msra.mxu0 0.0
      %476 = vmatpush.msra.mxu0 0.0
      %477 = vmatpush.msra.mxu0 %v465
      %478 = vmatpush.msra.mxu0 %v464
      %479 = vmatpush.msra.mxu0 %v463
      %480 = vmatpush.msra.mxu0 %v462
      %481 = vmatpush.msra.mxu0 %v461
      %482 = vmatpush.msra.mxu0 %v460
      %483 = vmatpush.msra.mxu0 %v459
      %484 = vmatpush.msra.mxu0 %v458
      %485 = vmatmul.f32.gmra.mxu0 %v467
      %v486 = vpop.f32.mrf.mxu0
      %v487 = vadd.f32 0.0, %v486
      %488 = vdwg.mxu0
      %v489 = vld [vmem:[%s5] sm:$0x1]
      %v490 = vmul.f32 %v487, %v489
      %v491 = vld [vmem:[%s6] sm:$0x1]
      %v492 = vadd.f32 %v490, %v491
      %v493 = vmax.f32 %v492, 0.0
      %v494 = vld [vmem:[%s7] sm:$0xff]
      %v495 = vld [vmem:[%s7 + $0x8] sm:$0xff]
      %v496 = vld [vmem:[%s7 + $0x10] sm:$0xff]
      %v497 = vld [vmem:[%s7 + $0x18] sm:$0xff]
      %v499 = vsel %vm426, %v493, 0
      %501 = vmatpush.msra.mxu0 0.0
      %502 = vmatpush.msra.mxu0 0.0
      %503 = vmatpush.msra.mxu0 0.0
      %504 = vmatpush.msra.mxu0 0.0
      %505 = vmatpush.msra.mxu0 0.0
      %506 = vmatpush.msra.mxu0 0.0
      %507 = vmatpush.msra.mxu0 0.0
      %508 = vmatpush.msra.mxu0 0.0
      %509 = vmatpush.msra.mxu0 0.0
      %510 = vmatpush.msra.mxu0 0.0
      %511 = vmatpush.msra.mxu0 0.0
      %512 = vmatpush.msra.mxu0 0.0
      %513 = vmatpush.msra.mxu0 %v497
      %514 = vmatpush.msra.mxu0 %v496
      %515 = vmatpush.msra.mxu0 %v495
      %516 = vmatpush.msra.mxu0 %v494
      %517 = vmatmul.f32.gmra.mxu0 %v499
      %v518 = vpop.f32.mrf.mxu0
      %v519 = vadd.f32 0.0, %v518
      %520 = vdwg.mxu0
      %v521 = vld [vmem:[%s8] sm:$0xff]
      %v522 = vld [vmem:[%s8 + $0x8] sm:$0xff]
      %v523 = vld [vmem:[%s8 + $0x10] sm:$0xff]
      %v524 = vld [vmem:[%s8 + $0x18] sm:$0xff]
      %525 = vmatpush.msra.mxu0 0.0
      %526 = vmatpush.msra.mxu0 0.0
      %527 = vmatpush.msra.mxu0 0.0
      %528 = vmatpush.msra.mxu0 0.0
      %529 = vmatpush.msra.mxu0 0.0
      %530 = vmatpush.msra.mxu0 0.0
      %531 = vmatpush.msra.mxu0 0.0
      %532 = vmatpush.msra.mxu0 0.0
      %533 = vmatpush.msra.mxu0 0.0
      %534 = vmatpush.msra.mxu0 0.0
      %535 = vmatpush.msra.mxu0 0.0
      %536 = vmatpush.msra.mxu0 0.0
      %537 = vmatpush.msra.mxu0 %v524
      %538 = vmatpush.msra.mxu0 %v523
      %539 = vmatpush.msra.mxu0 %v522
      %540 = vmatpush.msra.mxu0 %v521
      %541 = vmatmul.f32.gmra.mxu0 %v499
      %v542 = vpop.f32.mrf.mxu0
      %v543 = vadd.f32 0.0, %v542
      %544 = vdwg.mxu0
      %v545 = vmax.f32 %v519, %v543
      %v546 = vsub.f32 %v519, %v545
      %v547 = vmul.f32 %v546, 1.442695
      %v548 = vpow.pop %v547
      %v549 = vsub.f32 %v543, %v545
      %v550 = vmul.f32 %v549, 1.442695
      %v551 = vpow.pop %v550
      %v552 = vadd.f32 %v548, %v551
      %v553 = vrcp.pop %v552
      %v554 = vmul.f32 %v548, %v553
      %v555 = vld [vmem:[%s9] sm:$0xf]
      %vm556 = vcmask 31744
      %v558 = vsel %vm556, %v554, 0
      %v561 = vsel %vm391, %v555, 0
      %563 = vmatpush.msra.mxu0 0.0
      %564 = vmatpush.msra.mxu0 0.0
      %565 = vmatpush.msra.mxu0 0.0
      %566 = vmatpush.msra.mxu0 0.0
      %567 = vmatpush.msra.mxu0 0.0
      %568 = vmatpush.msra.mxu0 0.0
      %569 = vmatpush.msra.mxu0 0.0
      %570 = vmatpush.msra.mxu0 0.0
      %571 = vmatpush.msra.mxu0 0.0
      %572 = vmatpush.msra.mxu0 0.0
      %573 = vmatpush.msra.mxu0 0.0
      %574 = vmatpush.msra.mxu0 0.0
      %575 = vmatpush.msra.mxu0 0.0
      %576 = vmatpush.msra.mxu0 0.0
      %577 = vmatpush.msra.mxu0 0.0
      %578 = vmatpush.msra.mxu0 %v561
      %579 = vmatmul.f32.gmra.mxu0 %v558
      %v580 = vpop.f32.mrf.mxu0
      %v581 = vadd.f32 0.0, %v580
      %582 = vdwg.mxu0
      %v583 = vmul.f32 %v551, %v553
      %v585 = vsel %vm556, %v583, 0
      %587 = vmatpush.msra.mxu0 0.0
      %588 = vmatpush.msra.mxu0 0.0
      %589 = vmatpush.msra.mxu0 0.0
      %590 = vmatpush.msra.mxu0 0.0
      %591 = vmatpush.msra.mxu0 0.0
      %592 = vmatpush.msra.mxu0 0.0
      %593 = vmatpush.msra.mxu0 0.0
      %594 = vmatpush.msra.mxu0 0.0
      %595 = vmatpush.msra.mxu0 0.0
      %596 = vmatpush.msra.mxu0 0.0
      %597 = vmatpush.msra.mxu0 0.0
      %598 = vmatpush.msra.mxu0 0.0
      %599 = vmatpush.msra.mxu0 0.0
      %600 = vmatpush.msra.mxu0 0.0
      %601 = vmatpush.msra.mxu0 0.0
      %602 = vmatpush.msra.mxu0 %v561
      %603 = vmatmul.f32.gmra.mxu0 %v585
      %v604 = vpop.f32.mrf.mxu0
      %v605 = vadd.f32 0.0, %v604
      %606 = vdwg.mxu0
      %v607 = vperm.slane %v581, 0
      %v608 = vmul.f32 %v440, %v607
      %v609 = vmul.f32 %v442, %v607
      %v610 = vperm.slane %v605, 0
      %v611 = vmul.f32 %v444, %v610
      %v612 = vmul.f32 %v445, %v610
      %v613 = vadd.f32 %v608, %v611
      %v614 = vadd.f32 %v609, %v612
      %615 = vst.msk [vmem:[%s376] sm:$0xff] %vm448, %v613
      %616 = vst.msk [vmem:[%s376 + $0x8] sm:$0xff] %vm448, %v614
      %p617 = scmp.lt.s32.totalorder %s21, 1
      %s618 = scalar_select %p617, %s21, 1
      %s619 = smul.addr %s618, 2
      %s620 = smul.addr %s619, 8
      %s621 = scalar_lea.vmem %s10, %s620
      // Predicated region
      $region61: #{cim_forward.3} parent=59 // pred_check
        %p622 = pneg %p259
      $region62: #{cim_forward.3} parent=59 // pred_check_branch
        %624 = sbr.rel (%p622) target = $region64
      $region63: #{cim_forward.3} parent=59 // pred_region
        _
      $region64: #{cim_forward.3} parent=59 // pred_fallthru
        _
    $region60: #{cim_forward.3} parent=5 // pred_fallthru
      _
    %p625 = scmp.le.s32.totalorder 2, %s16
    // Predicated region
    $region65: #{cim_forward.3} parent=5 // pred_check
      %p626 = pneg %p625
    $region66: #{cim_forward.3} parent=5 // pred_check_branch
      %628 = sbr.rel (%p626) target = $region68
    $region67: #{cim_forward.3} parent=5 // pred_region
      %s629 = ssub.s32 %s16, 2
      // Predicated region
      $region69: #{cim_forward.3} parent=67 // pred_check
        %p630 = pneg %p265
      $region70: #{cim_forward.3} parent=67 // pred_check_branch
        %632 = sbr.rel (%p630) target = $region72
      $region71: #{cim_forward.3} parent=67 // pred_region
        %p633 = scmp.lt.s32.totalorder %s22, 1
        %s634 = scalar_select %p633, %s22, 1
        %s635 = smul.addr %s634, 2
        %s636 = smul.addr %s635, 8
        %s637 = scalar_lea.vmem %s10, %s636
      $region72: #{cim_forward.3} parent=67 // pred_fallthru
        _
    $region68: #{cim_forward.3} parent=5 // pred_fallthru
      _
  $region6: #{cim_forward.3} parent=0 // loop_footer
    %s20 = sadd.s32 1, %s16
  $region7: #{cim_forward.3} parent=0 // loop_footer_branch
    %15 = sbr.rel target = $region3
  $region8: #{cim_forward.3} parent=0 // loop_exit
    _

// kernel: cim_forward.2
$region0: #{cim_forward.2}
  #allocation0 [shape = 'u32[]', space=smem, size = 0x4, offset = 0x4, fixed_abs, tag = 'smem constant byte address 0x4 - core index']
  #allocation1 [shape = 'u32[72,128]{1,0:T(1,128)}', space=vmem, size = 0x9000, scoped, tag = 'internal scratch']
  #allocation2 [shape = 'f32[82,8]{1,0:T(8,128)}', space=vmem, size = 0xb000, scoped, tag = 'scratch operand']
  %s0 = inlined_call_operand.vmem [shape: f32[2,4,64,4], index: 0, kind: input, shape index: {}]
  %s1 = inlined_call_operand.vmem [shape: f32[2,64,8], index: 1, kind: input, shape index: {}]
  %s2 = inlined_call_operand.vmem [shape: bf16[4,8], index: 2, kind: input, shape index: {}]
  %s3 = inlined_call_operand.vmem [shape: f32[1,8], index: 3, kind: input, shape index: {}]
  %s4 = inlined_call_operand.vmem [shape: bf16[9,8,8], index: 4, kind: input, shape index: {}]
  %s5 = inlined_call_operand.vmem [shape: f32[1,8], index: 5, kind: input, shape index: {}]
  %s6 = inlined_call_operand.vmem [shape: f32[8,32], index: 6, kind: input, shape index: {}]
  %s7 = inlined_call_operand.vmem [shape: f32[1,32], index: 7, kind: input, shape index: {}]
  %s8 = inlined_call_operand.vmem [shape: f32[1,32], index: 8, kind: input, shape index: {}]
  %s9 = inlined_call_operand.vmem [shape: f32[32,8], index: 9, kind: input, shape index: {}]
  %s10 = inlined_call_operand.vmem [shape: f32[32,8], index: 10, kind: input, shape index: {}]
  %s11 = inlined_call_operand.vmem [shape: bf16[8,4], index: 11, kind: input, shape index: {}]
  %s12 = inlined_call_operand.vmem [shape: f32[1,4], index: 12, kind: input, shape index: {}]
  %s13 = inlined_call_operand.vmem [shape: f32[2,64,4], index: 13, kind: output, shape index: {}]
  %s14 = sld [smem:[#allocation0]]
  $region85: #{cim_forward.2} parent=0
    _
  %s16 = ssub.s32 1, %s14
  %s17 = scalar_select 0, %s16, %s14
  loop: start=0, step=1, limit=4
  $region2: #{cim_forward.2} parent=0 // loop_pre_header
    _
  $region3: #{cim_forward.2} parent=0 // loop_header
    %s19 = sphi 0, %s23
    %p20 = scmp.ge.s32.totalorder %s19, 4
    %s29 = sphi 0, %s31
    %s32 = sphi 0, %s29
    %s33 = sphi 0, %s32
    %s49 = sphi 0, %s33
    %s55 = sphi 0, %s57
    %s58 = sphi 0, %s55
    %s59 = sphi 0, %s58
    %s75 = sphi 0, %s59
    %s79 = sphi 0, %s79
    %s81 = sphi 0, %s79
    %s82 = sphi 0, %s81
    %s96 = sphi 0, %s82
    %s100 = sphi 0, %s100
    %s102 = sphi 0, %s100
    %s103 = sphi 0, %s102
    %s117 = sphi 0, %s103
    %s121 = sphi 0, %s121
    %s123 = sphi 0, %s121
    %s124 = sphi 0, %s123
    %s138 = sphi 0, %s124
    %s142 = sphi 0, %s142
    %s144 = sphi 0, %s142
    %s145 = sphi 0, %s144
    %s159 = sphi 0, %s145
    %s163 = sphi 0, %s163
    %s165 = sphi 0, %s163
    %s166 = sphi 0, %s165
    %s180 = sphi 0, %s166
    %s184 = sphi 0, %s184
    %s186 = sphi 0, %s184
    %s187 = sphi 0, %s186
    %s201 = sphi 0, %s187
    %s205 = sphi 0, %s205
    %s207 = sphi 0, %s205
    %s208 = sphi 0, %s207
    %s222 = sphi 0, %s208
    %s226 = sphi 0, %s226
    %s228 = sphi 0, %s226
    %s229 = sphi 0, %s228
    %s243 = sphi 0, %s229
    %s247 = sphi 0, %s247
    %s249 = sphi 0, %s247
    %s250 = sphi 0, %s249
    %s264 = sphi 0, %s250
    %s268 = sphi 0, %s268
    %s270 = sphi 0, %s268
    %s271 = sphi 0, %s270
    %s285 = sphi 0, %s271
    %s289 = sphi 0, %s289
    %s291 = sphi 0, %s289
    %s292 = sphi 0, %s291
    %s306 = sphi 0, %s292
    %s312 = sphi 0, %s314
    %s315 = sphi 0, %s312
    %s316 = sphi 0, %s315
    %s332 = sphi 0, %s316
  $region4: #{cim_forward.2} parent=0 // loop_header_branch
    %22 = sbr.rel (%p20) target = $region8
  $region5: #{cim_forward.2} parent=0 // loop_body
    %s24 = ssub.s32 %s19, 1
    %s25 = ssub.s32 %s19, 2
    %s26 = sadd.s32 %s19, 1
    %s27 = ssub.s32 %s19, %s26
    %p28 = scmp.eq.s32.totalorder %s27, 0
    %s30 = sadd.s32 %s29, 1
    %s31 = scalar_select %p28, %s29, %s30
    %p34 = pneg %p28
    %p35 = scmp.eq.s32.totalorder %s19, 1
    %p36 = por %p34, %p35
    %p37 = scmp.ne.s32.totalorder %s29, %s32
    %p38 = scmp.eq.s32.totalorder %s19, 0
    %p39 = por %p37, %p38
    %p40 = scmp.ne.s32.totalorder %s29, %s32
    %p41 = scmp.eq.s32.totalorder %s24, 1
    %p42 = por %p40, %p41
    %p43 = scmp.ne.s32.totalorder %s32, %s33
    %p44 = scmp.eq.s32.totalorder %s24, 0
    %p45 = por %p43, %p44
    %p46 = scmp.ne.s32.totalorder %s32, %s33
    %p47 = scmp.eq.s32.totalorder %s25, 1
    %p48 = por %p46, %p47
    %p50 = scmp.ne.s32.totalorder %s33, %s49
    %p51 = scmp.eq.s32.totalorder %s25, 0
    %p52 = por %p50, %p51
    %s53 = ssub.s32 %s19, %s26
    %p54 = scmp.eq.s32.totalorder %s53, 0
    %s56 = sadd.s32 %s55, 1
    %s57 = scalar_select %p54, %s55, %s56
    %p60 = pneg %p54
    %p61 = scmp.eq.s32.totalorder %s19, 1
    %p62 = por %p60, %p61
    %p63 = scmp.ne.s32.totalorder %s55, %s58
    %p64 = scmp.eq.s32.totalorder %s19, 0
    %p65 = por %p63, %p64
    %p66 = scmp.ne.s32.totalorder %s55, %s58
    %p67 = scmp.eq.s32.totalorder %s24, 1
    %p68 = por %p66, %p67
    %p69 = scmp.ne.s32.totalorder %s58, %s59
    %p70 = scmp.eq.s32.totalorder %s24, 0
    %p71 = por %p69, %p70
    %p72 = scmp.ne.s32.totalorder %s58, %s59
    %p73 = scmp.eq.s32.totalorder %s25, 1
    %p74 = por %p72, %p73
    %p76 = scmp.ne.s32.totalorder %s59, %s75
    %p77 = scmp.eq.s32.totalorder %s25, 0
    %p78 = por %p76, %p77
    %s80 = sadd.s32 %s79, 1
    %p83 = scmp.eq.s32.totalorder %s19, 1
    %p84 = scmp.ne.s32.totalorder %s79, %s81
    %p85 = scmp.eq.s32.totalorder %s19, 0
    %p86 = por %p84, %p85
    %p87 = scmp.ne.s32.totalorder %s79, %s81
    %p88 = scmp.eq.s32.totalorder %s24, 1
    %p89 = por %p87, %p88
    %p90 = scmp.ne.s32.totalorder %s81, %s82
    %p91 = scmp.eq.s32.totalorder %s24, 0
    %p92 = por %p90, %p91
    %p93 = scmp.ne.s32.totalorder %s81, %s82
    %p94 = scmp.eq.s32.totalorder %s25, 1
    %p95 = por %p93, %p94
    %p97 = scmp.ne.s32.totalorder %s82, %s96
    %p98 = scmp.eq.s32.totalorder %s25, 0
    %p99 = por %p97, %p98
    %s101 = sadd.s32 %s100, 1
    %p104 = scmp.eq.s32.totalorder %s19, 1
    %p105 = scmp.ne.s32.totalorder %s100, %s102
    %p106 = scmp.eq.s32.totalorder %s19, 0
    %p107 = por %p105, %p106
    %p108 = scmp.ne.s32.totalorder %s100, %s102
    %p109 = scmp.eq.s32.totalorder %s24, 1
    %p110 = por %p108, %p109
    %p111 = scmp.ne.s32.totalorder %s102, %s103
    %p112 = scmp.eq.s32.totalorder %s24, 0
    %p113 = por %p111, %p112
    %p114 = scmp.ne.s32.totalorder %s102, %s103
    %p115 = scmp.eq.s32.totalorder %s25, 1
    %p116 = por %p114, %p115
    %p118 = scmp.ne.s32.totalorder %s103, %s117
    %p119 = scmp.eq.s32.totalorder %s25, 0
    %p120 = por %p118, %p119
    %s122 = sadd.s32 %s121, 1
    %p125 = scmp.eq.s32.totalorder %s19, 1
    %p126 = scmp.ne.s32.totalorder %s121, %s123
    %p127 = scmp.eq.s32.totalorder %s19, 0
    %p128 = por %p126, %p127
    %p129 = scmp.ne.s32.totalorder %s121, %s123
    %p130 = scmp.eq.s32.totalorder %s24, 1
    %p131 = por %p129, %p130
    %p132 = scmp.ne.s32.totalorder %s123, %s124
    %p133 = scmp.eq.s32.totalorder %s24, 0
    %p134 = por %p132, %p133
    %p135 = scmp.ne.s32.totalorder %s123, %s124
    %p136 = scmp.eq.s32.totalorder %s25, 1
    %p137 = por %p135, %p136
    %p139 = scmp.ne.s32.totalorder %s124, %s138
    %p140 = scmp.eq.s32.totalorder %s25, 0
    %p141 = por %p139, %p140
    %s143 = sadd.s32 %s142, 1
    %p146 = scmp.eq.s32.totalorder %s19, 1
    %p147 = scmp.ne.s32.totalorder %s142, %s144
    %p148 = scmp.eq.s32.totalorder %s19, 0
    %p149 = por %p147, %p148
    %p150 = scmp.ne.s32.totalorder %s142, %s144
    %p151 = scmp.eq.s32.totalorder %s24, 1
    %p152 = por %p150, %p151
    %p153 = scmp.ne.s32.totalorder %s144, %s145
    %p154 = scmp.eq.s32.totalorder %s24, 0
    %p155 = por %p153, %p154
    %p156 = scmp.ne.s32.totalorder %s144, %s145
    %p157 = scmp.eq.s32.totalorder %s25, 1
    %p158 = por %p156, %p157
    %p160 = scmp.ne.s32.totalorder %s145, %s159
    %p161 = scmp.eq.s32.totalorder %s25, 0
    %p162 = por %p160, %p161
    %s164 = sadd.s32 %s163, 1
    %p167 = scmp.eq.s32.totalorder %s19, 1
    %p168 = scmp.ne.s32.totalorder %s163, %s165
    %p169 = scmp.eq.s32.totalorder %s19, 0
    %p170 = por %p168, %p169
    %p171 = scmp.ne.s32.totalorder %s163, %s165
    %p172 = scmp.eq.s32.totalorder %s24, 1
    %p173 = por %p171, %p172
    %p174 = scmp.ne.s32.totalorder %s165, %s166
    %p175 = scmp.eq.s32.totalorder %s24, 0
    %p176 = por %p174, %p175
    %p177 = scmp.ne.s32.totalorder %s165, %s166
    %p178 = scmp.eq.s32.totalorder %s25, 1
    %p179 = por %p177, %p178
    %p181 = scmp.ne.s32.totalorder %s166, %s180
    %p182 = scmp.eq.s32.totalorder %s25, 0
    %p183 = por %p181, %p182
    %s185 = sadd.s32 %s184, 1
    %p188 = scmp.eq.s32.totalorder %s19, 1
    %p189 = scmp.ne.s32.totalorder %s184, %s186
    %p190 = scmp.eq.s32.totalorder %s19, 0
    %p191 = por %p189, %p190
    %p192 = scmp.ne.s32.totalorder %s184, %s186
    %p193 = scmp.eq.s32.totalorder %s24, 1
    %p194 = por %p192, %p193
    %p195 = scmp.ne.s32.totalorder %s186, %s187
    %p196 = scmp.eq.s32.totalorder %s24, 0
    %p197 = por %p195, %p196
    %p198 = scmp.ne.s32.totalorder %s186, %s187
    %p199 = scmp.eq.s32.totalorder %s25, 1
    %p200 = por %p198, %p199
    %p202 = scmp.ne.s32.totalorder %s187, %s201
    %p203 = scmp.eq.s32.totalorder %s25, 0
    %p204 = por %p202, %p203
    %s206 = sadd.s32 %s205, 1
    %p209 = scmp.eq.s32.totalorder %s19, 1
    %p210 = scmp.ne.s32.totalorder %s205, %s207
    %p211 = scmp.eq.s32.totalorder %s19, 0
    %p212 = por %p210, %p211
    %p213 = scmp.ne.s32.totalorder %s205, %s207
    %p214 = scmp.eq.s32.totalorder %s24, 1
    %p215 = por %p213, %p214
    %p216 = scmp.ne.s32.totalorder %s207, %s208
    %p217 = scmp.eq.s32.totalorder %s24, 0
    %p218 = por %p216, %p217
    %p219 = scmp.ne.s32.totalorder %s207, %s208
    %p220 = scmp.eq.s32.totalorder %s25, 1
    %p221 = por %p219, %p220
    %p223 = scmp.ne.s32.totalorder %s208, %s222
    %p224 = scmp.eq.s32.totalorder %s25, 0
    %p225 = por %p223, %p224
    %s227 = sadd.s32 %s226, 1
    %p230 = scmp.eq.s32.totalorder %s19, 1
    %p231 = scmp.ne.s32.totalorder %s226, %s228
    %p232 = scmp.eq.s32.totalorder %s19, 0
    %p233 = por %p231, %p232
    %p234 = scmp.ne.s32.totalorder %s226, %s228
    %p235 = scmp.eq.s32.totalorder %s24, 1
    %p236 = por %p234, %p235
    %p237 = scmp.ne.s32.totalorder %s228, %s229
    %p238 = scmp.eq.s32.totalorder %s24, 0
    %p239 = por %p237, %p238
    %p240 = scmp.ne.s32.totalorder %s228, %s229
    %p241 = scmp.eq.s32.totalorder %s25, 1
    %p242 = por %p240, %p241
    %p244 = scmp.ne.s32.totalorder %s229, %s243
    %p245 = scmp.eq.s32.totalorder %s25, 0
    %p246 = por %p244, %p245
    %s248 = sadd.s32 %s247, 1
    %p251 = scmp.eq.s32.totalorder %s19, 1
    %p252 = scmp.ne.s32.totalorder %s247, %s249
    %p253 = scmp.eq.s32.totalorder %s19, 0
    %p254 = por %p252, %p253
    %p255 = scmp.ne.s32.totalorder %s247, %s249
    %p256 = scmp.eq.s32.totalorder %s24, 1
    %p257 = por %p255, %p256
    %p258 = scmp.ne.s32.totalorder %s249, %s250
    %p259 = scmp.eq.s32.totalorder %s24, 0
    %p260 = por %p258, %p259
    %p261 = scmp.ne.s32.totalorder %s249, %s250
    %p262 = scmp.eq.s32.totalorder %s25, 1
    %p263 = por %p261, %p262
    %p265 = scmp.ne.s32.totalorder %s250, %s264
    %p266 = scmp.eq.s32.totalorder %s25, 0
    %p267 = por %p265, %p266
    %s269 = sadd.s32 %s268, 1
    %p272 = scmp.eq.s32.totalorder %s19, 1
    %p273 = scmp.ne.s32.totalorder %s268, %s270
    %p274 = scmp.eq.s32.totalorder %s19, 0
    %p275 = por %p273, %p274
    %p276 = scmp.ne.s32.totalorder %s268, %s270
    %p277 = scmp.eq.s32.totalorder %s24, 1
    %p278 = por %p276, %p277
    %p279 = scmp.ne.s32.totalorder %s270, %s271
    %p280 = scmp.eq.s32.totalorder %s24, 0
    %p281 = por %p279, %p280
    %p282 = scmp.ne.s32.totalorder %s270, %s271
    %p283 = scmp.eq.s32.totalorder %s25, 1
    %p284 = por %p282, %p283
    %p286 = scmp.ne.s32.totalorder %s271, %s285
    %p287 = scmp.eq.s32.totalorder %s25, 0
    %p288 = por %p286, %p287
    %s290 = sadd.s32 %s289, 1
    %p293 = scmp.eq.s32.totalorder %s19, 1
    %p294 = scmp.ne.s32.totalorder %s289, %s291
    %p295 = scmp.eq.s32.totalorder %s19, 0
    %p296 = por %p294, %p295
    %p297 = scmp.ne.s32.totalorder %s289, %s291
    %p298 = scmp.eq.s32.totalorder %s24, 1
    %p299 = por %p297, %p298
    %p300 = scmp.ne.s32.totalorder %s291, %s292
    %p301 = scmp.eq.s32.totalorder %s24, 0
    %p302 = por %p300, %p301
    %p303 = scmp.ne.s32.totalorder %s291, %s292
    %p304 = scmp.eq.s32.totalorder %s25, 1
    %p305 = por %p303, %p304
    %p307 = scmp.ne.s32.totalorder %s292, %s306
    %p308 = scmp.eq.s32.totalorder %s25, 0
    %p309 = por %p307, %p308
    %s310 = ssub.s32 %s19, %s26
    %p311 = scmp.eq.s32.totalorder %s310, 0
    %s313 = sadd.s32 %s312, 1
    %s314 = scalar_select %p311, %s312, %s313
    %p317 = pneg %p311
    %p318 = scmp.eq.s32.totalorder %s19, 1
    %p319 = por %p317, %p318
    %p320 = scmp.ne.s32.totalorder %s312, %s315
    %p321 = scmp.eq.s32.totalorder %s19, 0
    %p322 = por %p320, %p321
    %p323 = scmp.ne.s32.totalorder %s312, %s315
    %p324 = scmp.eq.s32.totalorder %s24, 1
    %p325 = por %p323, %p324
    %p326 = scmp.ne.s32.totalorder %s315, %s316
    %p327 = scmp.eq.s32.totalorder %s24, 0
    %p328 = por %p326, %p327
    %p329 = scmp.ne.s32.totalorder %s315, %s316
    %p330 = scmp.eq.s32.totalorder %s25, 1
    %p331 = por %p329, %p330
    %p333 = scmp.ne.s32.totalorder %s316, %s332
    %p334 = scmp.eq.s32.totalorder %s25, 0
    %p335 = por %p333, %p334
    %p336 = scmp.le.s32.totalorder 1, %s19
    %p337 = scmp.lt.s32.totalorder %s19, 3
    %p338 = pnand %p336, %p337
    %p339 = pneg %p338
    // Predicated region
    $region9: #{cim_forward.2} parent=5 // pred_check
      _
    $region10: #{cim_forward.2} parent=5 // pred_check_branch
      %341 = sbr.rel (%p338) target = $region12
    $region11: #{cim_forward.2} parent=5 // pred_region
      %s342 = ssub.s32 %s19, 1
      // Predicated region
      $region13: #{cim_forward.2} parent=11 // pred_check
        %p343 = pneg %p92
      $region14: #{cim_forward.2} parent=11 // pred_check_branch
        %345 = sbr.rel (%p343) target = $region16
      $region15: #{cim_forward.2} parent=11 // pred_region
        _
      $region16: #{cim_forward.2} parent=11 // pred_fallthru
        _
      // Predicated region
      $region17: #{cim_forward.2} parent=11 // pred_check
        %p346 = pneg %p113
      $region18: #{cim_forward.2} parent=11 // pred_check_branch
        %348 = sbr.rel (%p346) target = $region20
      $region19: #{cim_forward.2} parent=11 // pred_region
        _
      $region20: #{cim_forward.2} parent=11 // pred_fallthru
        _
      // Predicated region
      $region21: #{cim_forward.2} parent=11 // pred_check
        %p349 = pneg %p134
      $region22: #{cim_forward.2} parent=11 // pred_check_branch
        %351 = sbr.rel (%p349) target = $region24
      $region23: #{cim_forward.2} parent=11 // pred_region
        _
      $region24: #{cim_forward.2} parent=11 // pred_fallthru
        _
      // Predicated region
      $region25: #{cim_forward.2} parent=11 // pred_check
        %p352 = pneg %p155
      $region26: #{cim_forward.2} parent=11 // pred_check_branch
        %354 = sbr.rel (%p352) target = $region28
      $region27: #{cim_forward.2} parent=11 // pred_region
        _
      $region28: #{cim_forward.2} parent=11 // pred_fallthru
        _
      // Predicated region
      $region29: #{cim_forward.2} parent=11 // pred_check
        %p355 = pneg %p176
      $region30: #{cim_forward.2} parent=11 // pred_check_branch
        %357 = sbr.rel (%p355) target = $region32
      $region31: #{cim_forward.2} parent=11 // pred_region
        _
      $region32: #{cim_forward.2} parent=11 // pred_fallthru
        _
      // Predicated region
      $region33: #{cim_forward.2} parent=11 // pred_check
        %p358 = pneg %p197
      $region34: #{cim_forward.2} parent=11 // pred_check_branch
        %360 = sbr.rel (%p358) target = $region36
      $region35: #{cim_forward.2} parent=11 // pred_region
        _
      $region36: #{cim_forward.2} parent=11 // pred_fallthru
        _
      // Predicated region
      $region37: #{cim_forward.2} parent=11 // pred_check
        %p361 = pneg %p218
      $region38: #{cim_forward.2} parent=11 // pred_check_branch
        %363 = sbr.rel (%p361) target = $region40
      $region39: #{cim_forward.2} parent=11 // pred_region
        _
      $region40: #{cim_forward.2} parent=11 // pred_fallthru
        _
      // Predicated region
      $region41: #{cim_forward.2} parent=11 // pred_check
        %p364 = pneg %p239
      $region42: #{cim_forward.2} parent=11 // pred_check_branch
        %366 = sbr.rel (%p364) target = $region44
      $region43: #{cim_forward.2} parent=11 // pred_region
        _
      $region44: #{cim_forward.2} parent=11 // pred_fallthru
        _
      // Predicated region
      $region45: #{cim_forward.2} parent=11 // pred_check
        %p367 = pneg %p260
      $region46: #{cim_forward.2} parent=11 // pred_check_branch
        %369 = sbr.rel (%p367) target = $region48
      $region47: #{cim_forward.2} parent=11 // pred_region
        _
      $region48: #{cim_forward.2} parent=11 // pred_fallthru
        _
      // Predicated region
      $region49: #{cim_forward.2} parent=11 // pred_check
        %p370 = pneg %p281
      $region50: #{cim_forward.2} parent=11 // pred_check_branch
        %372 = sbr.rel (%p370) target = $region52
      $region51: #{cim_forward.2} parent=11 // pred_region
        _
      $region52: #{cim_forward.2} parent=11 // pred_fallthru
        _
      // Predicated region
      $region53: #{cim_forward.2} parent=11 // pred_check
        %p373 = pneg %p302
      $region54: #{cim_forward.2} parent=11 // pred_check_branch
        %375 = sbr.rel (%p373) target = $region56
      $region55: #{cim_forward.2} parent=11 // pred_region
        _
      $region56: #{cim_forward.2} parent=11 // pred_fallthru
        _
    $region12: #{cim_forward.2} parent=5 // pred_fallthru
      _
    %p376 = scmp.lt.s32.totalorder %s19, 2
    // Predicated region
    $region57: #{cim_forward.2} parent=5 // pred_check
      %p377 = pneg %p376
    $region58: #{cim_forward.2} parent=5 // pred_check_branch
      %379 = sbr.rel (%p377) target = $region60
    $region59: #{cim_forward.2} parent=5 // pred_region
      // Predicated region
      $region61: #{cim_forward.2} parent=59 // pred_check
        %p380 = pneg %p39
      $region62: #{cim_forward.2} parent=59 // pred_check_branch
        %382 = sbr.rel (%p380) target = $region64
      $region63: #{cim_forward.2} parent=59 // pred_region
        %p383 = scmp.lt.s32.totalorder %s19, 1
        %s384 = scalar_select %p383, %s19, 1
        %s385 = smul.addr %s384, 32
        %s386 = smul.addr %s385, 8
        %s387 = scalar_lea.vmem %s0, %s386
      $region64: #{cim_forward.2} parent=59 // pred_fallthru
        _
      // Predicated region
      $region65: #{cim_forward.2} parent=59 // pred_check
        %p388 = pneg %p65
      $region66: #{cim_forward.2} parent=59 // pred_check_branch
        %390 = sbr.rel (%p388) target = $region68
      $region67: #{cim_forward.2} parent=59 // pred_region
        %p391 = scmp.lt.s32.totalorder %s19, 1
        %s392 = scalar_select %p391, %s19, 1
        %s393 = smul.addr %s392, 8
        %s394 = smul.addr %s393, 8
        %s395 = scalar_lea.vmem %s1, %s394
      $region68: #{cim_forward.2} parent=59 // pred_fallthru
        _
    $region60: #{cim_forward.2} parent=5 // pred_fallthru
      _
    %p396 = scmp.le.s32.totalorder 1, %s19
    %p397 = scmp.lt.s32.totalorder %s19, 3
    %p398 = pnand %p396, %p397
    %p399 = pneg %p398
    // Predicated region
    $region69: #{cim_forward.2} parent=5 // pred_check
      _
    $region70: #{cim_forward.2} parent=5 // pred_check_branch
      %401 = sbr.rel (%p398) target = $region72
    $region71: #{cim_forward.2} parent=5 // pred_region
      %s402 = ssub.s32 %s19, 1
      %p403 = scmp.lt.s32.totalorder %s24, 1
      %s404 = scalar_select %p403, %s24, 1
      %s405 = smul.addr %s404, 32
      %s406 = smul.addr %s405, 8
      %s407 = scalar_lea.vmem %s0, %s406
      %p408 = pneg %p45
      %p409 = pneg %p42
      %p410 = scmp.lt.s32.totalorder %s24, 1
      %s411 = scalar_select %p410, %s24, 1
      %s412 = smul.addr %s411, 8
      %s413 = smul.addr %s412, 8
      %s414 = scalar_lea.vmem %s1, %s413
      %p415 = pneg %p71
      %p416 = pneg %p68
      %p417 = pneg %p92
      %p418 = pneg %p89
      %p419 = pneg %p113
      %p420 = pneg %p110
      %p421 = pneg %p134
      %p422 = pneg %p131
      %p423 = pneg %p155
      %p424 = pneg %p152
      %p425 = pneg %p176
      %p426 = pneg %p173
      %p427 = pneg %p197
      %p428 = pneg %p194
      %p429 = pneg %p218
      %p430 = pneg %p215
      %p431 = pneg %p239
      %p432 = pneg %p236
      %p433 = pneg %p260
      %p434 = pneg %p257
      %p435 = pneg %p281
      %p436 = pneg %p278
      %p437 = pneg %p302
      %p438 = pneg %p299
      %p439 = pneg %p328
      %p440 = pneg %p325
      %p441 = scmp.lt.s32.totalorder %s24, 1
      %s442 = scalar_select %p441, %s24, 1
      %s443 = smul.addr %s442, 8
      %s444 = smul.addr %s443, 8
      %s445 = scalar_lea.vmem %s13, %s444
      %p446 = scmp.lt.s32.totalorder %s24, 1
      %s447 = scalar_select %p446, %s24, 1
      %s448 = smul.addr %s447, 32
      %s449 = smul.addr %s448, 8
      %s450 = scalar_lea.vmem %s0, %s449
      %p451 = scmp.lt.s32.totalorder %s24, 1
      %s452 = scalar_select %p451, %s24, 1
      %s453 = smul.addr %s452, 8
      %s454 = smul.addr %s453, 8
      %s455 = scalar_lea.vmem %s1, %s454
      %p456 = scmp.lt.s32.totalorder %s24, 1
      %s457 = scalar_select %p456, %s24, 1
      %s458 = smul.addr %s457, 8
      %s459 = smul.addr %s458, 8
      %s460 = scalar_lea.vmem %s13, %s459
      %v462 = vld [vmem:[%s450] sm:$0xff]
      %v463 = vld [vmem:[%s450 + $0x8] sm:$0xff]
      %v464 = vld [vmem:[%s450 + $0x10] sm:$0xff]
      %v465 = vld [vmem:[%s450 + $0x18] sm:$0xff]
      %v466 = vld [vmem:[%s450 + $0x20] sm:$0xff]
      %v467 = vld [vmem:[%s450 + $0x28] sm:$0xff]
      %v468 = vld [vmem:[%s450 + $0x30] sm:$0xff]
      %v469 = vld [vmem:[%s450 + $0x38] sm:$0xff]
      %v470 = vld [vmem:[%s450 + $0x40] sm:$0xff]
      %v471 = vld [vmem:[%s450 + $0x48] sm:$0xff]
      %v472 = vld [vmem:[%s450 + $0x50] sm:$0xff]
      %v473 = vld [vmem:[%s450 + $0x58] sm:$0xff]
      %v474 = vld [vmem:[%s450 + $0x60] sm:$0xff]
      %v475 = vld [vmem:[%s450 + $0x68] sm:$0xff]
      %v476 = vld [vmem:[%s450 + $0x70] sm:$0xff]
      %v477 = vld [vmem:[%s450 + $0x78] sm:$0xff]
      %v478 = vld [vmem:[%s450 + $0x80] sm:$0xff]
      %v479 = vld [vmem:[%s450 + $0x88] sm:$0xff]
      %v480 = vld [vmem:[%s450 + $0x90] sm:$0xff]
      %v481 = vld [vmem:[%s450 + $0x98] sm:$0xff]
      %v482 = vld [vmem:[%s450 + $0xa0] sm:$0xff]
      %v483 = vld [vmem:[%s450 + $0xa8] sm:$0xff]
      %v484 = vld [vmem:[%s450 + $0xb0] sm:$0xff]
      %v485 = vld [vmem:[%s450 + $0xb8] sm:$0xff]
      %v486 = vld [vmem:[%s450 + $0xc0] sm:$0xff]
      %v487 = vld [vmem:[%s450 + $0xc8] sm:$0xff]
      %v488 = vld [vmem:[%s450 + $0xd0] sm:$0xff]
      %v489 = vld [vmem:[%s450 + $0xd8] sm:$0xff]
      %v490 = vld [vmem:[%s450 + $0xe0] sm:$0xff]
      %v491 = vld [vmem:[%s450 + $0xe8] sm:$0xff]
      %v492 = vld [vmem:[%s450 + $0xf0] sm:$0xff]
      %v493 = vld [vmem:[%s450 + $0xf8] sm:$0xff]
      %v494 = vpack.c.bf16 %v463, %v462
      %v495 = vpack.c.bf16 %v465, %v464
      %v496 = vpack.c.bf16 %v467, %v466
      %v497 = vpack.c.bf16 %v469, %v468
      %v498 = vpack.c.bf16 %v471, %v470
      %v499 = vpack.c.bf16 %v473, %v472
      %v500 = vpack.c.bf16 %v475, %v474
      %v501 = vpack.c.bf16 %v477, %v476
      %v502 = vpack.c.bf16 %v479, %v478
      %v503 = vpack.c.bf16 %v481, %v480
      %v504 = vpack.c.bf16 %v483, %v482
      %v505 = vpack.c.bf16 %v485, %v484
      %v506 = vpack.c.bf16 %v487, %v486
      %v507 = vpack.c.bf16 %v489, %v488
      %v508 = vpack.c.bf16 %v491, %v490
      %v509 = vpack.c.bf16 %v493, %v492
      %v510 = vld [vmem:[%s2] sm:$0x3]
      %vm511 = vcmask 31744
      %v513 = vsel %vm511, %v494, 0
      %v516 = vsel %vm511, %v495, 0
      %v519 = vsel %vm511, %v496, 0
      %v522 = vsel %vm511, %v497, 0
      %v525 = vsel %vm511, %v498, 0
      %v528 = vsel %vm511, %v499, 0
      %v531 = vsel %vm511, %v500, 0
      %v534 = vsel %vm511, %v501, 0
      %v537 = vsel %vm511, %v502, 0
      %v540 = vsel %vm511, %v503, 0
      %v543 = vsel %vm511, %v504, 0
      %v546 = vsel %vm511, %v505, 0
      %v549 = vsel %vm511, %v506, 0
      %v552 = vsel %vm511, %v507, 0
      %v555 = vsel %vm511, %v508, 0
      %v558 = vsel %vm511, %v509, 0
      %vm560 = vcmask 1041408
      %v562 = vsel %vm560, %v510, 0
      %564 = vmatpush.bf16.msra.mxu0 0
      %565 = vmatpush.bf16.msra.mxu0 0
      %566 = vmatpush.bf16.msra.mxu0 0
      %567 = vmatpush.bf16.msra.mxu0 0
      %568 = vmatpush.bf16.msra.mxu0 0
      %569 = vmatpush.bf16.msra.mxu0 0
      %570 = vmatpush.bf16.msra.mxu0 0
      %571 = vmatpush.bf16.msra.mxu0 %v562
      %572 = vmatmul.bf16.gmra.mxu0 %v513
      %v573 = vpop.f32.mrf.mxu0
      %v574 = vadd.f32 0.0, %v573
      %v575 = vpop.f32.mrf.mxu0
      %v576 = vadd.f32 0.0, %v575
      %577 = vmatmul.bf16.gmra.mxu0 %v516
      %v578 = vpop.f32.mrf.mxu0
      %v579 = vadd.f32 0.0, %v578
      %v580 = vpop.f32.mrf.mxu0
      %v581 = vadd.f32 0.0, %v580
      %582 = vmatmul.bf16.gmra.mxu0 %v519
      %v583 = vpop.f32.mrf.mxu0
      %v584 = vadd.f32 0.0, %v583
      %v585 = vpop.f32.mrf.mxu0
      %v586 = vadd.f32 0.0, %v585
      %587 = vmatmul.bf16.gmra.mxu0 %v522
      %v588 = vpop.f32.mrf.mxu0
      %v589 = vadd.f32 0.0, %v588
      %v590 = vpop.f32.mrf.mxu0
      %v591 = vadd.f32 0.0, %v590
      %592 = vmatmul.bf16.gmra.mxu0 %v525
      %v593 = vpop.f32.mrf.mxu0
      %v594 = vadd.f32 0.0, %v593
      %v595 = vpop.f32.mrf.mxu0
      %v596 = vadd.f32 0.0, %v595
      %597 = vmatmul.bf16.gmra.mxu0 %v528
      %v598 = vpop.f32.mrf.mxu0
      %v599 = vadd.f32 0.0, %v598
      %v600 = vpop.f32.mrf.mxu0
      %v601 = vadd.f32 0.0, %v600
      %602 = vmatmul.bf16.gmra.mxu0 %v531
      %v603 = vpop.f32.mrf.mxu0
      %v604 = vadd.f32 0.0, %v603
      %v605 = vpop.f32.mrf.mxu0
      %v606 = vadd.f32 0.0, %v605
      %607 = vmatmul.bf16.gmra.mxu0 %v534
      %v608 = vpop.f32.mrf.mxu0
      %v609 = vadd.f32 0.0, %v608
      %v610 = vpop.f32.mrf.mxu0
      %v611 = vadd.f32 0.0, %v610
      %612 = vmatmul.bf16.gmra.mxu0 %v537
      %v613 = vpop.f32.mrf.mxu0
      %v614 = vadd.f32 0.0, %v613
      %v615 = vpop.f32.mrf.mxu0
      %v616 = vadd.f32 0.0, %v615
      %617 = vmatmul.bf16.gmra.mxu0 %v540
      %v618 = vpop.f32.mrf.mxu0
      %v619 = vadd.f32 0.0, %v618
      %v620 = vpop.f32.mrf.mxu0
      %v621 = vadd.f32 0.0, %v620
      %622 = vmatmul.bf16.gmra.mxu0 %v543
      %v623 = vpop.f32.mrf.mxu0
      %v624 = vadd.f32 0.0, %v623
      %v625 = vpop.f32.mrf.mxu0
      %v626 = vadd.f32 0.0, %v625
      %627 = vmatmul.bf16.gmra.mxu0 %v546
      %v628 = vpop.f32.mrf.mxu0
      %v629 = vadd.f32 0.0, %v628
      %v630 = vpop.f32.mrf.mxu0
      %v631 = vadd.f32 0.0, %v630
      %632 = vmatmul.bf16.gmra.mxu0 %v549
      %v633 = vpop.f32.mrf.mxu0
      %v634 = vadd.f32 0.0, %v633
      %v635 = vpop.f32.mrf.mxu0
      %v636 = vadd.f32 0.0, %v635
      %637 = vmatmul.bf16.gmra.mxu0 %v552
      %v638 = vpop.f32.mrf.mxu0
      %v639 = vadd.f32 0.0, %v638
      %v640 = vpop.f32.mrf.mxu0
      %v641 = vadd.f32 0.0, %v640
      %642 = vmatmul.bf16.gmra.mxu0 %v555
      %v643 = vpop.f32.mrf.mxu0
      %v644 = vadd.f32 0.0, %v643
      %v645 = vpop.f32.mrf.mxu0
      %v646 = vadd.f32 0.0, %v645
      %647 = vmatmul.bf16.gmra.mxu0 %v558
      %v648 = vpop.f32.mrf.mxu0
      %v649 = vadd.f32 0.0, %v648
      %v650 = vpop.f32.mrf.mxu0
      %v651 = vadd.f32 0.0, %v650
      %652 = vdwg.mxu0
      %vm653 = vcmask 64512
      %v654 = vsel %vm653, %v574, -inf
      %v655 = vsel %vm653, %v594, -inf
      %v656 = vmax.f32 %v654, %v655
      %v657 = vsel %vm653, %v614, -inf
      %v658 = vmax.f32 %v656, %v657
      %v659 = vsel %vm653, %v634, -inf
      %v660 = vmax.f32 %v658, %v659
      %v661 = vsel %vm653, %v576, -inf
      %v662 = vsel %vm653, %v596, -inf
      %v663 = vmax.f32 %v661, %v662
      %v664 = vsel %vm653, %v616, -inf
      %v665 = vmax.f32 %v663, %v664
      %v666 = vsel %vm653, %v636, -inf
      %v667 = vmax.f32 %v665, %v666
      %v668 = vsel %vm653, %v579, -inf
      %v669 = vsel %vm653, %v599, -inf
      %v670 = vmax.f32 %v668, %v669
      %v671 = vsel %vm653, %v619, -inf
      %v672 = vmax.f32 %v670, %v671
      %v673 = vsel %vm653, %v639, -inf
      %v674 = vmax.f32 %v672, %v673
      %v675 = vsel %vm653, %v581, -inf
      %v676 = vsel %vm653, %v601, -inf
      %v677 = vmax.f32 %v675, %v676
      %v678 = vsel %vm653, %v621, -inf
      %v679 = vmax.f32 %v677, %v678
      %v680 = vsel %vm653, %v641, -inf
      %v681 = vmax.f32 %v679, %v680
      %v682 = vsel %vm653, %v584, -inf
      %v683 = vsel %vm653, %v604, -inf
      %v684 = vmax.f32 %v682, %v683
      %v685 = vsel %vm653, %v624, -inf
      %v686 = vmax.f32 %v684, %v685
      %v687 = vsel %vm653, %v644, -inf
      %v688 = vmax.f32 %v686, %v687
      %v689 = vsel %vm653, %v586, -inf
      %v690 = vsel %vm653, %v606, -inf
      %v691 = vmax.f32 %v689, %v690
      %v692 = vsel %vm653, %v626, -inf
      %v693 = vmax.f32 %v691, %v692
      %v694 = vsel %vm653, %v646, -inf
      %v695 = vmax.f32 %v693, %v694
      %v696 = vsel %vm653, %v589, -inf
      %v697 = vsel %vm653, %v609, -inf
      %v698 = vmax.f32 %v696, %v697
      %v699 = vsel %vm653, %v629, -inf
      %v700 = vmax.f32 %v698, %v699
      %v701 = vsel %vm653, %v649, -inf
      %v702 = vmax.f32 %v700, %v701
      %v703 = vsel %vm653, %v591, -inf
      %v704 = vsel %vm653, %v611, -inf
      %v705 = vmax.f32 %v703, %v704
      %v706 = vsel %vm653, %v631, -inf
      %v707 = vmax.f32 %v705, %v706
      %v708 = vsel %vm653, %v651, -inf
      %v709 = vmax.f32 %v707, %v708
      %v710 = vld [vmem:[%s3] sm:$0x1]
      %v712 = vperm.slane %v710, 0
      %v714 = vadd.f32 %v660, %v712
      %v715 = vadd.f32 %v667, %v712
      %v716 = vadd.f32 %v674, %v712
      %v717 = vadd.f32 %v681, %v712
      %v718 = vadd.f32 %v688, %v712
      %v719 = vadd.f32 %v695, %v712
      %v720 = vadd.f32 %v702, %v712
      %v721 = vadd.f32 %v709, %v712
      %722 = vst.msk [vmem:[#allocation2] sm:$0xff] %vm653, 0.0
      %723 = vst.msk [vmem:[#allocation2 + $0x8] sm:$0xff] %vm653, 0.0
      %724 = vst.msk [vmem:[#allocation2 + $0x10] sm:$0xff] %vm653, 0.0
      %725 = vst.msk [vmem:[#allocation2 + $0x18] sm:$0xff] %vm653, 0.0
      %726 = vst.msk [vmem:[#allocation2 + $0x20] sm:$0xff] %vm653, 0.0
      %727 = vst.msk [vmem:[#allocation2 + $0x28] sm:$0xff] %vm653, 0.0
      %728 = vst.msk [vmem:[#allocation2 + $0x30] sm:$0xff] %vm653, 0.0
      %729 = vst.msk [vmem:[#allocation2 + $0x38] sm:$0xff] %vm653, 0.0
      %730 = vst.msk [vmem:[#allocation2 + $0x40] sm:$0xff] %vm653, 0.0
      %731 = vst.msk [vmem:[#allocation2 + $0x48] sm:$0xff] %vm653, 0.0
      %vm732 = vcmask 58368
      %733 = vst.msk [vmem:[#allocation2 + $0x50] sm:$0x3] %vm732, 0.0
      %734 = vst.msk [vmem:[#allocation2 + $0x9] sm:$0xff] %vm653, %v714
      %735 = vst.msk [vmem:[#allocation2 + $0x11] sm:$0xff] %vm653, %v715
      %736 = vst.msk [vmem:[#allocation2 + $0x19] sm:$0xff] %vm653, %v716
      %737 = vst.msk [vmem:[#allocation2 + $0x21] sm:$0xff] %vm653, %v717
      %738 = vst.msk [vmem:[#allocation2 + $0x29] sm:$0xff] %vm653, %v718
      %739 = vst.msk [vmem:[#allocation2 + $0x31] sm:$0xff] %vm653, %v719
      %740 = vst.msk [vmem:[#allocation2 + $0x39] sm:$0xff] %vm653, %v720
      %741 = vst.msk [vmem:[#allocation2 + $0x41] sm:$0xff] %vm653, %v721
      %v742 = vlaneseq
      %v743 = vshrl.u32 %v742, 7
      %v744 = vadd.s32 %v743, 8
      %v745 = vadd.s32 %v743, 16
      %v746 = vadd.s32 %v743, 24
      %v747 = vadd.s32 %v743, 32
      %v748 = vadd.s32 %v743, 40
      %v749 = vadd.s32 %v743, 48
      %v750 = vadd.s32 %v743, 56
      %vm751 = vcmp.lt.s32.totalorder %v743, 0
      %v752 = vsub.s32 0, %v743
      %v753 = vsel %vm751, %v752, %v743
      %v754 = vshrl.u32 %v753, 3
      %v755 = vand.u32 %v753, 7
      %v756 = vsub.s32 0, %v755
      %v757 = vsel %vm751, %v756, %v755
      %vm758 = vcmp.lt.s32.totalorder %v744, 0
      %v759 = vsub.s32 0, %v744
      %v760 = vsel %vm758, %v759, %v744
      %v761 = vshrl.u32 %v760, 3
      %v762 = vand.u32 %v760, 7
      %v763 = vsub.s32 0, %v762
      %v764 = vsel %vm758, %v763, %v762
      %vm765 = vcmp.lt.s32.totalorder %v745, 0
      %v766 = vsub.s32 0, %v745
      %v767 = vsel %vm765, %v766, %v745
      %v768 = vshrl.u32 %v767, 3
      %v769 = vand.u32 %v767, 7
      %v770 = vsub.s32 0, %v769
      %v771 = vsel %vm765, %v770, %v769
      %vm772 = vcmp.lt.s32.totalorder %v746, 0
      %v773 = vsub.s32 0, %v746
      %v774 = vsel %vm772, %v773, %v746
      %v775 = vshrl.u32 %v774, 3
      %v776 = vand.u32 %v774, 7
      %v777 = vsub.s32 0, %v776
      %v778 = vsel %vm772, %v777, %v776
      %vm779 = vcmp.lt.s32.totalorder %v747, 0
      %v780 = vsub.s32 0, %v747
      %v781 = vsel %vm779, %v780, %v747
      %v782 = vshrl.u32 %v781, 3
      %v783 = vand.u32 %v781, 7
      %v784 = vsub.s32 0, %v783
      %v785 = vsel %vm779, %v784, %v783
      %vm786 = vcmp.lt.s32.totalorder %v748, 0
      %v787 = vsub.s32 0, %v748
      %v788 = vsel %vm786, %v787, %v748
      %v789 = vshrl.u32 %v788, 3
      %v790 = vand.u32 %v788, 7
      %v791 = vsub.s32 0, %v790
      %v792 = vsel %vm786, %v791, %v790
      %vm793 = vcmp.lt.s32.totalorder %v749, 0
      %v794 = vsub.s32 0, %v749
      %v795 = vsel %vm793, %v794, %v749
      %v796 = vshrl.u32 %v795, 3
      %v797 = vand.u32 %v795, 7
      %v798 = vsub.s32 0, %v797
      %v799 = vsel %vm793, %v798, %v797
      %vm800 = vcmp.lt.s32.totalorder %v750, 0
      %v801 = vsub.s32 0, %v750
      %v802 = vsel %vm800, %v801, %v750
      %v803 = vshrl.u32 %v802, 3
      %v804 = vand.u32 %v802, 7
      %v805 = vsub.s32 0, %v804
      %v806 = vsel %vm800, %v805, %v804
      %vm807 = vcmp.ne.s32.totalorder %v757, 0
      %vm808 = vcmp.ne.s32.totalorder %v764, 0
      %vm809 = vcmp.ne.s32.totalorder %v771, 0
      %vm810 = vcmp.ne.s32.totalorder %v778, 0
      %vm811 = vcmp.ne.s32.totalorder %v785, 0
      %vm812 = vcmp.ne.s32.totalorder %v792, 0
      %vm813 = vcmp.ne.s32.totalorder %v799, 0
      %vm814 = vcmp.ne.s32.totalorder %v806, 0
      %vm815 = vcmp.lt.s32.totalorder %v757, 0
      %vm816 = vcmp.lt.s32.totalorder %v764, 0
      %vm817 = vcmp.lt.s32.totalorder %v771, 0
      %vm818 = vcmp.lt.s32.totalorder %v778, 0
      %vm819 = vcmp.lt.s32.totalorder %v785, 0
      %vm820 = vcmp.lt.s32.totalorder %v792, 0
      %vm821 = vcmp.lt.s32.totalorder %v799, 0
      %vm822 = vcmp.lt.s32.totalorder %v806, 0
      %vm823 = vmand %vm815, %vm807
      %vm824 = vmand %vm816, %vm808
      %vm825 = vmand %vm817, %vm809
      %vm826 = vmand %vm818, %vm810
      %vm827 = vmand %vm819, %vm811
      %vm828 = vmand %vm820, %vm812
      %vm829 = vmand %vm821, %vm813
      %vm830 = vmand %vm822, %vm814
      %v831 = vadd.s32 %v757, 8
      %v832 = vadd.s32 %v764, 8
      %v833 = vadd.s32 %v771, 8
      %v834 = vadd.s32 %v778, 8
      %v835 = vadd.s32 %v785, 8
      %v836 = vadd.s32 %v792, 8
      %v837 = vadd.s32 %v799, 8
      %v838 = vadd.s32 %v806, 8
      %v839 = vsel %vm823, %v831, %v757
      %v840 = vsel %vm824, %v832, %v764
      %v841 = vsel %vm825, %v833, %v771
      %v842 = vsel %vm826, %v834, %v778
      %v843 = vsel %vm827, %v835, %v785
      %v844 = vsel %vm828, %v836, %v792
      %v845 = vsel %vm829, %v837, %v799
      %v846 = vsel %vm830, %v838, %v806
      %vm847 = vcmp.ge.s32.totalorder %v839, 1
      %vm848 = vcmp.ge.s32.totalorder %v840, 1
      %vm849 = vcmp.ge.s32.totalorder %v841, 1
      %vm850 = vcmp.ge.s32.totalorder %v842, 1
      %vm851 = vcmp.ge.s32.totalorder %v843, 1
      %vm852 = vcmp.ge.s32.totalorder %v844, 1
      %vm853 = vcmp.ge.s32.totalorder %v845, 1
      %vm854 = vcmp.ge.s32.totalorder %v846, 1
      %vm855 = vcmp.le.s32.totalorder %v839, 6
      %vm856 = vcmp.le.s32.totalorder %v840, 6
      %vm857 = vcmp.le.s32.totalorder %v841, 6
      %vm858 = vcmp.le.s32.totalorder %v842, 6
      %vm859 = vcmp.le.s32.totalorder %v843, 6
      %vm860 = vcmp.le.s32.totalorder %v844, 6
      %vm861 = vcmp.le.s32.totalorder %v845, 6
      %vm862 = vcmp.le.s32.totalorder %v846, 6
      %v863 = vld [vmem:[%s4] sm:$0xf]
      %v864 = vld [vmem:[%s4 + $0x4] sm:$0xf]
      %v865 = vld [vmem:[%s4 + $0x8] sm:$0xf]
      %v866 = vld [vmem:[%s4 + $0xc] sm:$0xf]
      %v867 = vld [vmem:[%s4 + $0x10] sm:$0xf]
      %v868 = vld [vmem:[%s4 + $0x14] sm:$0xf]
      %v869 = vld [vmem:[%s4 + $0x18] sm:$0xf]
      %v870 = vld [vmem:[%s4 + $0x1c] sm:$0xf]
      %v871 = vld [vmem:[%s4 + $0x20] sm:$0xf]
      %v872 = vld [vmem:[#allocation2] sm:$0xff]
      %v873 = vld [vmem:[#allocation2 + $0x8] sm:$0xff]
      %v874 = vld [vmem:[#allocation2 + $0x10] sm:$0xff]
      %v875 = vld [vmem:[#allocation2 + $0x18] sm:$0xff]
      %v876 = vld [vmem:[#allocation2 + $0x20] sm:$0xff]
      %v877 = vld [vmem:[#allocation2 + $0x28] sm:$0xff]
      %v878 = vld [vmem:[#allocation2 + $0x30] sm:$0xff]
      %v879 = vld [vmem:[#allocation2 + $0x38] sm:$0xff]
      %v880 = vsel %vm847, 1, 0
      %v881 = vsel %vm848, 1, 0
      %v882 = vsel %vm849, 1, 0
      %v883 = vsel %vm850, 1, 0
      %v884 = vsel %vm851, 1, 0
      %v885 = vsel %vm852, 1, 0
      %v886 = vsel %vm853, 1, 0
      %v887 = vsel %vm854, 1, 0
      %vm888 = vcmp.eq.s32.totalorder %v880, 1
      %vm889 = vcmp.eq.s32.totalorder %v881, 1
      %vm890 = vcmp.eq.s32.totalorder %v882, 1
      %vm891 = vcmp.eq.s32.totalorder %v883, 1
      %vm892 = vcmp.eq.s32.totalorder %v884, 1
      %vm893 = vcmp.eq.s32.totalorder %v885, 1
      %vm894 = vcmp.eq.s32.totalorder %v886, 1
      %vm895 = vcmp.eq.s32.totalorder %v887, 1
      %v896 = vsel %vm888, %v872, 0.0
      %v897 = vsel %vm889, %v873, 0.0
      %v898 = vsel %vm890, %v874, 0.0
      %v899 = vsel %vm891, %v875, 0.0
      %v900 = vsel %vm892, %v876, 0.0
      %v901 = vsel %vm893, %v877, 0.0
      %v902 = vsel %vm894, %v878, 0.0
      %v903 = vsel %vm895, %v879, 0.0
      %v904 = vpack.c.bf16 %v897, %v896
      %v905 = vpack.c.bf16 %v899, %v898
      %v906 = vpack.c.bf16 %v901, %v900
      %v907 = vpack.c.bf16 %v903, %v902
      %v908 = vld [vmem:[#allocation2 + $0x1] sm:$0xff]
      %v909 = vld [vmem:[#allocation2 + $0x9] sm:$0xff]
      %v910 = vld [vmem:[#allocation2 + $0x11] sm:$0xff]
      %v911 = vld [vmem:[#allocation2 + $0x19] sm:$0xff]
      %v912 = vld [vmem:[#allocation2 + $0x21] sm:$0xff]
      %v913 = vld [vmem:[#allocation2 + $0x29] sm:$0xff]
      %v914 = vld [vmem:[#allocation2 + $0x31] sm:$0xff]
      %v915 = vld [vmem:[#allocation2 + $0x39] sm:$0xff]
      %v916 = vpack.c.bf16 %v909, %v908
      %v917 = vpack.c.bf16 %v911, %v910
      %v918 = vpack.c.bf16 %v913, %v912
      %v919 = vpack.c.bf16 %v915, %v914
      %v921 = vsel %vm653, %v916, 0
      %v924 = vsel %vm653, %v917, 0
      %v927 = vsel %vm653, %v918, 0
      %v930 = vsel %vm653, %v919, 0
      %vm932 = vcmask 1043456
      %v934 = vsel %vm932, %v864, 0
      %936 = vmatpush.bf16.msra.mxu0 0
      %937 = vmatpush.bf16.msra.mxu0 0
      %938 = vmatpush.bf16.msra.mxu0 0
      %939 = vmatpush.bf16.msra.mxu0 0
      %940 = vmatpush.bf16.msra.mxu0 0
      %941 = vmatpush.bf16.msra.mxu0 0
      %942 = vmatpush.bf16.msra.mxu0 0
      %943 = vmatpush.bf16.msra.mxu0 %v934
      %944 = vmatmul.bf16.gmra.mxu0 %v921
      %v945 = vpop.f32.mrf.mxu0
      %v946 = vadd.f32 0.0, %v945
      %v947 = vpop.f32.mrf.mxu0
      %v948 = vadd.f32 0.0, %v947
      %949 = vmatmul.bf16.gmra.mxu0 %v924
      %v950 = vpop.f32.mrf.mxu0
      %v951 = vadd.f32 0.0, %v950
      %v952 = vpop.f32.mrf.mxu0
      %v953 = vadd.f32 0.0, %v952
      %954 = vmatmul.bf16.gmra.mxu0 %v927
      %v955 = vpop.f32.mrf.mxu0
      %v956 = vadd.f32 0.0, %v955
      %v957 = vpop.f32.mrf.mxu0
      %v958 = vadd.f32 0.0, %v957
      %959 = vmatmul.bf16.gmra.mxu0 %v930
      %v960 = vpop.f32.mrf.mxu0
      %v961 = vadd.f32 0.0, %v960
      %v962 = vpop.f32.mrf.mxu0
      %v963 = vadd.f32 0.0, %v962
      %964 = vdwg.mxu0
      %v966 = vsel %vm653, %v904, 0
      %v969 = vsel %vm653, %v905, 0
      %v972 = vsel %vm653, %v906, 0
      %v975 = vsel %vm653, %v907, 0
      %v978 = vsel %vm932, %v863, 0
      %980 = vmatpush.bf16.msra.mxu0 0
      %981 = vmatpush.bf16.msra.mxu0 0
      %982 = vmatpush.bf16.msra.mxu0 0
      %983 = vmatpush.bf16.msra.mxu0 0
      %984 = vmatpush.bf16.msra.mxu0 0
      %985 = vmatpush.bf16.msra.mxu0 0
      %986 = vmatpush.bf16.msra.mxu0 0
      %987 = vmatpush.bf16.msra.mxu0 %v978
      %988 = vmatmul.bf16.gmra.mxu0 %v966
      %v989 = vpop.f32.mrf.mxu0
      %v990 = vadd.f32 %v946, %v989
      %v991 = vpop.f32.mrf.mxu0
      %v992 = vadd.f32 %v948, %v991
      %993 = vmatmul.bf16.gmra.mxu0 %v969
      %v994 = vpop.f32.mrf.mxu0
      %v995 = vadd.f32 %v951, %v994
      %v996 = vpop.f32.mrf.mxu0
      %v997 = vadd.f32 %v953, %v996
      %998 = vmatmul.bf16.gmra.mxu0 %v972
      %v999 = vpop.f32.mrf.mxu0
      %v1000 = vadd.f32 %v956, %v999
      %v1001 = vpop.f32.mrf.mxu0
      %v1002 = vadd.f32 %v958, %v1001
      %1003 = vmatmul.bf16.gmra.mxu0 %v975
      %v1004 = vpop.f32.mrf.mxu0
      %v1005 = vadd.f32 %v961, %v1004
      %v1006 = vpop.f32.mrf.mxu0
      %v1007 = vadd.f32 %v963, %v1006
      %1008 = vdwg.mxu0
      %v1009 = vld [vmem:[#allocation2 + $0x2] sm:$0xff]
      %v1010 = vld [vmem:[#allocation2 + $0xa] sm:$0xff]
      %v1011 = vld [vmem:[#allocation2 + $0x12] sm:$0xff]
      %v1012 = vld [vmem:[#allocation2 + $0x1a] sm:$0xff]
      %v1013 = vld [vmem:[#allocation2 + $0x22] sm:$0xff]
      %v1014 = vld [vmem:[#allocation2 + $0x2a] sm:$0xff]
      %v1015 = vld [vmem:[#allocation2 + $0x32] sm:$0xff]
      %v1016 = vld [vmem:[#allocation2 + $0x3a] sm:$0xff]
      %v1017 = vsel %vm855, 1, 0
      %v1018 = vsel %vm856, 1, 0
      %v1019 = vsel %vm857, 1, 0
      %v1020 = vsel %vm858, 1, 0
      %v1021 = vsel %vm859, 1, 0
      %v1022 = vsel %vm860, 1, 0
      %v1023 = vsel %vm861, 1, 0
      %v1024 = vsel %vm862, 1, 0
      %vm1025 = vcmp.eq.s32.totalorder %v1017, 1
      %vm1026 = vcmp.eq.s32.totalorder %v1018, 1
      %vm1027 = vcmp.eq.s32.totalorder %v1019, 1
      %vm1028 = vcmp.eq.s32.totalorder %v1020, 1
      %vm1029 = vcmp.eq.s32.totalorder %v1021, 1
      %vm1030 = vcmp.eq.s32.totalorder %v1022, 1
      %vm1031 = vcmp.eq.s32.totalorder %v1023, 1
      %vm1032 = vcmp.eq.s32.totalorder %v1024, 1
      %v1033 = vsel %vm1025, %v1009, 0.0
      %v1034 = vsel %vm1026, %v1010, 0.0
      %v1035 = vsel %vm1027, %v1011, 0.0
      %v1036 = vsel %vm1028, %v1012, 0.0
      %v1037 = vsel %vm1029, %v1013, 0.0
      %v1038 = vsel %vm1030, %v1014, 0.0
      %v1039 = vsel %vm1031, %v1015, 0.0
      %v1040 = vsel %vm1032, %v1016, 0.0
      %v1041 = vpack.c.bf16 %v1034, %v1033
      %v1042 = vpack.c.bf16 %v1036, %v1035
      %v1043 = vpack.c.bf16 %v1038, %v1037
      %v1044 = vpack.c.bf16 %v1040, %v1039
      %v1046 = vsel %vm653, %v1041, 0
      %v1049 = vsel %vm653, %v1042, 0
      %v1052 = vsel %vm653, %v1043, 0
      %v1055 = vsel %vm653, %v1044, 0
      %v1058 = vsel %vm932, %v865, 0
      %1060 = vmatpush.bf16.msra.mxu0 0
      %1061 = vmatpush.bf16.msra.mxu0 0
      %1062 = vmatpush.bf16.msra.mxu0 0
      %1063 = vmatpush.bf16.msra.mxu0 0
      %1064 = vmatpush.bf16.msra.mxu0 0
      %1065 = vmatpush.bf16.msra.mxu0 0
      %1066 = vmatpush.bf16.msra.mxu0 0
      %1067 = vmatpush.bf16.msra.mxu0 %v1058
      %1068 = vmatmul.bf16.gmra.mxu0 %v1046
      %v1069 = vpop.f32.mrf.mxu0
      %v1070 = vadd.f32 0.0, %v1069
      %v1071 = vpop.f32.mrf.mxu0
      %v1072 = vadd.f32 0.0, %v1071
      %1073 = vmatmul.bf16.gmra.mxu0 %v1049
      %v1074 = vpop.f32.mrf.mxu0
      %v1075 = vadd.f32 0.0, %v1074
      %v1076 = vpop.f32.mrf.mxu0
      %v1077 = vadd.f32 0.0, %v1076
      %1078 = vmatmul.bf16.gmra.mxu0 %v1052
      %v1079 = vpop.f32.mrf.mxu0
      %v1080 = vadd.f32 0.0, %v1079
      %v1081 = vpop.f32.mrf.mxu0
      %v1082 = vadd.f32 0.0, %v1081
      %1083 = vmatmul.bf16.gmra.mxu0 %v1055
      %v1084 = vpop.f32.mrf.mxu0
      %v1085 = vadd.f32 0.0, %v1084
      %v1086 = vpop.f32.mrf.mxu0
      %v1087 = vadd.f32 0.0, %v1086
      %1088 = vdwg.mxu0
      %v1089 = vadd.f32 %v990, %v1070
      %v1090 = vadd.f32 %v992, %v1072
      %v1091 = vadd.f32 %v995, %v1075
      %v1092 = vadd.f32 %v997, %v1077
      %v1093 = vadd.f32 %v1000, %v1080
      %v1094 = vadd.f32 %v1002, %v1082
      %v1095 = vadd.f32 %v1005, %v1085
      %v1096 = vadd.f32 %v1007, %v1087
      %v1097 = vld [vmem:[#allocation2 + $0x8] sm:$0xff]
      %v1098 = vld [vmem:[#allocation2 + $0x10] sm:$0xff]
      %v1099 = vld [vmem:[#allocation2 + $0x18] sm:$0xff]
      %v1100 = vld [vmem:[#allocation2 + $0x20] sm:$0xff]
      %v1101 = vld [vmem:[#allocation2 + $0x28] sm:$0xff]
      %v1102 = vld [vmem:[#allocation2 + $0x30] sm:$0xff]
      %v1103 = vld [vmem:[#allocation2 + $0x38] sm:$0xff]
      %v1104 = vld [vmem:[#allocation2 + $0x40] sm:$0xff]
      %v1105 = vsel %vm888, %v1097, 0.0
      %v1106 = vsel %vm889, %v1098, 0.0
      %v1107 = vsel %vm890, %v1099, 0.0
      %v1108 = vsel %vm891, %v1100, 0.0
      %v1109 = vsel %vm892, %v1101, 0.0
      %v1110 = vsel %vm893, %v1102, 0.0
      %v1111 = vsel %vm894, %v1103, 0.0
      %v1112 = vsel %vm895, %v1104, 0.0
      %v1113 = vpack.c.bf16 %v1106, %v1105
      %v1114 = vpack.c.bf16 %v1108, %v1107
      %v1115 = vpack.c.bf16 %v1110, %v1109
      %v1116 = vpack.c.bf16 %v1112, %v1111
      %v1118 = vsel %vm653, %v1113, 0
      %v1121 = vsel %vm653, %v1114, 0
      %v1124 = vsel %vm653, %v1115, 0
      %v1127 = vsel %vm653, %v1116, 0
      %v1130 = vsel %vm932, %v866, 0
      %1132 = vmatpush.bf16.msra.mxu0 0
      %1133 = vmatpush.bf16.msra.mxu0 0
      %1134 = vmatpush.bf16.msra.mxu0 0
      %1135 = vmatpush.bf16.msra.mxu0 0
      %1136 = vmatpush.bf16.msra.mxu0 0
      %1137 = vmatpush.bf16.msra.mxu0 0
      %1138 = vmatpush.bf16.msra.mxu0 0
      %1139 = vmatpush.bf16.msra.mxu0 %v1130
      %1140 = vmatmul.bf16.gmra.mxu0 %v1118
      %v1141 = vpop.f32.mrf.mxu0
      %v1142 = vadd.f32 0.0, %v1141
      %v1143 = vpop.f32.mrf.mxu0
      %v1144 = vadd.f32 0.0, %v1143
      %1145 = vmatmul.bf16.gmra.mxu0 %v1121
      %v1146 = vpop.f32.mrf.mxu0
      %v1147 = vadd.f32 0.0, %v1146
      %v1148 = vpop.f32.mrf.mxu0
      %v1149 = vadd.f32 0.0, %v1148
      %1150 = vmatmul.bf16.gmra.mxu0 %v1124
      %v1151 = vpop.f32.mrf.mxu0
      %v1152 = vadd.f32 0.0, %v1151
      %v1153 = vpop.f32.mrf.mxu0
      %v1154 = vadd.f32 0.0, %v1153
      %1155 = vmatmul.bf16.gmra.mxu0 %v1127
      %v1156 = vpop.f32.mrf.mxu0
      %v1157 = vadd.f32 0.0, %v1156
      %v1158 = vpop.f32.mrf.mxu0
      %v1159 = vadd.f32 0.0, %v1158
      %1160 = vdwg.mxu0
      %v1161 = vadd.f32 %v1089, %v1142
      %v1162 = vadd.f32 %v1090, %v1144
      %v1163 = vadd.f32 %v1091, %v1147
      %v1164 = vadd.f32 %v1092, %v1149
      %v1165 = vadd.f32 %v1093, %v1152
      %v1166 = vadd.f32 %v1094, %v1154
      %v1167 = vadd.f32 %v1095, %v1157
      %v1168 = vadd.f32 %v1096, %v1159
      %v1169 = vld [vmem:[#allocation2 + $0x9] sm:$0xff]
      %v1170 = vld [vmem:[#allocation2 + $0x11] sm:$0xff]
      %v1171 = vld [vmem:[#allocation2 + $0x19] sm:$0xff]
      %v1172 = vld [vmem:[#allocation2 + $0x21] sm:$0xff]
      %v1173 = vld [vmem:[#allocation2 + $0x29] sm:$0xff]
      %v1174 = vld [vmem:[#allocation2 + $0x31] sm:$0xff]
      %v1175 = vld [vmem:[#allocation2 + $0x39] sm:$0xff]
      %v1176 = vld [vmem:[#allocation2 + $0x41] sm:$0xff]
      %v1177 = vpack.c.bf16 %v1170, %v1169
      %v1178 = vpack.c.bf16 %v1172, %v1171
      %v1179 = vpack.c.bf16 %v1174, %v1173
      %v1180 = vpack.c.bf16 %v1176, %v1175
      %v1182 = vsel %vm653, %v1177, 0
      %v1185 = vsel %vm653, %v1178, 0
      %v1188 = vsel %vm653, %v1179, 0
      %v1191 = vsel %vm653, %v1180, 0
      %v1194 = vsel %vm932, %v867, 0
      %1196 = vmatpush.bf16.msra.mxu0 0
      %1197 = vmatpush.bf16.msra.mxu0 0
      %1198 = vmatpush.bf16.msra.mxu0 0
      %1199 = vmatpush.bf16.msra.mxu0 0
      %1200 = vmatpush.bf16.msra.mxu0 0
      %1201 = vmatpush.bf16.msra.mxu0 0
      %1202 = vmatpush.bf16.msra.mxu0 0
      %1203 = vmatpush.bf16.msra.mxu0 %v1194
      %1204 = vmatmul.bf16.gmra.mxu0 %v1182
      %v1205 = vpop.f32.mrf.mxu0
      %v1206 = vadd.f32 0.0, %v1205
      %v1207 = vpop.f32.mrf.mxu0
      %v1208 = vadd.f32 0.0, %v1207
      %1209 = vmatmul.bf16.gmra.mxu0 %v1185
      %v1210 = vpop.f32.mrf.mxu0
      %v1211 = vadd.f32 0.0, %v1210
      %v1212 = vpop.f32.mrf.mxu0
      %v1213 = vadd.f32 0.0, %v1212
      %1214 = vmatmul.bf16.gmra.mxu0 %v1188
      %v1215 = vpop.f32.mrf.mxu0
      %v1216 = vadd.f32 0.0, %v1215
      %v1217 = vpop.f32.mrf.mxu0
      %v1218 = vadd.f32 0.0, %v1217
      %1219 = vmatmul.bf16.gmra.mxu0 %v1191
      %v1220 = vpop.f32.mrf.mxu0
      %v1221 = vadd.f32 0.0, %v1220
      %v1222 = vpop.f32.mrf.mxu0
      %v1223 = vadd.f32 0.0, %v1222
      %1224 = vdwg.mxu0
      %v1225 = vadd.f32 %v1161, %v1206
      %v1226 = vadd.f32 %v1162, %v1208
      %v1227 = vadd.f32 %v1163, %v1211
      %v1228 = vadd.f32 %v1164, %v1213
      %v1229 = vadd.f32 %v1165, %v1216
      %v1230 = vadd.f32 %v1166, %v1218
      %v1231 = vadd.f32 %v1167, %v1221
      %v1232 = vadd.f32 %v1168, %v1223
      %v1233 = vld [vmem:[#allocation2 + $0xa] sm:$0xff]
      %v1234 = vld [vmem:[#allocation2 + $0x12] sm:$0xff]
      %v1235 = vld [vmem:[#allocation2 + $0x1a] sm:$0xff]
      %v1236 = vld [vmem:[#allocation2 + $0x22] sm:$0xff]
      %v1237 = vld [vmem:[#allocation2 + $0x2a] sm:$0xff]
      %v1238 = vld [vmem:[#allocation2 + $0x32] sm:$0xff]
      %v1239 = vld [vmem:[#allocation2 + $0x3a] sm:$0xff]
      %v1240 = vld [vmem:[#allocation2 + $0x42] sm:$0xff]
      %v1241 = vsel %vm1025, %v1233, 0.0
      %v1242 = vsel %vm1026, %v1234, 0.0
      %v1243 = vsel %vm1027, %v1235, 0.0
      %v1244 = vsel %vm1028, %v1236, 0.0
      %v1245 = vsel %vm1029, %v1237, 0.0
      %v1246 = vsel %vm1030, %v1238, 0.0
      %v1247 = vsel %vm1031, %v1239, 0.0
      %v1248 = vsel %vm1032, %v1240, 0.0
      %v1249 = vpack.c.bf16 %v1242, %v1241
      %v1250 = vpack.c.bf16 %v1244, %v1243
      %v1251 = vpack.c.bf16 %v1246, %v1245
      %v1252 = vpack.c.bf16 %v1248, %v1247
      %v1254 = vsel %vm653, %v1249, 0
      %v1257 = vsel %vm653, %v1250, 0
      %v1260 = vsel %vm653, %v1251, 0
      %v1263 = vsel %vm653, %v1252, 0
      %v1266 = vsel %vm932, %v868, 0
      %1268 = vmatpush.bf16.msra.mxu0 0
      %1269 = vmatpush.bf16.msra.mxu0 0
      %1270 = vmatpush.bf16.msra.mxu0 0
      %1271 = vmatpush.bf16.msra.mxu0 0
      %1272 = vmatpush.bf16.msra.mxu0 0
      %1273 = vmatpush.bf16.msra.mxu0 0
      %1274 = vmatpush.bf16.msra.mxu0 0
      %1275 = vmatpush.bf16.msra.mxu0 %v1266
      %1276 = vmatmul.bf16.gmra.mxu0 %v1254
      %v1277 = vpop.f32.mrf.mxu0
      %v1278 = vadd.f32 0.0, %v1277
      %v1279 = vpop.f32.mrf.mxu0
      %v1280 = vadd.f32 0.0, %v1279
      %1281 = vmatmul.bf16.gmra.mxu0 %v1257
      %v1282 = vpop.f32.mrf.mxu0
      %v1283 = vadd.f32 0.0, %v1282
      %v1284 = vpop.f32.mrf.mxu0
      %v1285 = vadd.f32 0.0, %v1284
      %1286 = vmatmul.bf16.gmra.mxu0 %v1260
      %v1287 = vpop.f32.mrf.mxu0
      %v1288 = vadd.f32 0.0, %v1287
      %v1289 = vpop.f32.mrf.mxu0
      %v1290 = vadd.f32 0.0, %v1289
      %1291 = vmatmul.bf16.gmra.mxu0 %v1263
      %v1292 = vpop.f32.mrf.mxu0
      %v1293 = vadd.f32 0.0, %v1292
      %v1294 = vpop.f32.mrf.mxu0
      %v1295 = vadd.f32 0.0, %v1294
      %1296 = vdwg.mxu0
      %v1297 = vadd.f32 %v1225, %v1278
      %v1298 = vadd.f32 %v1226, %v1280
      %v1299 = vadd.f32 %v1227, %v1283
      %v1300 = vadd.f32 %v1228, %v1285
      %v1301 = vadd.f32 %v1229, %v1288
      %v1302 = vadd.f32 %v1230, %v1290
      %v1303 = vadd.f32 %v1231, %v1293
      %v1304 = vadd.f32 %v1232, %v1295
      %v1305 = vld [vmem:[#allocation2 + $0x10] sm:$0xff]
      %v1306 = vld [vmem:[#allocation2 + $0x18] sm:$0xff]
      %v1307 = vld [vmem:[#allocation2 + $0x20] sm:$0xff]
      %v1308 = vld [vmem:[#allocation2 + $0x28] sm:$0xff]
      %v1309 = vld [vmem:[#allocation2 + $0x30] sm:$0xff]
      %v1310 = vld [vmem:[#allocation2 + $0x38] sm:$0xff]
      %v1311 = vld [vmem:[#allocation2 + $0x40] sm:$0xff]
      %v1312 = vld [vmem:[#allocation2 + $0x48] sm:$0xff]
      %v1313 = vsel %vm888, %v1305, 0.0
      %v1314 = vsel %vm889, %v1306, 0.0
      %v1315 = vsel %vm890, %v1307, 0.0
      %v1316 = vsel %vm891, %v1308, 0.0
      %v1317 = vsel %vm892, %v1309, 0.0
      %v1318 = vsel %vm893, %v1310, 0.0
      %v1319 = vsel %vm894, %v1311, 0.0
      %v1320 = vsel %vm895, %v1312, 0.0
      %v1321 = vpack.c.bf16 %v1314, %v1313
      %v1322 = vpack.c.bf16 %v1316, %v1315
      %v1323 = vpack.c.bf16 %v1318, %v1317
      %v1324 = vpack.c.bf16 %v1320, %v1319
      %v1326 = vsel %vm653, %v1321, 0
      %v1329 = vsel %vm653, %v1322, 0
      %v1332 = vsel %vm653, %v1323, 0
      %v1335 = vsel %vm653, %v1324, 0
      %v1338 = vsel %vm932, %v869, 0
      %1340 = vmatpush.bf16.msra.mxu0 0
      %1341 = vmatpush.bf16.msra.mxu0 0
      %1342 = vmatpush.bf16.msra.mxu0 0
      %1343 = vmatpush.bf16.msra.mxu0 0
      %1344 = vmatpush.bf16.msra.mxu0 0
      %1345 = vmatpush.bf16.msra.mxu0 0
      %1346 = vmatpush.bf16.msra.mxu0 0
      %1347 = vmatpush.bf16.msra.mxu0 %v1338
      %1348 = vmatmul.bf16.gmra.mxu0 %v1326
      %v1349 = vpop.f32.mrf.mxu0
      %v1350 = vadd.f32 0.0, %v1349
      %v1351 = vpop.f32.mrf.mxu0
      %v1352 = vadd.f32 0.0, %v1351
      %1353 = vmatmul.bf16.gmra.mxu0 %v1329
      %v1354 = vpop.f32.mrf.mxu0
      %v1355 = vadd.f32 0.0, %v1354
      %v1356 = vpop.f32.mrf.mxu0
      %v1357 = vadd.f32 0.0, %v1356
      %1358 = vmatmul.bf16.gmra.mxu0 %v1332
      %v1359 = vpop.f32.mrf.mxu0
      %v1360 = vadd.f32 0.0, %v1359
      %v1361 = vpop.f32.mrf.mxu0
      %v1362 = vadd.f32 0.0, %v1361
      %1363 = vmatmul.bf16.gmra.mxu0 %v1335
      %v1364 = vpop.f32.mrf.mxu0
      %v1365 = vadd.f32 0.0, %v1364
      %v1366 = vpop.f32.mrf.mxu0
      %v1367 = vadd.f32 0.0, %v1366
      %1368 = vdwg.mxu0
      %v1369 = vadd.f32 %v1297, %v1350
      %v1370 = vadd.f32 %v1298, %v1352
      %v1371 = vadd.f32 %v1299, %v1355
      %v1372 = vadd.f32 %v1300, %v1357
      %v1373 = vadd.f32 %v1301, %v1360
      %v1374 = vadd.f32 %v1302, %v1362
      %v1375 = vadd.f32 %v1303, %v1365
      %v1376 = vadd.f32 %v1304, %v1367
      %v1377 = vld [vmem:[#allocation2 + $0x11] sm:$0xff]
      %v1378 = vld [vmem:[#allocation2 + $0x19] sm:$0xff]
      %v1379 = vld [vmem:[#allocation2 + $0x21] sm:$0xff]
      %v1380 = vld [vmem:[#allocation2 + $0x29] sm:$0xff]
      %v1381 = vld [vmem:[#allocation2 + $0x31] sm:$0xff]
      %v1382 = vld [vmem:[#allocation2 + $0x39] sm:$0xff]
      %v1383 = vld [vmem:[#allocation2 + $0x41] sm:$0xff]
      %v1384 = vld [vmem:[#allocation2 + $0x49] sm:$0xff]
      %v1385 = vpack.c.bf16 %v1378, %v1377
      %v1386 = vpack.c.bf16 %v1380, %v1379
      %v1387 = vpack.c.bf16 %v1382, %v1381
      %v1388 = vpack.c.bf16 %v1384, %v1383
      %v1390 = vsel %vm653, %v1385, 0
      %v1393 = vsel %vm653, %v1386, 0
      %v1396 = vsel %vm653, %v1387, 0
      %v1399 = vsel %vm653, %v1388, 0
      %v1402 = vsel %vm932, %v870, 0
      %1404 = vmatpush.bf16.msra.mxu0 0
      %1405 = vmatpush.bf16.msra.mxu0 0
      %1406 = vmatpush.bf16.msra.mxu0 0
      %1407 = vmatpush.bf16.msra.mxu0 0
      %1408 = vmatpush.bf16.msra.mxu0 0
      %1409 = vmatpush.bf16.msra.mxu0 0
      %1410 = vmatpush.bf16.msra.mxu0 0
      %1411 = vmatpush.bf16.msra.mxu0 %v1402
      %1412 = vmatmul.bf16.gmra.mxu0 %v1390
      %v1413 = vpop.f32.mrf.mxu0
      %v1414 = vadd.f32 0.0, %v1413
      %v1415 = vpop.f32.mrf.mxu0
      %v1416 = vadd.f32 0.0, %v1415
      %1417 = vmatmul.bf16.gmra.mxu0 %v1393
      %v1418 = vpop.f32.mrf.mxu0
      %v1419 = vadd.f32 0.0, %v1418
      %v1420 = vpop.f32.mrf.mxu0
      %v1421 = vadd.f32 0.0, %v1420
      %1422 = vmatmul.bf16.gmra.mxu0 %v1396
      %v1423 = vpop.f32.mrf.mxu0
      %v1424 = vadd.f32 0.0, %v1423
      %v1425 = vpop.f32.mrf.mxu0
      %v1426 = vadd.f32 0.0, %v1425
      %1427 = vmatmul.bf16.gmra.mxu0 %v1399
      %v1428 = vpop.f32.mrf.mxu0
      %v1429 = vadd.f32 0.0, %v1428
      %v1430 = vpop.f32.mrf.mxu0
      %v1431 = vadd.f32 0.0, %v1430
      %1432 = vdwg.mxu0
      %v1433 = vadd.f32 %v1369, %v1414
      %v1434 = vadd.f32 %v1370, %v1416
      %v1435 = vadd.f32 %v1371, %v1419
      %v1436 = vadd.f32 %v1372, %v1421
      %v1437 = vadd.f32 %v1373, %v1424
      %v1438 = vadd.f32 %v1374, %v1426
      %v1439 = vadd.f32 %v1375, %v1429
      %v1440 = vadd.f32 %v1376, %v1431
      %v1441 = vld [vmem:[#allocation2 + $0x12] sm:$0xff]
      %v1442 = vld [vmem:[#allocation2 + $0x1a] sm:$0xff]
      %v1443 = vld [vmem:[#allocation2 + $0x22] sm:$0xff]
      %v1444 = vld [vmem:[#allocation2 + $0x2a] sm:$0xff]
      %v1445 = vld [vmem:[#allocation2 + $0x32] sm:$0xff]
      %v1446 = vld [vmem:[#allocation2 + $0x3a] sm:$0xff]
      %v1447 = vld [vmem:[#allocation2 + $0x42] sm:$0xff]
      %v1448 = vld [vmem:[#allocation2 + $0x4a] sm:$0xff]
      %v1449 = vsel %vm1025, %v1441, 0.0
      %v1450 = vsel %vm1026, %v1442, 0.0
      %v1451 = vsel %vm1027, %v1443, 0.0
      %v1452 = vsel %vm1028, %v1444, 0.0
      %v1453 = vsel %vm1029, %v1445, 0.0
      %v1454 = vsel %vm1030, %v1446, 0.0
      %v1455 = vsel %vm1031, %v1447, 0.0
      %v1456 = vsel %vm1032, %v1448, 0.0
      %v1457 = vpack.c.bf16 %v1450, %v1449
      %v1458 = vpack.c.bf16 %v1452, %v1451
      %v1459 = vpack.c.bf16 %v1454, %v1453
      %v1460 = vpack.c.bf16 %v1456, %v1455
      %v1462 = vsel %vm653, %v1457, 0
      %v1465 = vsel %vm653, %v1458, 0
      %v1468 = vsel %vm653, %v1459, 0
      %v1471 = vsel %vm653, %v1460, 0
      %v1474 = vsel %vm932, %v871, 0
      %1476 = vmatpush.bf16.msra.mxu0 0
      %1477 = vmatpush.bf16.msra.mxu0 0
      %1478 = vmatpush.bf16.msra.mxu0 0
      %1479 = vmatpush.bf16.msra.mxu0 0
      %1480 = vmatpush.bf16.msra.mxu0 0
      %1481 = vmatpush.bf16.msra.mxu0 0
      %1482 = vmatpush.bf16.msra.mxu0 0
      %1483 = vmatpush.bf16.msra.mxu0 %v1474
      %1484 = vmatmul.bf16.gmra.mxu0 %v1462
      %v1485 = vpop.f32.mrf.mxu0
      %v1486 = vadd.f32 0.0, %v1485
      %v1487 = vpop.f32.mrf.mxu0
      %v1488 = vadd.f32 0.0, %v1487
      %1489 = vmatmul.bf16.gmra.mxu0 %v1465
      %v1490 = vpop.f32.mrf.mxu0
      %v1491 = vadd.f32 0.0, %v1490
      %v1492 = vpop.f32.mrf.mxu0
      %v1493 = vadd.f32 0.0, %v1492
      %1494 = vmatmul.bf16.gmra.mxu0 %v1468
      %v1495 = vpop.f32.mrf.mxu0
      %v1496 = vadd.f32 0.0, %v1495
      %v1497 = vpop.f32.mrf.mxu0
      %v1498 = vadd.f32 0.0, %v1497
      %1499 = vmatmul.bf16.gmra.mxu0 %v1471
      %v1500 = vpop.f32.mrf.mxu0
      %v1501 = vadd.f32 0.0, %v1500
      %v1502 = vpop.f32.mrf.mxu0
      %v1503 = vadd.f32 0.0, %v1502
      %1504 = vdwg.mxu0
      %v1505 = vadd.f32 %v1433, %v1486
      %v1506 = vadd.f32 %v1434, %v1488
      %v1507 = vadd.f32 %v1435, %v1491
      %v1508 = vadd.f32 %v1436, %v1493
      %v1509 = vadd.f32 %v1437, %v1496
      %v1510 = vadd.f32 %v1438, %v1498
      %v1511 = vadd.f32 %v1439, %v1501
      %v1512 = vadd.f32 %v1440, %v1503
      %v1513 = vld [vmem:[%s5] sm:$0x1]
      %v1515 = vperm.slane %v1513, 0
      %v1517 = vadd.f32 %v1505, %v1515
      %v1518 = vadd.f32 %v1506, %v1515
      %v1519 = vadd.f32 %v1507, %v1515
      %v1520 = vadd.f32 %v1508, %v1515
      %v1521 = vadd.f32 %v1509, %v1515
      %v1522 = vadd.f32 %v1510, %v1515
      %v1523 = vadd.f32 %v1511, %v1515
      %v1524 = vadd.f32 %v1512, %v1515
      %v1525 = vmax.f32 %v1517, 0.0
      %v1526 = vmax.f32 %v1518, 0.0
      %v1527 = vmax.f32 %v1519, 0.0
      %v1528 = vmax.f32 %v1520, 0.0
      %v1529 = vmax.f32 %v1521, 0.0
      %v1530 = vmax.f32 %v1522, 0.0
      %v1531 = vmax.f32 %v1523, 0.0
      %v1532 = vmax.f32 %v1524, 0.0
      %v1533 = vld [vmem:[%s455] sm:$0xff]
      %v1534 = vld [vmem:[%s455 + $0x8] sm:$0xff]
      %v1535 = vld [vmem:[%s455 + $0x10] sm:$0xff]
      %v1536 = vld [vmem:[%s455 + $0x18] sm:$0xff]
      %v1537 = vld [vmem:[%s455 + $0x20] sm:$0xff]
      %v1538 = vld [vmem:[%s455 + $0x28] sm:$0xff]
      %v1539 = vld [vmem:[%s455 + $0x30] sm:$0xff]
      %v1540 = vld [vmem:[%s455 + $0x38] sm:$0xff]
      %v1541 = vadd.f32 %v1533, %v1525
      %v1542 = vadd.f32 %v1534, %v1526
      %v1543 = vadd.f32 %v1535, %v1527
      %v1544 = vadd.f32 %v1536, %v1528
      %v1545 = vadd.f32 %v1537, %v1529
      %v1546 = vadd.f32 %v1538, %v1530
      %v1547 = vadd.f32 %v1539, %v1531
      %v1548 = vadd.f32 %v1540, %v1532
      %v1549 = vsel %vm653, %v1541, 0.0
      %v1550 = vsel %vm653, %v1542, 0.0
      %v1551 = vadd.f32 %v1549, %v1550
      %v1552 = vsel %vm653, %v1543, 0.0
      %v1553 = vadd.f32 %v1551, %v1552
      %v1554 = vsel %vm653, %v1544, 0.0
      %v1555 = vadd.f32 %v1553, %v1554
      %v1556 = vsel %vm653, %v1545, 0.0
      %v1557 = vadd.f32 %v1555, %v1556
      %v1558 = vsel %vm653, %v1546, 0.0
      %v1559 = vadd.f32 %v1557, %v1558
      %v1560 = vsel %vm653, %v1547, 0.0
      %v1561 = vadd.f32 %v1559, %v1560
      %v1562 = vsel %vm653, %v1548, 0.0
      %v1563 = vadd.f32 %v1561, %v1562
      %v1564 = vrot.slane %v1563, 4
      %v1565 = vadd.f32 %v1563, %v1564
      %v1566 = vrot.slane %v1565, 2
      %v1567 = vadd.f32 %v1565, %v1566
      %v1568 = vrot.slane %v1567, 1
      %v1569 = vadd.f32 %v1567, %v1568
      %v1570 = vmul.f32 %v1569, 0.015625
      %v1571 = vld [vmem:[%s6] sm:$0xff]
      %v1573 = vsel %vm653, %v1570, 0
      %1575 = vmatpush.msra.mxu0 0.0
      %1576 = vmatpush.msra.mxu0 0.0
      %1577 = vmatpush.msra.mxu0 0.0
      %1578 = vmatpush.msra.mxu0 0.0
      %1579 = vmatpush.msra.mxu0 0.0
      %1580 = vmatpush.msra.mxu0 0.0
      %1581 = vmatpush.msra.mxu0 0.0
      %1582 = vmatpush.msra.mxu0 0.0
      %1583 = vmatpush.msra.mxu0 0.0
      %1584 = vmatpush.msra.mxu0 0.0
      %1585 = vmatpush.msra.mxu0 0.0
      %1586 = vmatpush.msra.mxu0 0.0
      %1587 = vmatpush.msra.mxu0 0.0
      %1588 = vmatpush.msra.mxu0 0.0
      %1589 = vmatpush.msra.mxu0 0.0
      %1590 = vmatpush.msra.mxu0 %v1571
      %1591 = vmatmul.f32.gmra.mxu0 %v1573
      %v1592 = vpop.f32.mrf.mxu0
      %v1593 = vadd.f32 0.0, %v1592
      %1594 = vdwg.mxu0
      %v1595 = vld [vmem:[%s7] sm:$0x1]
      %v1596 = vmul.f32 %v1593, %v1595
      %v1597 = vld [vmem:[%s8] sm:$0x1]
      %v1598 = vadd.f32 %v1596, %v1597
      %v1599 = vmax.f32 %v1598, 0.0
      %v1600 = vld [vmem:[%s9] sm:$0xff]
      %v1601 = vld [vmem:[%s9 + $0x8] sm:$0xff]
      %v1602 = vld [vmem:[%s9 + $0x10] sm:$0xff]
      %v1603 = vld [vmem:[%s9 + $0x18] sm:$0xff]
      %vm1604 = vcmask 261120
      %v1606 = vsel %vm1604, %v1599, 0
      %1608 = vmatpush.msra.mxu0 0.0
      %1609 = vmatpush.msra.mxu0 0.0
      %1610 = vmatpush.msra.mxu0 0.0
      %1611 = vmatpush.msra.mxu0 0.0
      %1612 = vmatpush.msra.mxu0 0.0
      %1613 = vmatpush.msra.mxu0 0.0
      %1614 = vmatpush.msra.mxu0 0.0
      %1615 = vmatpush.msra.mxu0 0.0
      %1616 = vmatpush.msra.mxu0 0.0
      %1617 = vmatpush.msra.mxu0 0.0
      %1618 = vmatpush.msra.mxu0 0.0
      %1619 = vmatpush.msra.mxu0 0.0
      %1620 = vmatpush.msra.mxu0 %v1603
      %1621 = vmatpush.msra.mxu0 %v1602
      %1622 = vmatpush.msra.mxu0 %v1601
      %1623 = vmatpush.msra.mxu0 %v1600
      %1624 = vmatmul.f32.gmra.mxu0 %v1606
      %v1625 = vpop.f32.mrf.mxu0
      %v1626 = vadd.f32 0.0, %v1625
      %1627 = vdwg.mxu0
      %v1628 = vld [vmem:[%s10] sm:$0xff]
      %v1629 = vld [vmem:[%s10 + $0x8] sm:$0xff]
      %v1630 = vld [vmem:[%s10 + $0x10] sm:$0xff]
      %v1631 = vld [vmem:[%s10 + $0x18] sm:$0xff]
      %1632 = vmatpush.msra.mxu0 0.0
      %1633 = vmatpush.msra.mxu0 0.0
      %1634 = vmatpush.msra.mxu0 0.0
      %1635 = vmatpush.msra.mxu0 0.0
      %1636 = vmatpush.msra.mxu0 0.0
      %1637 = vmatpush.msra.mxu0 0.0
      %1638 = vmatpush.msra.mxu0 0.0
      %1639 = vmatpush.msra.mxu0 0.0
      %1640 = vmatpush.msra.mxu0 0.0
      %1641 = vmatpush.msra.mxu0 0.0
      %1642 = vmatpush.msra.mxu0 0.0
      %1643 = vmatpush.msra.mxu0 0.0
      %1644 = vmatpush.msra.mxu0 %v1631
      %1645 = vmatpush.msra.mxu0 %v1630
      %1646 = vmatpush.msra.mxu0 %v1629
      %1647 = vmatpush.msra.mxu0 %v1628
      %1648 = vmatmul.f32.gmra.mxu0 %v1606
      %v1649 = vpop.f32.mrf.mxu0
      %v1650 = vadd.f32 0.0, %v1649
      %1651 = vdwg.mxu0
      %v1652 = vmax.f32 %v1626, %v1650
      %v1653 = vsub.f32 %v1626, %v1652
      %v1654 = vmul.f32 %v1653, 1.442695
      %v1655 = vpow.pop %v1654
      %v1656 = vsub.f32 %v1650, %v1652
      %v1657 = vmul.f32 %v1656, 1.442695
      %v1658 = vpow.pop %v1657
      %v1659 = vadd.f32 %v1655, %v1658
      %v1660 = vrcp.pop %v1659
      %v1661 = vmul.f32 %v1655, %v1660
      %v1662 = vperm.slane %v1661, 0
      %v1663 = vmul.f32 %v1533, %v1662
      %v1664 = vmul.f32 %v1534, %v1662
      %v1665 = vmul.f32 %v1535, %v1662
      %v1666 = vmul.f32 %v1536, %v1662
      %v1667 = vmul.f32 %v1537, %v1662
      %v1668 = vmul.f32 %v1538, %v1662
      %v1669 = vmul.f32 %v1539, %v1662
      %v1670 = vmul.f32 %v1540, %v1662
      %v1671 = vmul.f32 %v1658, %v1660
      %v1672 = vperm.slane %v1671, 0
      %v1673 = vmul.f32 %v1525, %v1672
      %v1674 = vmul.f32 %v1526, %v1672
      %v1675 = vmul.f32 %v1527, %v1672
      %v1676 = vmul.f32 %v1528, %v1672
      %v1677 = vmul.f32 %v1529, %v1672
      %v1678 = vmul.f32 %v1530, %v1672
      %v1679 = vmul.f32 %v1531, %v1672
      %v1680 = vmul.f32 %v1532, %v1672
      %v1681 = vadd.f32 %v1663, %v1673
      %v1682 = vadd.f32 %v1664, %v1674
      %v1683 = vadd.f32 %v1665, %v1675
      %v1684 = vadd.f32 %v1666, %v1676
      %v1685 = vadd.f32 %v1667, %v1677
      %v1686 = vadd.f32 %v1668, %v1678
      %v1687 = vadd.f32 %v1669, %v1679
      %v1688 = vadd.f32 %v1670, %v1680
      %v1689 = vpack.c.bf16 %v1682, %v1681
      %v1690 = vpack.c.bf16 %v1684, %v1683
      %v1691 = vpack.c.bf16 %v1686, %v1685
      %v1692 = vpack.c.bf16 %v1688, %v1687
      %v1693 = vld [vmem:[%s11] sm:$0xf]
      %v1694 = vld [vmem:[%s12] sm:$0x1]
      %v1696 = vperm.slane %v1694, 0
      %v1699 = vsel %vm653, %v1689, 0
      %v1702 = vsel %vm653, %v1690, 0
      %v1705 = vsel %vm653, %v1691, 0
      %v1708 = vsel %vm653, %v1692, 0
      %v1711 = vsel %vm932, %v1693, 0
      %1713 = vmatpush.bf16.msra.mxu0 0
      %1714 = vmatpush.bf16.msra.mxu0 0
      %1715 = vmatpush.bf16.msra.mxu0 0
      %1716 = vmatpush.bf16.msra.mxu0 0
      %1717 = vmatpush.bf16.msra.mxu0 0
      %1718 = vmatpush.bf16.msra.mxu0 0
      %1719 = vmatpush.bf16.msra.mxu0 0
      %1720 = vmatpush.bf16.msra.mxu0 %v1711
      %1721 = vmatmul.bf16.gmra.mxu0 %v1699
      %v1722 = vpop.f32.mrf.mxu0
      %v1723 = vadd.f32 %v1696, %v1722
      %v1724 = vpop.f32.mrf.mxu0
      %v1725 = vadd.f32 %v1696, %v1724
      %1726 = vmatmul.bf16.gmra.mxu0 %v1702
      %v1727 = vpop.f32.mrf.mxu0
      %v1728 = vadd.f32 %v1696, %v1727
      %v1729 = vpop.f32.mrf.mxu0
      %v1730 = vadd.f32 %v1696, %v1729
      %1731 = vmatmul.bf16.gmra.mxu0 %v1705
      %v1732 = vpop.f32.mrf.mxu0
      %v1733 = vadd.f32 %v1696, %v1732
      %v1734 = vpop.f32.mrf.mxu0
      %v1735 = vadd.f32 %v1696, %v1734
      %1736 = vmatmul.bf16.gmra.mxu0 %v1708
      %v1737 = vpop.f32.mrf.mxu0
      %v1738 = vadd.f32 %v1696, %v1737
      %v1739 = vpop.f32.mrf.mxu0
      %v1740 = vadd.f32 %v1696, %v1739
      %1741 = vdwg.mxu0
      %1742 = vst.msk [vmem:[%s460] sm:$0xff] %vm511, %v1723
      %1743 = vst.msk [vmem:[%s460 + $0x8] sm:$0xff] %vm511, %v1725
      %1744 = vst.msk [vmem:[%s460 + $0x10] sm:$0xff] %vm511, %v1728
      %1745 = vst.msk [vmem:[%s460 + $0x18] sm:$0xff] %vm511, %v1730
      %1746 = vst.msk [vmem:[%s460 + $0x20] sm:$0xff] %vm511, %v1733
      %1747 = vst.msk [vmem:[%s460 + $0x28] sm:$0xff] %vm511, %v1735
      %1748 = vst.msk [vmem:[%s460 + $0x30] sm:$0xff] %vm511, %v1738
      %1749 = vst.msk [vmem:[%s460 + $0x38] sm:$0xff] %vm511, %v1740
      %p1750 = scmp.lt.s32.totalorder %s24, 1
      %s1751 = scalar_select %p1750, %s24, 1
      %s1752 = smul.addr %s1751, 8
      %s1753 = smul.addr %s1752, 8
      %s1754 = scalar_lea.vmem %s13, %s1753
      // Predicated region
      $region73: #{cim_forward.2} parent=71 // pred_check
        %p1755 = pneg %p325
      $region74: #{cim_forward.2} parent=71 // pred_check_branch
        %1757 = sbr.rel (%p1755) target = $region76
      $region75: #{cim_forward.2} parent=71 // pred_region
        _
      $region76: #{cim_forward.2} parent=71 // pred_fallthru
        _
    $region72: #{cim_forward.2} parent=5 // pred_fallthru
      _
    %p1758 = scmp.le.s32.totalorder 2, %s19
    // Predicated region
    $region77: #{cim_forward.2} parent=5 // pred_check
      %p1759 = pneg %p1758
    $region78: #{cim_forward.2} parent=5 // pred_check_branch
      %1761 = sbr.rel (%p1759) target = $region80
    $region79: #{cim_forward.2} parent=5 // pred_region
      %s1762 = ssub.s32 %s19, 2
      // Predicated region
      $region81: #{cim_forward.2} parent=79 // pred_check
        %p1763 = pneg %p331
      $region82: #{cim_forward.2} parent=79 // pred_check_branch
        %1765 = sbr.rel (%p1763) target = $region84
      $region83: #{cim_forward.2} parent=79 // pred_region
        %p1766 = scmp.lt.s32.totalorder %s25, 1
        %s1767 = scalar_select %p1766, %s25, 1
        %s1768 = smul.addr %s1767, 8
        %s1769 = smul.addr %s1768, 8
        %s1770 = scalar_lea.vmem %s13, %s1769
      $region84: #{cim_forward.2} parent=79 // pred_fallthru
        _
    $region80: #{cim_forward.2} parent=5 // pred_fallthru
      _
  $region6: #{cim_forward.2} parent=0 // loop_footer
    %s23 = sadd.s32 1, %s19
  $region7: #{cim_forward.2} parent=0 // loop_footer_branch
    %18 = sbr.rel target = $region3
  $region8: #{cim_forward.2} parent=0 // loop_exit
    _

</llo_original>
